<compile_context>
chip_gen: v5e
topology: v5e:2x2
jax: 0.10.0
libtpu: 0.0.40
codegen_flags: <defaults>
</compile_context>

<pallas_src>
import math

import jax
import jax.numpy as jnp
from jax.experimental import pallas as pl
from jax.experimental.pallas import tpu as pltpu

# ---- model configuration (shape-consistent with the torch module) ------------
# Fourier_embedding(L=[1,1], M=[2,3], ones=False) -> out_features = 2 + 2*(2+3) = 12
# layers = [32, 32, 32, 1]  -> full layer list [12, 32, 32, 32, 1], activation tanh.
L = [1.0, 1.0]                 # frequency params (w = 2*pi/L)
M = [2, 3]                     # number of (cos, sin) pairs per input dim
D_IN = len(M)                  # 2 input coordinates
SUMM = sum(M)                  # 5 total (cos, sin) frequencies
EMB = D_IN + 2 * SUMM          # 12 = Fourier embedding width
HIDDEN = 32

# Row j of (SUMM, D_IN): (2*pi/L_d)*k in the column of its input dim, 0 elsewhere,
# so phase = coef @ x  with x of shape (D_IN, N).
PHASE_COEF = []
for _d in range(D_IN):
    _w = 2.0 * math.pi / L[_d]
    for _k in range(1, M[_d] + 1):
        _row = [0.0] * D_IN
        _row[_d] = _w * _k
        PHASE_COEF.append(_row)


def _make_emb_perm():
    """Maps kernel embedding order [x | all cos | all sin] to PyTorch column order."""
    perm = list(range(D_IN))
    cos_cols, sin_cols = [], []
    start = D_IN
    for m in M:
        cos_cols += list(range(start, start + m))
        sin_cols += list(range(start + m, start + 2 * m))
        start += 2 * m
    return perm + cos_cols + sin_cols


EMB_PERM = _make_emb_perm()


# ---- device-dependent knobs ---------------------------------------------------
def _default_compute_dtype():
    """bf16 transcendentals/gating on v6e/v7x; f32 on v5e and older / non-TPU."""
    try:
        kind = jax.devices()[0].device_kind.lower()
    except Exception:
        return jnp.float32
    if "tpu" not in kind:
        return jnp.float32
    for old in ("v2", "v3", "v4", "v5"):   # no bf16 VPU/EUP on v5e and older
        if old in kind:
            return jnp.float32
    return jnp.bfloat16


def _choose_tn(n):
    """Large lane tiles amortize ~0.35us/grid-step overhead; keep >=2 tiles when
    possible so v7x's two TensorCores both get work."""
    for cand in (4096, 2048, 1024):
        if n >= 2 * cand:
            return cand
    return min(1024, max(128, pl.next_power_of_2(max(n, 1))))


# ---- Pallas kernel: embedding + all dense layers + gated skip connections ----
def fourier_nn_kernel(x_ref, coef_ref, wxb_ref, wcos_ref, wsin_ref,
                      w2_ref, b2_ref, w3_ref, b3_ref, wo_ref, bo_ref, out_ref):
    xa = x_ref[...]                                        # (D_IN+1, TN) f32: [x ; ones]
    cd = w2_ref.dtype                                      # compute dtype (f32 or bf16)

    # Phase via a tiny MXU matmul (coef has a zero column matching the ones row).
    # Kept in f32 so large phases keep precision before cos/sin.
    phase = jnp.dot(coef_ref[...], xa, preferred_element_type=jnp.float32)  # (SUMM, TN)
    cosp = jnp.cos(phase)
    sinp = jnp.sin(phase)

    # Fused [V | U | h1] projection: three accumulated small-K dots (K = 3/5/5)
    # over the [x|ones], cos, sin pieces; the fused-layer bias is folded into the
    # ones-row column of wxb, so there is no bias broadcast/add here.
    h = (jnp.dot(wxb_ref[...], xa.astype(cd), preferred_element_type=jnp.float32)
         + jnp.dot(wcos_ref[...], cosp.astype(cd), preferred_element_type=jnp.float32)
         + jnp.dot(wsin_ref[...], sinp.astype(cd), preferred_element_type=jnp.float32))
    t = jnp.tanh(h.astype(cd))                             # (3H, TN): one EUP slab
    V = t[0:HIDDEN, :]
    U = t[HIDDEN:2 * HIDDEN, :]
    o = t[2 * HIDDEN:3 * HIDDEN, :]
    UmV = U - V                                            # loop-invariant gate term
    inp = V + o * UmV                                      # == o*U + (1-o)*V

    for w_r, b_r in ((w2_ref, b2_ref), (w3_ref, b3_ref)):
        h = jnp.dot(w_r[...], inp, preferred_element_type=jnp.float32)
        o = jnp.tanh(h.astype(cd) + b_r[...])              # (H, TN)
        inp = V + o * UmV

    # Final 32 -> 1 projection on the (idle) MXU; lane-dense (1, TN) store.
    out_ref[...] = (jnp.dot(wo_ref[...], inp, preferred_element_type=jnp.float32)
                    + bo_ref[...])


# ---- wrapper ------------------------------------------------------------------
def fourier_nn(x, params, *, tn=None, compute_dtype=None):
    """x: (N, D_IN) grid; params in PyTorch (out,in)/(out,) layout. Returns (N, 1)."""
    wu, bu, wv, bv, w1, b1, w2, b2, w3, b3, wo, bo = params
    N = x.shape[0]
    cd = _default_compute_dtype() if compute_dtype is None else compute_dtype
    tn = _choose_tn(N) if tn is None else tn
    num_tiles = pl.cdiv(N, tn)
    n_pad = num_tiles * tn

    # Fuse the three EMB->HIDDEN projections ([V | U | h1] row blocks), reorder the
    # input columns to the kernel's [x | cos | sin] layout, and split them into the
    # per-piece weights used by the accumulated dots.
    perm = jnp.asarray(EMB_PERM, dtype=jnp.int32)
    w_fused = jnp.concatenate([wv[:, perm], wu[:, perm], w1[:, perm]], axis=0)  # (3H, EMB)
    b_fused = jnp.concatenate([bv, bu, b1]).reshape(3 * HIDDEN, 1)
    w_x = w_fused[:, :D_IN]
    w_cos = w_fused[:, D_IN:D_IN + SUMM].astype(cd)
    w_sin = w_fused[:, D_IN + SUMM:].astype(cd)
    w_xb = jnp.concatenate([w_x, b_fused], axis=1).astype(cd)   # (3H, D_IN+1), bias folded

    coef = jnp.asarray(PHASE_COEF, dtype=jnp.float32)            # (SUMM, D_IN)
    coef = jnp.concatenate([coef, jnp.zeros((SUMM, 1), jnp.float32)], axis=1)  # ones row -> 0

    # Batch dimension on the 128-lane axis; ones row for the folded bias; zero-pad
    # the tail so any N is accepted (padded columns are sliced off the output).
    x_aug = jnp.concatenate([x.T.astype(jnp.float32),
                             jnp.ones((1, N), jnp.float32)], axis=0)            # (D_IN+1, N)
    if n_pad != N:
        x_aug = jnp.pad(x_aug, ((0, 0), (0, n_pad - N)))

    args = (x_aug, coef, w_xb, w_cos, w_sin,
            w2.astype(cd), b2.reshape(HIDDEN, 1).astype(cd),
            w3.astype(cd), b3.reshape(HIDDEN, 1).astype(cd),
            wo.reshape(1, HIDDEN).astype(cd), bo.reshape(1, 1).astype(jnp.float32))

    def full_spec(a):
        return pl.BlockSpec(a.shape, lambda i, _nd=a.ndim: (0,) * _nd)

    in_specs = ([pl.BlockSpec((D_IN + 1, tn), lambda i: (0, i))]
                + [full_spec(a) for a in args[1:]])

    # Advisory cost estimate (matmuls + gating flops, cos/sin/tanh transcendentals).
    flops = n_pad * (2 * SUMM * (D_IN + 1)
                     + 2 * (D_IN + 1 + 2 * SUMM) * 3 * HIDDEN
                     + 2 * 2 * HIDDEN * HIDDEN
                     + 2 * HIDDEN + 6 * HIDDEN)
    transcendentals = n_pad * (2 * SUMM + 5 * HIDDEN)
    bytes_accessed = int(4 * (x_aug.size + n_pad)
                         + sum(int(a.size) * a.dtype.itemsize for a in args[1:]))

    out = pl.pallas_call(
        fourier_nn_kernel,
        out_shape=jax.ShapeDtypeStruct((1, n_pad), jnp.float32),
        grid_spec=pltpu.PrefetchScalarGridSpec(
            num_scalar_prefetch=0,
            grid=(num_tiles,),
            in_specs=in_specs,
            out_specs=pl.BlockSpec((1, tn), lambda i: (0, i)),
        ),
        compiler_params=pltpu.CompilerParams(dimension_semantics=("parallel",)),
        cost_estimate=pl.CostEstimate(flops=int(flops),
                                      transcendentals=int(transcendentals),
                                      bytes_accessed=bytes_accessed),
    )(*args)
    return out[:, :N].T                                           # (N, 1)


# ---- deterministic parameter init (PyTorch Linear-style layout & uniform) -----
def init_linear(key, fan_in, fan_out):
    k1, k2 = jax.random.split(key)
    bound = 1.0 / math.sqrt(fan_in)
    w = jax.random.uniform(k1, (fan_out, fan_in), jnp.float32, -bound, bound)
    b = jax.random.uniform(k2, (fan_out,), jnp.float32, -bound, bound)
    return w, b


def make_params(key):
    keys = jax.random.split(key, 6)
    wu, bu = init_linear(keys[0], EMB, HIDDEN)       # linear_u
    wv, bv = init_linear(keys[1], EMB, HIDDEN)       # linear_v
    w1, b1 = init_linear(keys[2], EMB, HIDDEN)       # model[1]
    w2, b2 = init_linear(keys[3], HIDDEN, HIDDEN)    # model[2]
    w3, b3 = init_linear(keys[4], HIDDEN, HIDDEN)    # model[3]
    wo, bo = init_linear(keys[5], HIDDEN, 1)         # model[4] (final)
    return (wu, bu, wv, bv, w1, b1, w2, b2, w3, b3, wo, bo)


# ---- pure-JAX reference (faithful to the PyTorch forward) ----------------------
def reference(x, params):
    wu, bu, wv, bv, w1, b1, w2, b2, w3, b3, wo, bo = params
    parts = [x]
    for i in range(D_IN):
        w = 2.0 * math.pi / L[i]
        k = jnp.arange(1, M[i] + 1, dtype=jnp.float32)[None, :]
        phase = w * (x[:, i:i + 1] * k)
        parts += [jnp.cos(phase), jnp.sin(phase)]
    emb = jnp.concatenate(parts, axis=1)             # PyTorch column order
    V = jnp.tanh(jnp.dot(emb, wv.T, precision="highest") + bv)
    U = jnp.tanh(jnp.dot(emb, wu.T, precision="highest") + bu)
    inp = emb
    for w_, b_ in ((w1, b1), (w2, b2), (w3, b3)):
        o = jnp.tanh(jnp.dot(inp, w_.T, precision="highest") + b_)
        inp = o * U + (1.0 - o) * V
    return jnp.dot(inp, wo.T, precision="highest") + bo


if __name__ == "__main__":
    key = jax.random.PRNGKey(0)
    kx, kx2, kp = jax.random.split(key, 3)

    N = 2048                                  # grid points -> 2 lane tiles of 1024
    x = jax.random.uniform(kx, (N, D_IN), jnp.float32, -1.0, 1.0)   # calculation domain
    params = make_params(kp)
    ref = reference(x, params)

    # Exact-precision path (f32 everywhere); tolerance allows MXU precision-mode
    # rounding while still catching layout / gating / permutation bugs.
    out_f32 = jax.block_until_ready(fourier_nn(x, params, compute_dtype=jnp.float32))
    assert out_f32.shape == (N, 1)
    assert jnp.allclose(out_f32, ref, atol=2e-3, rtol=2e-3), "f32 Pallas kernel mismatch"

    # Auto path: bf16 transcendentals/gating on v6e/v7x, f32 elsewhere.
    cd = _default_compute_dtype()
    out_auto = jax.block_until_ready(fourier_nn(x, params))
    tol = 2e-3 if cd == jnp.float32 else 1e-1   # loose sanity bound for reduced precision
    assert out_auto.shape == (N, 1)
    assert jnp.allclose(out_auto, ref, atol=tol, rtol=tol), "auto-dtype Pallas kernel mismatch"

    # Non-multiple batch size exercises the pad/slice tail handling.
    N2 = 1000
    x2 = jax.random.uniform(kx2, (N2, D_IN), jnp.float32, -1.0, 1.0)
    out2 = jax.block_until_ready(fourier_nn(x2, params, compute_dtype=jnp.float32))
    assert out2.shape == (N2, 1)
    assert jnp.allclose(out2, reference(x2, params), atol=2e-3, rtol=2e-3), "tail-tile mismatch"

    print("KERNEL_OK")
</pallas_src>

<mosaic_0001>
module attributes {stable_mosaic.version = 11 : i64} {
  func.func @fourier_nn_kernel(%arg0: i32, %arg1: memref<3x1024xf32, #tpu.memory_space<vmem>>, %arg2: memref<5x3xf32, #tpu.memory_space<vmem>>, %arg3: memref<96x3xf32, #tpu.memory_space<vmem>>, %arg4: memref<96x5xf32, #tpu.memory_space<vmem>>, %arg5: memref<96x5xf32, #tpu.memory_space<vmem>>, %arg6: memref<32x32xf32, #tpu.memory_space<vmem>>, %arg7: memref<32x1xf32, #tpu.memory_space<vmem>>, %arg8: memref<32x32xf32, #tpu.memory_space<vmem>>, %arg9: memref<32x1xf32, #tpu.memory_space<vmem>>, %arg10: memref<1x32xf32, #tpu.memory_space<vmem>>, %arg11: memref<1x1xf32, #tpu.memory_space<vmem>>, %arg12: memref<1x1024xf32, #tpu.memory_space<vmem>>) attributes {dimension_semantics = [#tpu.dimension_semantics<parallel>], iteration_bounds = array<i64: 2>, scalar_prefetch = 0 : i64, scratch_operands = 0 : i64, tpu.core_type = #tpu.core_type<tc>, window_params = [{transform_indices = @transform_0, window_bounds = array<i64: 3, 1024>}, {pipeline_mode = #tpu.pipeline_mode<synchronous>, transform_indices = @transform_1, window_bounds = array<i64: 5, 3>}, {pipeline_mode = #tpu.pipeline_mode<synchronous>, transform_indices = @transform_2, window_bounds = array<i64: 96, 3>}, {pipeline_mode = #tpu.pipeline_mode<synchronous>, transform_indices = @transform_3, window_bounds = array<i64: 96, 5>}, {pipeline_mode = #tpu.pipeline_mode<synchronous>, transform_indices = @transform_4, window_bounds = array<i64: 96, 5>}, {pipeline_mode = #tpu.pipeline_mode<synchronous>, transform_indices = @transform_5, window_bounds = array<i64: 32, 32>}, {pipeline_mode = #tpu.pipeline_mode<synchronous>, transform_indices = @transform_6, window_bounds = array<i64: 32, 1>}, {pipeline_mode = #tpu.pipeline_mode<synchronous>, transform_indices = @transform_7, window_bounds = array<i64: 32, 32>}, {pipeline_mode = #tpu.pipeline_mode<synchronous>, transform_indices = @transform_8, window_bounds = array<i64: 32, 1>}, {pipeline_mode = #tpu.pipeline_mode<synchronous>, transform_indices = @transform_9, window_bounds = array<i64: 1, 32>}, {pipeline_mode = #tpu.pipeline_mode<synchronous>, transform_indices = @transform_10, window_bounds = array<i64: 1, 1>}, {transform_indices = @transform_11, window_bounds = array<i64: 1, 1024>}]} {
    %c0 = arith.constant 0 : index
    %c0_0 = arith.constant 0 : index
    %0 = vector.load %arg1[%c0, %c0_0] : memref<3x1024xf32, #tpu.memory_space<vmem>>, vector<3x1024xf32>
    %c0_1 = arith.constant 0 : index
    %c0_2 = arith.constant 0 : index
    %1 = vector.load %arg2[%c0_1, %c0_2] : memref<5x3xf32, #tpu.memory_space<vmem>>, vector<5x3xf32>
    %cst = arith.constant dense<0.000000e+00> : vector<5x1024xf32>
    %2 = tpu.matmul %1, %0, %cst {dimension_numbers = #tpu.dot_dimension_numbers<[1], [0], [0], [1], [0, 0, 1, 1], [], []>} : vector<5x3xf32>, vector<3x1024xf32>, vector<5x1024xf32> -> vector<5x1024xf32>
    %3 = math.cos %2 : vector<5x1024xf32>
    %4 = math.sin %2 : vector<5x1024xf32>
    %c0_3 = arith.constant 0 : index
    %c0_4 = arith.constant 0 : index
    %5 = vector.load %arg3[%c0_3, %c0_4] : memref<96x3xf32, #tpu.memory_space<vmem>>, vector<96x3xf32>
    %cst_5 = arith.constant dense<0.000000e+00> : vector<96x1024xf32>
    %6 = tpu.matmul %5, %0, %cst_5 {dimension_numbers = #tpu.dot_dimension_numbers<[1], [0], [0], [1], [0, 0, 1, 1], [], []>} : vector<96x3xf32>, vector<3x1024xf32>, vector<96x1024xf32> -> vector<96x1024xf32>
    %c0_6 = arith.constant 0 : index
    %c0_7 = arith.constant 0 : index
    %7 = vector.load %arg4[%c0_6, %c0_7] : memref<96x5xf32, #tpu.memory_space<vmem>>, vector<96x5xf32>
    %cst_8 = arith.constant dense<0.000000e+00> : vector<96x1024xf32>
    %8 = tpu.matmul %7, %3, %cst_8 {dimension_numbers = #tpu.dot_dimension_numbers<[1], [0], [0], [1], [0, 0, 1, 1], [], []>} : vector<96x5xf32>, vector<5x1024xf32>, vector<96x1024xf32> -> vector<96x1024xf32>
    %9 = arith.addf %6, %8 : vector<96x1024xf32>
    %c0_9 = arith.constant 0 : index
    %c0_10 = arith.constant 0 : index
    %10 = vector.load %arg5[%c0_9, %c0_10] : memref<96x5xf32, #tpu.memory_space<vmem>>, vector<96x5xf32>
    %cst_11 = arith.constant dense<0.000000e+00> : vector<96x1024xf32>
    %11 = tpu.matmul %10, %4, %cst_11 {dimension_numbers = #tpu.dot_dimension_numbers<[1], [0], [0], [1], [0, 0, 1, 1], [], []>} : vector<96x5xf32>, vector<5x1024xf32>, vector<96x1024xf32> -> vector<96x1024xf32>
    %12 = arith.addf %9, %11 : vector<96x1024xf32>
    %13 = math.tanh %12 : vector<96x1024xf32>
    %14 = vector.extract_strided_slice %13 {offsets = [0, 0], sizes = [32, 1024], strides = [1, 1]} : vector<96x1024xf32> to vector<32x1024xf32>
    %15 = vector.extract_strided_slice %13 {offsets = [32, 0], sizes = [32, 1024], strides = [1, 1]} : vector<96x1024xf32> to vector<32x1024xf32>
    %16 = vector.extract_strided_slice %13 {offsets = [64, 0], sizes = [32, 1024], strides = [1, 1]} : vector<96x1024xf32> to vector<32x1024xf32>
    %17 = arith.subf %15, %14 : vector<32x1024xf32>
    %18 = arith.mulf %16, %17 : vector<32x1024xf32>
    %19 = arith.addf %14, %18 : vector<32x1024xf32>
    %c0_12 = arith.constant 0 : index
    %c0_13 = arith.constant 0 : index
    %20 = vector.load %arg6[%c0_12, %c0_13] : memref<32x32xf32, #tpu.memory_space<vmem>>, vector<32x32xf32>
    %cst_14 = arith.constant dense<0.000000e+00> : vector<32x1024xf32>
    %21 = tpu.matmul %20, %19, %cst_14 {dimension_numbers = #tpu.dot_dimension_numbers<[1], [0], [0], [1], [0, 0, 1, 1], [], []>} : vector<32x32xf32>, vector<32x1024xf32>, vector<32x1024xf32> -> vector<32x1024xf32>
    %c0_15 = arith.constant 0 : index
    %c0_16 = arith.constant 0 : index
    %22 = vector.load %arg7[%c0_15, %c0_16] : memref<32x1xf32, #tpu.memory_space<vmem>>, vector<32x1xf32>
    %23 = vector.broadcast %22 : vector<32x1xf32> to vector<32x1024xf32>
    %24 = arith.addf %21, %23 : vector<32x1024xf32>
    %25 = math.tanh %24 : vector<32x1024xf32>
    %26 = arith.mulf %25, %17 : vector<32x1024xf32>
    %27 = arith.addf %14, %26 : vector<32x1024xf32>
    %c0_17 = arith.constant 0 : index
    %c0_18 = arith.constant 0 : index
    %28 = vector.load %arg8[%c0_17, %c0_18] : memref<32x32xf32, #tpu.memory_space<vmem>>, vector<32x32xf32>
    %cst_19 = arith.constant dense<0.000000e+00> : vector<32x1024xf32>
    %29 = tpu.matmul %28, %27, %cst_19 {dimension_numbers = #tpu.dot_dimension_numbers<[1], [0], [0], [1], [0, 0, 1, 1], [], []>} : vector<32x32xf32>, vector<32x1024xf32>, vector<32x1024xf32> -> vector<32x1024xf32>
    %c0_20 = arith.constant 0 : index
    %c0_21 = arith.constant 0 : index
    %30 = vector.load %arg9[%c0_20, %c0_21] : memref<32x1xf32, #tpu.memory_space<vmem>>, vector<32x1xf32>
    %31 = vector.broadcast %30 : vector<32x1xf32> to vector<32x1024xf32>
    %32 = arith.addf %29, %31 : vector<32x1024xf32>
    %33 = math.tanh %32 : vector<32x1024xf32>
    %34 = arith.mulf %33, %17 : vector<32x1024xf32>
    %35 = arith.addf %14, %34 : vector<32x1024xf32>
    %c0_22 = arith.constant 0 : index
    %c0_23 = arith.constant 0 : index
    %36 = vector.load %arg10[%c0_22, %c0_23] : memref<1x32xf32, #tpu.memory_space<vmem>>, vector<1x32xf32>
    %cst_24 = arith.constant dense<0.000000e+00> : vector<1x1024xf32>
    %37 = tpu.matmul %36, %35, %cst_24 {dimension_numbers = #tpu.dot_dimension_numbers<[1], [0], [0], [1], [0, 0, 1, 1], [], []>} : vector<1x32xf32>, vector<32x1024xf32>, vector<1x1024xf32> -> vector<1x1024xf32>
    %c0_25 = arith.constant 0 : index
    %c0_26 = arith.constant 0 : index
    %38 = vector.load %arg11[%c0_25, %c0_26] : memref<1x1xf32, #tpu.memory_space<vmem>>, vector<1x1xf32>
    %39 = vector.broadcast %38 : vector<1x1xf32> to vector<1x1024xf32>
    %40 = arith.addf %37, %39 : vector<1x1024xf32>
    %c0_27 = arith.constant 0 : index
    %c0_28 = arith.constant 0 : index
    %41 = vector.load %arg12[%c0_27, %c0_28] : memref<1x1024xf32, #tpu.memory_space<vmem>>, vector<1x1024xf32>
    tpu.vector_store %arg12[%c0_27, %c0_28], %40 {strides = array<i32>} : memref<1x1024xf32, #tpu.memory_space<vmem>>, vector<1x1024xf32>,
    return
  }
  func.func @transform_0(%arg0: i32) -> (i32, i32) {
    %c0_i32 = arith.constant 0 : i32
    %c0_i32_0 = arith.constant 0 : i32
    return %c0_i32, %arg0 : i32, i32
  }
  func.func @transform_1(%arg0: i32) -> (i32, i32) {
    %c0_i32 = arith.constant 0 : i32
    %c0_i32_0 = arith.constant 0 : i32
    %c0_i32_1 = arith.constant 0 : i32
    return %c0_i32, %c0_i32_0 : i32, i32
  }
  func.func @transform_2(%arg0: i32) -> (i32, i32) {
    %c0_i32 = arith.constant 0 : i32
    %c0_i32_0 = arith.constant 0 : i32
    %c0_i32_1 = arith.constant 0 : i32
    return %c0_i32, %c0_i32_0 : i32, i32
  }
  func.func @transform_3(%arg0: i32) -> (i32, i32) {
    %c0_i32 = arith.constant 0 : i32
    %c0_i32_0 = arith.constant 0 : i32
    %c0_i32_1 = arith.constant 0 : i32
    return %c0_i32, %c0_i32_0 : i32, i32
  }
  func.func @transform_4(%arg0: i32) -> (i32, i32) {
    %c0_i32 = arith.constant 0 : i32
    %c0_i32_0 = arith.constant 0 : i32
    %c0_i32_1 = arith.constant 0 : i32
    return %c0_i32, %c0_i32_0 : i32, i32
  }
  func.func @transform_5(%arg0: i32) -> (i32, i32) {
    %c0_i32 = arith.constant 0 : i32
    %c0_i32_0 = arith.constant 0 : i32
    %c0_i32_1 = arith.constant 0 : i32
    return %c0_i32, %c0_i32_0 : i32, i32
  }
  func.func @transform_6(%arg0: i32) -> (i32, i32) {
    %c0_i32 = arith.constant 0 : i32
    %c0_i32_0 = arith.constant 0 : i32
    %c0_i32_1 = arith.constant 0 : i32
    return %c0_i32, %c0_i32_0 : i32, i32
  }
  func.func @transform_7(%arg0: i32) -> (i32, i32) {
    %c0_i32 = arith.constant 0 : i32
    %c0_i32_0 = arith.constant 0 : i32
    %c0_i32_1 = arith.constant 0 : i32
    return %c0_i32, %c0_i32_0 : i32, i32
  }
  func.func @transform_8(%arg0: i32) -> (i32, i32) {
    %c0_i32 = arith.constant 0 : i32
    %c0_i32_0 = arith.constant 0 : i32
    %c0_i32_1 = arith.constant 0 : i32
    return %c0_i32, %c0_i32_0 : i32, i32
  }
  func.func @transform_9(%arg0: i32) -> (i32, i32) {
    %c0_i32 = arith.constant 0 : i32
    %c0_i32_0 = arith.constant 0 : i32
    %c0_i32_1 = arith.constant 0 : i32
    return %c0_i32, %c0_i32_0 : i32, i32
  }
  func.func @transform_10(%arg0: i32) -> (i32, i32) {
    %c0_i32 = arith.constant 0 : i32
    %c0_i32_0 = arith.constant 0 : i32
    %c0_i32_1 = arith.constant 0 : i32
    return %c0_i32, %c0_i32_0 : i32, i32
  }
  func.func @transform_11(%arg0: i32) -> (i32, i32) {
    %c0_i32 = arith.constant 0 : i32
    %c0_i32_0 = arith.constant 0 : i32
    return %c0_i32, %arg0 : i32, i32
  }
}

</mosaic_0001>

<llo_original>
// kernel: tpu_custom_call.1
$region0: #{tpu_custom_call.1}
  #allocation0 [shape = 'u32[]', space=smem, size = 0x4, offset = 0x4, fixed_abs, tag = 'smem constant byte address 0x4 - core index']
  #allocation1 [shape = 'u32[72,128]{1,0:T(1,128)}', space=vmem, size = 0x9000, scoped, tag = 'internal scratch']
  #allocation2 [shape = 'f32[1,1]{1,0:T(1,128)S(1)}', space=vmem, size = 0x200, scoped, tag = 'scoped memory for tpu_custom_call.1']
  %s0 = inlined_call_operand.vmem [shape: f32[3,2048], index: 0, kind: input, shape index: {}]
  %s1 = inlined_call_operand.vmem [shape: f32[5,3], index: 1, kind: input, shape index: {}]
  %s2 = inlined_call_operand.vmem [shape: f32[96,3], index: 2, kind: input, shape index: {}]
  %s3 = inlined_call_operand.vmem [shape: f32[96,5], index: 3, kind: input, shape index: {}]
  %s4 = inlined_call_operand.vmem [shape: f32[96,5], index: 4, kind: input, shape index: {}]
  %s5 = inlined_call_operand.vmem [shape: f32[32,32], index: 5, kind: input, shape index: {}]
  %s6 = inlined_call_operand.vmem [shape: f32[32,1], index: 6, kind: input, shape index: {}]
  %s7 = inlined_call_operand.vmem [shape: f32[32,32], index: 7, kind: input, shape index: {}]
  %s8 = inlined_call_operand.vmem [shape: f32[32,1], index: 8, kind: input, shape index: {}]
  %s9 = inlined_call_operand.vmem [shape: f32[1,32], index: 9, kind: input, shape index: {}]
  %s10 = inlined_call_operand.<no memory space> [shape: f32[1,1], index: 10, kind: input, shape index: {}]
  %s11 = inlined_call_operand.hbm [shape: f32[1,2048], index: 11, kind: output, shape index: {}]
  %s12 = sld [smem:[#allocation0]]
  $region77: #{tpu_custom_call.1} parent=0
    _
  %s14 = ssub.s32 1, %s12
  %s15 = scalar_select 0, %s14, %s12
  %v16 = vstv %s10
  %17 = vst [vmem:[#allocation2] sm:$0x1] %v16
  $region1: #{tpu_custom_call.1} parent=0
    #allocation3 [shape = 'u8[8192]{0}', space=vmem, size = 0x2000, scoped, tag = 'output window, operand 0']
    #allocation4 [shape = 's32[2]{0}', space=sflag, size = 0x8, scoped, tag = 'scoped memory for tpu_custom_call.1']
    %18 = vsyncpa [#allocation4], 0
    %s19 = scalar_lea.sflag [#allocation4], 1
    %20 = vsyncpa %s19, 0
    loop: start=0, step=1, limit=4
    $region2: #{tpu_custom_call.1} parent=1 // loop_pre_header
      _
    $region3: #{tpu_custom_call.1} parent=1 // loop_header
      %s22 = sphi 0, %s26
      %p23 = scmp.ge.s32.totalorder %s22, 4
      %s32 = sphi 0, %s34
      %s35 = sphi 0, %s32
      %s36 = sphi 0, %s35
      %s52 = sphi 0, %s36
      %s56 = sphi 0, %s56
      %s58 = sphi 0, %s56
      %s59 = sphi 0, %s58
      %s73 = sphi 0, %s59
      %s77 = sphi 0, %s77
      %s79 = sphi 0, %s77
      %s80 = sphi 0, %s79
      %s94 = sphi 0, %s80
      %s98 = sphi 0, %s98
      %s100 = sphi 0, %s98
      %s101 = sphi 0, %s100
      %s115 = sphi 0, %s101
      %s119 = sphi 0, %s119
      %s121 = sphi 0, %s119
      %s122 = sphi 0, %s121
      %s136 = sphi 0, %s122
      %s140 = sphi 0, %s140
      %s142 = sphi 0, %s140
      %s143 = sphi 0, %s142
      %s157 = sphi 0, %s143
      %s161 = sphi 0, %s161
      %s163 = sphi 0, %s161
      %s164 = sphi 0, %s163
      %s178 = sphi 0, %s164
      %s182 = sphi 0, %s182
      %s184 = sphi 0, %s182
      %s185 = sphi 0, %s184
      %s199 = sphi 0, %s185
      %s203 = sphi 0, %s203
      %s205 = sphi 0, %s203
      %s206 = sphi 0, %s205
      %s220 = sphi 0, %s206
      %s224 = sphi 0, %s224
      %s226 = sphi 0, %s224
      %s227 = sphi 0, %s226
      %s241 = sphi 0, %s227
      %s245 = sphi 0, %s245
      %s247 = sphi 0, %s245
      %s248 = sphi 0, %s247
      %s262 = sphi 0, %s248
      %s268 = sphi 0, %s270
      %s271 = sphi 0, %s268
      %s272 = sphi 0, %s271
      %s288 = sphi 0, %s272
    $region4: #{tpu_custom_call.1} parent=1 // loop_header_branch
      %25 = sbr.rel (%p23) target = $region8
    $region5: #{tpu_custom_call.1} parent=1 // loop_body
      %s27 = ssub.s32 %s22, 1
      %s28 = ssub.s32 %s22, 2
      %s29 = sadd.s32 %s22, 1
      %s30 = ssub.s32 %s22, %s29
      %p31 = scmp.eq.s32.totalorder %s30, 0
      %s33 = sadd.s32 %s32, 1
      %s34 = scalar_select %p31, %s32, %s33
      %p37 = pneg %p31
      %p38 = scmp.eq.s32.totalorder %s22, 1
      %p39 = por %p37, %p38
      %p40 = scmp.ne.s32.totalorder %s32, %s35
      %p41 = scmp.eq.s32.totalorder %s22, 0
      %p42 = por %p40, %p41
      %p43 = scmp.ne.s32.totalorder %s32, %s35
      %p44 = scmp.eq.s32.totalorder %s27, 1
      %p45 = por %p43, %p44
      %p46 = scmp.ne.s32.totalorder %s35, %s36
      %p47 = scmp.eq.s32.totalorder %s27, 0
      %p48 = por %p46, %p47
      %p49 = scmp.ne.s32.totalorder %s35, %s36
      %p50 = scmp.eq.s32.totalorder %s28, 1
      %p51 = por %p49, %p50
      %p53 = scmp.ne.s32.totalorder %s36, %s52
      %p54 = scmp.eq.s32.totalorder %s28, 0
      %p55 = por %p53, %p54
      %s57 = sadd.s32 %s56, 1
      %p60 = scmp.eq.s32.totalorder %s22, 1
      %p61 = scmp.ne.s32.totalorder %s56, %s58
      %p62 = scmp.eq.s32.totalorder %s22, 0
      %p63 = por %p61, %p62
      %p64 = scmp.ne.s32.totalorder %s56, %s58
      %p65 = scmp.eq.s32.totalorder %s27, 1
      %p66 = por %p64, %p65
      %p67 = scmp.ne.s32.totalorder %s58, %s59
      %p68 = scmp.eq.s32.totalorder %s27, 0
      %p69 = por %p67, %p68
      %p70 = scmp.ne.s32.totalorder %s58, %s59
      %p71 = scmp.eq.s32.totalorder %s28, 1
      %p72 = por %p70, %p71
      %p74 = scmp.ne.s32.totalorder %s59, %s73
      %p75 = scmp.eq.s32.totalorder %s28, 0
      %p76 = por %p74, %p75
      %s78 = sadd.s32 %s77, 1
      %p81 = scmp.eq.s32.totalorder %s22, 1
      %p82 = scmp.ne.s32.totalorder %s77, %s79
      %p83 = scmp.eq.s32.totalorder %s22, 0
      %p84 = por %p82, %p83
      %p85 = scmp.ne.s32.totalorder %s77, %s79
      %p86 = scmp.eq.s32.totalorder %s27, 1
      %p87 = por %p85, %p86
      %p88 = scmp.ne.s32.totalorder %s79, %s80
      %p89 = scmp.eq.s32.totalorder %s27, 0
      %p90 = por %p88, %p89
      %p91 = scmp.ne.s32.totalorder %s79, %s80
      %p92 = scmp.eq.s32.totalorder %s28, 1
      %p93 = por %p91, %p92
      %p95 = scmp.ne.s32.totalorder %s80, %s94
      %p96 = scmp.eq.s32.totalorder %s28, 0
      %p97 = por %p95, %p96
      %s99 = sadd.s32 %s98, 1
      %p102 = scmp.eq.s32.totalorder %s22, 1
      %p103 = scmp.ne.s32.totalorder %s98, %s100
      %p104 = scmp.eq.s32.totalorder %s22, 0
      %p105 = por %p103, %p104
      %p106 = scmp.ne.s32.totalorder %s98, %s100
      %p107 = scmp.eq.s32.totalorder %s27, 1
      %p108 = por %p106, %p107
      %p109 = scmp.ne.s32.totalorder %s100, %s101
      %p110 = scmp.eq.s32.totalorder %s27, 0
      %p111 = por %p109, %p110
      %p112 = scmp.ne.s32.totalorder %s100, %s101
      %p113 = scmp.eq.s32.totalorder %s28, 1
      %p114 = por %p112, %p113
      %p116 = scmp.ne.s32.totalorder %s101, %s115
      %p117 = scmp.eq.s32.totalorder %s28, 0
      %p118 = por %p116, %p117
      %s120 = sadd.s32 %s119, 1
      %p123 = scmp.eq.s32.totalorder %s22, 1
      %p124 = scmp.ne.s32.totalorder %s119, %s121
      %p125 = scmp.eq.s32.totalorder %s22, 0
      %p126 = por %p124, %p125
      %p127 = scmp.ne.s32.totalorder %s119, %s121
      %p128 = scmp.eq.s32.totalorder %s27, 1
      %p129 = por %p127, %p128
      %p130 = scmp.ne.s32.totalorder %s121, %s122
      %p131 = scmp.eq.s32.totalorder %s27, 0
      %p132 = por %p130, %p131
      %p133 = scmp.ne.s32.totalorder %s121, %s122
      %p134 = scmp.eq.s32.totalorder %s28, 1
      %p135 = por %p133, %p134
      %p137 = scmp.ne.s32.totalorder %s122, %s136
      %p138 = scmp.eq.s32.totalorder %s28, 0
      %p139 = por %p137, %p138
      %s141 = sadd.s32 %s140, 1
      %p144 = scmp.eq.s32.totalorder %s22, 1
      %p145 = scmp.ne.s32.totalorder %s140, %s142
      %p146 = scmp.eq.s32.totalorder %s22, 0
      %p147 = por %p145, %p146
      %p148 = scmp.ne.s32.totalorder %s140, %s142
      %p149 = scmp.eq.s32.totalorder %s27, 1
      %p150 = por %p148, %p149
      %p151 = scmp.ne.s32.totalorder %s142, %s143
      %p152 = scmp.eq.s32.totalorder %s27, 0
      %p153 = por %p151, %p152
      %p154 = scmp.ne.s32.totalorder %s142, %s143
      %p155 = scmp.eq.s32.totalorder %s28, 1
      %p156 = por %p154, %p155
      %p158 = scmp.ne.s32.totalorder %s143, %s157
      %p159 = scmp.eq.s32.totalorder %s28, 0
      %p160 = por %p158, %p159
      %s162 = sadd.s32 %s161, 1
      %p165 = scmp.eq.s32.totalorder %s22, 1
      %p166 = scmp.ne.s32.totalorder %s161, %s163
      %p167 = scmp.eq.s32.totalorder %s22, 0
      %p168 = por %p166, %p167
      %p169 = scmp.ne.s32.totalorder %s161, %s163
      %p170 = scmp.eq.s32.totalorder %s27, 1
      %p171 = por %p169, %p170
      %p172 = scmp.ne.s32.totalorder %s163, %s164
      %p173 = scmp.eq.s32.totalorder %s27, 0
      %p174 = por %p172, %p173
      %p175 = scmp.ne.s32.totalorder %s163, %s164
      %p176 = scmp.eq.s32.totalorder %s28, 1
      %p177 = por %p175, %p176
      %p179 = scmp.ne.s32.totalorder %s164, %s178
      %p180 = scmp.eq.s32.totalorder %s28, 0
      %p181 = por %p179, %p180
      %s183 = sadd.s32 %s182, 1
      %p186 = scmp.eq.s32.totalorder %s22, 1
      %p187 = scmp.ne.s32.totalorder %s182, %s184
      %p188 = scmp.eq.s32.totalorder %s22, 0
      %p189 = por %p187, %p188
      %p190 = scmp.ne.s32.totalorder %s182, %s184
      %p191 = scmp.eq.s32.totalorder %s27, 1
      %p192 = por %p190, %p191
      %p193 = scmp.ne.s32.totalorder %s184, %s185
      %p194 = scmp.eq.s32.totalorder %s27, 0
      %p195 = por %p193, %p194
      %p196 = scmp.ne.s32.totalorder %s184, %s185
      %p197 = scmp.eq.s32.totalorder %s28, 1
      %p198 = por %p196, %p197
      %p200 = scmp.ne.s32.totalorder %s185, %s199
      %p201 = scmp.eq.s32.totalorder %s28, 0
      %p202 = por %p200, %p201
      %s204 = sadd.s32 %s203, 1
      %p207 = scmp.eq.s32.totalorder %s22, 1
      %p208 = scmp.ne.s32.totalorder %s203, %s205
      %p209 = scmp.eq.s32.totalorder %s22, 0
      %p210 = por %p208, %p209
      %p211 = scmp.ne.s32.totalorder %s203, %s205
      %p212 = scmp.eq.s32.totalorder %s27, 1
      %p213 = por %p211, %p212
      %p214 = scmp.ne.s32.totalorder %s205, %s206
      %p215 = scmp.eq.s32.totalorder %s27, 0
      %p216 = por %p214, %p215
      %p217 = scmp.ne.s32.totalorder %s205, %s206
      %p218 = scmp.eq.s32.totalorder %s28, 1
      %p219 = por %p217, %p218
      %p221 = scmp.ne.s32.totalorder %s206, %s220
      %p222 = scmp.eq.s32.totalorder %s28, 0
      %p223 = por %p221, %p222
      %s225 = sadd.s32 %s224, 1
      %p228 = scmp.eq.s32.totalorder %s22, 1
      %p229 = scmp.ne.s32.totalorder %s224, %s226
      %p230 = scmp.eq.s32.totalorder %s22, 0
      %p231 = por %p229, %p230
      %p232 = scmp.ne.s32.totalorder %s224, %s226
      %p233 = scmp.eq.s32.totalorder %s27, 1
      %p234 = por %p232, %p233
      %p235 = scmp.ne.s32.totalorder %s226, %s227
      %p236 = scmp.eq.s32.totalorder %s27, 0
      %p237 = por %p235, %p236
      %p238 = scmp.ne.s32.totalorder %s226, %s227
      %p239 = scmp.eq.s32.totalorder %s28, 1
      %p240 = por %p238, %p239
      %p242 = scmp.ne.s32.totalorder %s227, %s241
      %p243 = scmp.eq.s32.totalorder %s28, 0
      %p244 = por %p242, %p243
      %s246 = sadd.s32 %s245, 1
      %p249 = scmp.eq.s32.totalorder %s22, 1
      %p250 = scmp.ne.s32.totalorder %s245, %s247
      %p251 = scmp.eq.s32.totalorder %s22, 0
      %p252 = por %p250, %p251
      %p253 = scmp.ne.s32.totalorder %s245, %s247
      %p254 = scmp.eq.s32.totalorder %s27, 1
      %p255 = por %p253, %p254
      %p256 = scmp.ne.s32.totalorder %s247, %s248
      %p257 = scmp.eq.s32.totalorder %s27, 0
      %p258 = por %p256, %p257
      %p259 = scmp.ne.s32.totalorder %s247, %s248
      %p260 = scmp.eq.s32.totalorder %s28, 1
      %p261 = por %p259, %p260
      %p263 = scmp.ne.s32.totalorder %s248, %s262
      %p264 = scmp.eq.s32.totalorder %s28, 0
      %p265 = por %p263, %p264
      %s266 = ssub.s32 %s22, %s29
      %p267 = scmp.eq.s32.totalorder %s266, 0
      %s269 = sadd.s32 %s268, 1
      %s270 = scalar_select %p267, %s268, %s269
      %p273 = pneg %p267
      %p274 = scmp.eq.s32.totalorder %s22, 1
      %p275 = por %p273, %p274
      %p276 = scmp.ne.s32.totalorder %s268, %s271
      %p277 = scmp.eq.s32.totalorder %s22, 0
      %p278 = por %p276, %p277
      %p279 = scmp.ne.s32.totalorder %s268, %s271
      %p280 = scmp.eq.s32.totalorder %s27, 1
      %p281 = por %p279, %p280
      %p282 = scmp.ne.s32.totalorder %s271, %s272
      %p283 = scmp.eq.s32.totalorder %s27, 0
      %p284 = por %p282, %p283
      %p285 = scmp.ne.s32.totalorder %s271, %s272
      %p286 = scmp.eq.s32.totalorder %s28, 1
      %p287 = por %p285, %p286
      %p289 = scmp.ne.s32.totalorder %s272, %s288
      %p290 = scmp.eq.s32.totalorder %s28, 0
      %p291 = por %p289, %p290
      %p292 = scmp.le.s32.totalorder 1, %s22
      %p293 = scmp.lt.s32.totalorder %s22, 3
      %p294 = pnand %p292, %p293
      %p295 = pneg %p294
      // Predicated region
      $region9: #{tpu_custom_call.1} parent=5 // pred_check
        _
      $region10: #{tpu_custom_call.1} parent=5 // pred_check_branch
        %297 = sbr.rel (%p294) target = $region12
      $region11: #{tpu_custom_call.1} parent=5 // pred_region
        %s298 = ssub.s32 %s22, 1
        // Predicated region
        $region13: #{tpu_custom_call.1} parent=11 // pred_check
          %p299 = pneg %p69
        $region14: #{tpu_custom_call.1} parent=11 // pred_check_branch
          %301 = sbr.rel (%p299) target = $region16
        $region15: #{tpu_custom_call.1} parent=11 // pred_region
          _
        $region16: #{tpu_custom_call.1} parent=11 // pred_fallthru
          _
        // Predicated region
        $region17: #{tpu_custom_call.1} parent=11 // pred_check
          %p302 = pneg %p90
        $region18: #{tpu_custom_call.1} parent=11 // pred_check_branch
          %304 = sbr.rel (%p302) target = $region20
        $region19: #{tpu_custom_call.1} parent=11 // pred_region
          _
        $region20: #{tpu_custom_call.1} parent=11 // pred_fallthru
          _
        // Predicated region
        $region21: #{tpu_custom_call.1} parent=11 // pred_check
          %p305 = pneg %p111
        $region22: #{tpu_custom_call.1} parent=11 // pred_check_branch
          %307 = sbr.rel (%p305) target = $region24
        $region23: #{tpu_custom_call.1} parent=11 // pred_region
          _
        $region24: #{tpu_custom_call.1} parent=11 // pred_fallthru
          _
        // Predicated region
        $region25: #{tpu_custom_call.1} parent=11 // pred_check
          %p308 = pneg %p132
        $region26: #{tpu_custom_call.1} parent=11 // pred_check_branch
          %310 = sbr.rel (%p308) target = $region28
        $region27: #{tpu_custom_call.1} parent=11 // pred_region
          _
        $region28: #{tpu_custom_call.1} parent=11 // pred_fallthru
          _
        // Predicated region
        $region29: #{tpu_custom_call.1} parent=11 // pred_check
          %p311 = pneg %p153
        $region30: #{tpu_custom_call.1} parent=11 // pred_check_branch
          %313 = sbr.rel (%p311) target = $region32
        $region31: #{tpu_custom_call.1} parent=11 // pred_region
          _
        $region32: #{tpu_custom_call.1} parent=11 // pred_fallthru
          _
        // Predicated region
        $region33: #{tpu_custom_call.1} parent=11 // pred_check
          %p314 = pneg %p174
        $region34: #{tpu_custom_call.1} parent=11 // pred_check_branch
          %316 = sbr.rel (%p314) target = $region36
        $region35: #{tpu_custom_call.1} parent=11 // pred_region
          _
        $region36: #{tpu_custom_call.1} parent=11 // pred_fallthru
          _
        // Predicated region
        $region37: #{tpu_custom_call.1} parent=11 // pred_check
          %p317 = pneg %p195
        $region38: #{tpu_custom_call.1} parent=11 // pred_check_branch
          %319 = sbr.rel (%p317) target = $region40
        $region39: #{tpu_custom_call.1} parent=11 // pred_region
          _
        $region40: #{tpu_custom_call.1} parent=11 // pred_fallthru
          _
        // Predicated region
        $region41: #{tpu_custom_call.1} parent=11 // pred_check
          %p320 = pneg %p216
        $region42: #{tpu_custom_call.1} parent=11 // pred_check_branch
          %322 = sbr.rel (%p320) target = $region44
        $region43: #{tpu_custom_call.1} parent=11 // pred_region
          _
        $region44: #{tpu_custom_call.1} parent=11 // pred_fallthru
          _
        // Predicated region
        $region45: #{tpu_custom_call.1} parent=11 // pred_check
          %p323 = pneg %p237
        $region46: #{tpu_custom_call.1} parent=11 // pred_check_branch
          %325 = sbr.rel (%p323) target = $region48
        $region47: #{tpu_custom_call.1} parent=11 // pred_region
          _
        $region48: #{tpu_custom_call.1} parent=11 // pred_fallthru
          _
        // Predicated region
        $region49: #{tpu_custom_call.1} parent=11 // pred_check
          %p326 = pneg %p258
        $region50: #{tpu_custom_call.1} parent=11 // pred_check_branch
          %328 = sbr.rel (%p326) target = $region52
        $region51: #{tpu_custom_call.1} parent=11 // pred_region
          _
        $region52: #{tpu_custom_call.1} parent=11 // pred_fallthru
          _
      $region12: #{tpu_custom_call.1} parent=5 // pred_fallthru
        _
      %p329 = scmp.lt.s32.totalorder %s22, 2
      // Predicated region
      $region53: #{tpu_custom_call.1} parent=5 // pred_check
        %p330 = pneg %p329
      $region54: #{tpu_custom_call.1} parent=5 // pred_check_branch
        %332 = sbr.rel (%p330) target = $region56
      $region55: #{tpu_custom_call.1} parent=5 // pred_region
        // Predicated region
        $region57: #{tpu_custom_call.1} parent=55 // pred_check
          %p333 = pneg %p42
        $region58: #{tpu_custom_call.1} parent=55 // pred_check_branch
          %335 = sbr.rel (%p333) target = $region60
        $region59: #{tpu_custom_call.1} parent=55 // pred_region
          %s336 = smul.u32 8, %s22
          %p337 = scmp.lt.s32.totalorder %s336, 15
          %s338 = scalar_select %p337, %s336, 15
          %s339 = smul.addr %s338, 4
          %s340 = scalar_lea.vmem %s0, %s339
          %s341 = smul.u32 8, %s22
        $region60: #{tpu_custom_call.1} parent=55 // pred_fallthru
          _
      $region56: #{tpu_custom_call.1} parent=5 // pred_fallthru
        _
      %p342 = scmp.le.s32.totalorder 1, %s22
      %p343 = scmp.lt.s32.totalorder %s22, 3
      %p344 = pnand %p342, %p343
      %p345 = pneg %p344
      // Predicated region
      $region61: #{tpu_custom_call.1} parent=5 // pred_check
        _
      $region62: #{tpu_custom_call.1} parent=5 // pred_check_branch
        %347 = sbr.rel (%p344) target = $region64
      $region63: #{tpu_custom_call.1} parent=5 // pred_region
        %s348 = ssub.s32 %s22, 1
        %s349 = smul.u32 8, %s27
        %p350 = scmp.lt.s32.totalorder %s349, 15
        %s351 = scalar_select %p350, %s349, 15
        %s352 = smul.addr %s351, 4
        %s353 = scalar_lea.vmem %s0, %s352
        %p354 = pneg %p48
        %p355 = pneg %p45
        %p356 = pneg %p69
        %p357 = pneg %p66
        %p358 = pneg %p90
        %p359 = pneg %p87
        %p360 = pneg %p111
        %p361 = pneg %p108
        %p362 = pneg %p132
        %p363 = pneg %p129
        %p364 = pneg %p153
        %p365 = pneg %p150
        %p366 = pneg %p174
        %p367 = pneg %p171
        %p368 = pneg %p195
        %p369 = pneg %p192
        %p370 = pneg %p216
        %p371 = pneg %p213
        %p372 = pneg %p237
        %p373 = pneg %p234
        %p374 = pneg %p258
        %p375 = pneg %p255
        %p376 = pneg %p284
        %p377 = pneg %p281
        %s378 = sand.u32 %s271, 1
        %s379 = scalar_lea.sflag [#allocation4], %s378
        %s380 = sand.u32 %s271, 1
        %s381 = smul.addr %s380, 8
        %s382 = scalar_lea.vmem [#allocation3], %s381
        %s383 = smul.u32 8, %s27
        %p384 = scmp.lt.s32.totalorder %s383, 15
        %s385 = scalar_select %p384, %s383, 15
        %s386 = smul.addr %s385, 4
        %s387 = scalar_lea.vmem %s0, %s386
        %s388 = smul.u32 8, %s27
        %s389 = smul.u32 8, %s27
        %v390 = vld [vmem:[%s387] sm:$0x77]
        %v391 = vld [vmem:[%s387 + $0x8] sm:$0x77]
        %v392 = vld [vmem:[%s387 + $0x10] sm:$0x77]
        %v393 = vld [vmem:[%s387 + $0x18] sm:$0x77]
        %v394 = vld [vmem:[%s1] sm:$0x1f]
        %399 = vst [vmem:[#allocation1] ss:$2 sm:$0xff] %v390
        %s400 = scalar_lea.vmem [#allocation1], 16
        %401 = vst [vmem:[%s400] ss:$2 sm:$0xff] %v391
        %s402 = scalar_lea.vmem [#allocation1], 32
        %403 = vst [vmem:[%s402] ss:$2 sm:$0xff] %v392
        %s404 = scalar_lea.vmem [#allocation1], 48
        %405 = vst [vmem:[%s404] ss:$2 sm:$0xff] %v393
        %v406 = vld.sshfl [vmem:[#allocation1] sm:$0xff pattern:$0x75316420]
        %v407 = vld.sshfl [vmem:[#allocation1 + $0x8] sm:$0xff pattern:$0x75316420]
        %v408 = vld.sshfl [vmem:[#allocation1 + $0x10] sm:$0xff pattern:$0x75316420]
        %v409 = vld.sshfl [vmem:[#allocation1 + $0x18] sm:$0xff pattern:$0x75316420]
        %v410 = vld.sshfl [vmem:[#allocation1 + $0x20] sm:$0xff pattern:$0x75316420]
        %v411 = vld.sshfl [vmem:[#allocation1 + $0x28] sm:$0xff pattern:$0x75316420]
        %v412 = vld.sshfl [vmem:[#allocation1 + $0x30] sm:$0xff pattern:$0x75316420]
        %v413 = vld.sshfl [vmem:[#allocation1 + $0x38] sm:$0xff pattern:$0x75316420]
        %vm414 = vcmask 23552
        %v416 = vsel %vm414, %v394, 0
        %vm418 = vcmask 1042432
        %v419 = vsel %vm418, %v406, 0
        %v421 = vsel %vm418, %v407, 0
        %v423 = vsel %vm418, %v408, 0
        %v425 = vsel %vm418, %v409, 0
        %v427 = vsel %vm418, %v410, 0
        %v429 = vsel %vm418, %v411, 0
        %v431 = vsel %vm418, %v412, 0
        %v433 = vsel %vm418, %v413, 0
        %435 = vmatpush.msra.mxu0 0.0
        %436 = vmatpush.msra.mxu0 0.0
        %437 = vmatpush.msra.mxu0 0.0
        %438 = vmatpush.msra.mxu0 0.0
        %439 = vmatpush.msra.mxu0 0.0
        %440 = vmatpush.msra.mxu0 0.0
        %441 = vmatpush.msra.mxu0 0.0
        %442 = vmatpush.msra.mxu0 0.0
        %443 = vmatpush.msra.mxu0 0.0
        %444 = vmatpush.msra.mxu0 0.0
        %445 = vmatpush.msra.mxu0 0.0
        %446 = vmatpush.msra.mxu0 0.0
        %447 = vmatpush.msra.mxu0 0.0
        %448 = vmatpush.msra.mxu0 0.0
        %449 = vmatpush.msra.mxu0 0.0
        %450 = vmatpush.msra.mxu0 %v419
        %451 = vmatmul.f32.gmra.mxu0 %v416
        %v452 = vpop.f32.mrf.mxu0
        %v453 = vadd.f32 0.0, %v452
        %454 = vdwg.mxu0
        %455 = vmatpush.msra.mxu0 0.0
        %456 = vmatpush.msra.mxu0 0.0
        %457 = vmatpush.msra.mxu0 0.0
        %458 = vmatpush.msra.mxu0 0.0
        %459 = vmatpush.msra.mxu0 0.0
        %460 = vmatpush.msra.mxu0 0.0
        %461 = vmatpush.msra.mxu0 0.0
        %462 = vmatpush.msra.mxu0 0.0
        %463 = vmatpush.msra.mxu0 0.0
        %464 = vmatpush.msra.mxu0 0.0
        %465 = vmatpush.msra.mxu0 0.0
        %466 = vmatpush.msra.mxu0 0.0
        %467 = vmatpush.msra.mxu0 0.0
        %468 = vmatpush.msra.mxu0 0.0
        %469 = vmatpush.msra.mxu0 0.0
        %470 = vmatpush.msra.mxu0 %v421
        %471 = vmatmul.f32.gmra.mxu0 %v416
        %v472 = vpop.f32.mrf.mxu0
        %v473 = vadd.f32 0.0, %v472
        %474 = vdwg.mxu0
        %475 = vmatpush.msra.mxu0 0.0
        %476 = vmatpush.msra.mxu0 0.0
        %477 = vmatpush.msra.mxu0 0.0
        %478 = vmatpush.msra.mxu0 0.0
        %479 = vmatpush.msra.mxu0 0.0
        %480 = vmatpush.msra.mxu0 0.0
        %481 = vmatpush.msra.mxu0 0.0
        %482 = vmatpush.msra.mxu0 0.0
        %483 = vmatpush.msra.mxu0 0.0
        %484 = vmatpush.msra.mxu0 0.0
        %485 = vmatpush.msra.mxu0 0.0
        %486 = vmatpush.msra.mxu0 0.0
        %487 = vmatpush.msra.mxu0 0.0
        %488 = vmatpush.msra.mxu0 0.0
        %489 = vmatpush.msra.mxu0 0.0
        %490 = vmatpush.msra.mxu0 %v423
        %491 = vmatmul.f32.gmra.mxu0 %v416
        %v492 = vpop.f32.mrf.mxu0
        %v493 = vadd.f32 0.0, %v492
        %494 = vdwg.mxu0
        %495 = vmatpush.msra.mxu0 0.0
        %496 = vmatpush.msra.mxu0 0.0
        %497 = vmatpush.msra.mxu0 0.0
        %498 = vmatpush.msra.mxu0 0.0
        %499 = vmatpush.msra.mxu0 0.0
        %500 = vmatpush.msra.mxu0 0.0
        %501 = vmatpush.msra.mxu0 0.0
        %502 = vmatpush.msra.mxu0 0.0
        %503 = vmatpush.msra.mxu0 0.0
        %504 = vmatpush.msra.mxu0 0.0
        %505 = vmatpush.msra.mxu0 0.0
        %506 = vmatpush.msra.mxu0 0.0
        %507 = vmatpush.msra.mxu0 0.0
        %508 = vmatpush.msra.mxu0 0.0
        %509 = vmatpush.msra.mxu0 0.0
        %510 = vmatpush.msra.mxu0 %v425
        %511 = vmatmul.f32.gmra.mxu0 %v416
        %v512 = vpop.f32.mrf.mxu0
        %v513 = vadd.f32 0.0, %v512
        %514 = vdwg.mxu0
        %515 = vmatpush.msra.mxu0 0.0
        %516 = vmatpush.msra.mxu0 0.0
        %517 = vmatpush.msra.mxu0 0.0
        %518 = vmatpush.msra.mxu0 0.0
        %519 = vmatpush.msra.mxu0 0.0
        %520 = vmatpush.msra.mxu0 0.0
        %521 = vmatpush.msra.mxu0 0.0
        %522 = vmatpush.msra.mxu0 0.0
        %523 = vmatpush.msra.mxu0 0.0
        %524 = vmatpush.msra.mxu0 0.0
        %525 = vmatpush.msra.mxu0 0.0
        %526 = vmatpush.msra.mxu0 0.0
        %527 = vmatpush.msra.mxu0 0.0
        %528 = vmatpush.msra.mxu0 0.0
        %529 = vmatpush.msra.mxu0 0.0
        %530 = vmatpush.msra.mxu0 %v427
        %531 = vmatmul.f32.gmra.mxu0 %v416
        %v532 = vpop.f32.mrf.mxu0
        %v533 = vadd.f32 0.0, %v532
        %534 = vdwg.mxu0
        %535 = vmatpush.msra.mxu0 0.0
        %536 = vmatpush.msra.mxu0 0.0
        %537 = vmatpush.msra.mxu0 0.0
        %538 = vmatpush.msra.mxu0 0.0
        %539 = vmatpush.msra.mxu0 0.0
        %540 = vmatpush.msra.mxu0 0.0
        %541 = vmatpush.msra.mxu0 0.0
        %542 = vmatpush.msra.mxu0 0.0
        %543 = vmatpush.msra.mxu0 0.0
        %544 = vmatpush.msra.mxu0 0.0
        %545 = vmatpush.msra.mxu0 0.0
        %546 = vmatpush.msra.mxu0 0.0
        %547 = vmatpush.msra.mxu0 0.0
        %548 = vmatpush.msra.mxu0 0.0
        %549 = vmatpush.msra.mxu0 0.0
        %550 = vmatpush.msra.mxu0 %v429
        %551 = vmatmul.f32.gmra.mxu0 %v416
        %v552 = vpop.f32.mrf.mxu0
        %v553 = vadd.f32 0.0, %v552
        %554 = vdwg.mxu0
        %555 = vmatpush.msra.mxu0 0.0
        %556 = vmatpush.msra.mxu0 0.0
        %557 = vmatpush.msra.mxu0 0.0
        %558 = vmatpush.msra.mxu0 0.0
        %559 = vmatpush.msra.mxu0 0.0
        %560 = vmatpush.msra.mxu0 0.0
        %561 = vmatpush.msra.mxu0 0.0
        %562 = vmatpush.msra.mxu0 0.0
        %563 = vmatpush.msra.mxu0 0.0
        %564 = vmatpush.msra.mxu0 0.0
        %565 = vmatpush.msra.mxu0 0.0
        %566 = vmatpush.msra.mxu0 0.0
        %567 = vmatpush.msra.mxu0 0.0
        %568 = vmatpush.msra.mxu0 0.0
        %569 = vmatpush.msra.mxu0 0.0
        %570 = vmatpush.msra.mxu0 %v431
        %571 = vmatmul.f32.gmra.mxu0 %v416
        %v572 = vpop.f32.mrf.mxu0
        %v573 = vadd.f32 0.0, %v572
        %574 = vdwg.mxu0
        %575 = vmatpush.msra.mxu0 0.0
        %576 = vmatpush.msra.mxu0 0.0
        %577 = vmatpush.msra.mxu0 0.0
        %578 = vmatpush.msra.mxu0 0.0
        %579 = vmatpush.msra.mxu0 0.0
        %580 = vmatpush.msra.mxu0 0.0
        %581 = vmatpush.msra.mxu0 0.0
        %582 = vmatpush.msra.mxu0 0.0
        %583 = vmatpush.msra.mxu0 0.0
        %584 = vmatpush.msra.mxu0 0.0
        %585 = vmatpush.msra.mxu0 0.0
        %586 = vmatpush.msra.mxu0 0.0
        %587 = vmatpush.msra.mxu0 0.0
        %588 = vmatpush.msra.mxu0 0.0
        %589 = vmatpush.msra.mxu0 0.0
        %590 = vmatpush.msra.mxu0 %v433
        %591 = vmatmul.f32.gmra.mxu0 %v416
        %v592 = vpop.f32.mrf.mxu0
        %v593 = vadd.f32 0.0, %v592
        %594 = vdwg.mxu0
        %v595 = vand.u32 2147483647, %v453
        %vm596 = vcmp.le.f32.partialorder %v595, 0.7853982
        %vm597 = vcmp.lt.s32.totalorder %v453, 0
        %v598 = vand.u32 %v453, 2139095040
        %v599 = vshrl.u32 %v598, 23
        %v600 = vsub.s32 %v599, 127
        %v601 = vand.u32 2147483647, %v453
        %v602 = vand.u32 %v601, 8388607
        %v603 = vor.u32 %v602, 8388608
        %v604 = vsub.s32 0, %v603
        %v605 = vadd.s32 %v600, 1
        %vm606 = vcmp.gt.s32.totalorder %v605, 0
        %v607 = vsel %vm606, %v605, 0
        %v608 = vshrl.u32 %v607, 5
        %v609 = vand.u32 %v607, 31
        %v610 = vsub.s32 32, %v609
        %v611 = vshrl.u32 683565275, %v610
        %v612 = vshll.u32 683565275, %v609
        %v613 = vshrl.u32 2475754826, %v610
        %v614 = vor.u32 %v612, %v613
        %v615 = vshll.u32 2475754826, %v609
        %v616 = vshrl.u32 2131351028, %v610
        %v617 = vor.u32 %v615, %v616
        %v618 = vshll.u32 2131351028, %v609
        %v619 = vshrl.u32 2102212464, %v610
        %v620 = vor.u32 %v618, %v619
        %v621 = vshll.u32 2102212464, %v609
        %v622 = vshrl.u32 920167782, %v610
        %v623 = vor.u32 %v621, %v622
        %v624 = vshll.u32 920167782, %v609
        %v625 = vshrl.u32 1326507024, %v610
        %v626 = vor.u32 %v624, %v625
        %vm627 = vcmp.lt.s32.totalorder %v608, 1
        %vm628 = vcmp.lt.s32.totalorder %v608, 2
        %vm629 = vcmp.lt.s32.totalorder %v608, 3
        %vm630 = vcmp.lt.s32.totalorder %v608, 4
        %v631 = vsel %vm627, %v611, %v614
        %v632 = vsel %vm630, %v620, 2102212464
        %v633 = vsel %vm629, %v617, %v632
        %v634 = vsel %vm628, %v631, %v633
        %v635 = vsel %vm627, %v614, %v617
        %v636 = vsel %vm630, %v623, 920167782
        %v637 = vsel %vm629, %v620, %v636
        %v638 = vsel %vm628, %v635, %v637
        %v639 = vsel %vm627, %v617, %v620
        %v640 = vsel %vm630, %v626, 1326507024
        %v641 = vsel %vm629, %v623, %v640
        %v642 = vsel %vm628, %v639, %v641
        %v643 = vshll.u32 %v603, 8
        %v644 = vand.u32 %v643, 65535
        %v645 = vshrl.u32 %v643, 16
        %v646 = vand.u32 %v642, 65535
        %v647 = vshrl.u32 %v642, 16
        %v648 = vmul.u32 %v644, %v646
        %v649 = vmul.u32 %v644, %v647
        %v650 = vmul.u32 %v645, %v646
        %v651 = vmul.u32 %v645, %v647
        %v652 = vshll.u32 %v649, 16
        %v653 = vshrl.u32 %v649, 16
        %v654 = vshll.u32 %v650, 16
        %v655 = vshrl.u32 %v650, 16
        %vm656 = vc.u32 %v648, %v652
        %v657 = vsel %vm656, 1, 0
        %v658 = vadd.s32 %v648, %v652
        %v659 = vadd.s32 %v651, %v657
        %vm660 = vc.u32 %v658, %v654
        %v661 = vsel %vm660, 1, 0
        %v662 = vadd.s32 %v658, %v654
        %v663 = vadd.s32 %v659, %v661
        %v664 = vadd.s32 %v663, %v653
        %v665 = vadd.s32 %v664, %v655
        %v666 = vand.u32 %v643, 65535
        %v667 = vshrl.u32 %v643, 16
        %v668 = vand.u32 %v638, 65535
        %v669 = vshrl.u32 %v638, 16
        %v670 = vmul.u32 %v666, %v668
        %v671 = vmul.u32 %v666, %v669
        %v672 = vmul.u32 %v667, %v668
        %v673 = vmul.u32 %v667, %v669
        %v674 = vshll.u32 %v671, 16
        %v675 = vshrl.u32 %v671, 16
        %v676 = vshll.u32 %v672, 16
        %v677 = vshrl.u32 %v672, 16
        %vm678 = vc.u32 %v670, %v674
        %v679 = vsel %vm678, 1, 0
        %v680 = vadd.s32 %v670, %v674
        %v681 = vadd.s32 %v673, %v679
        %vm682 = vc.u32 %v680, %v676
        %v683 = vsel %vm682, 1, 0
        %v684 = vadd.s32 %v680, %v676
        %v685 = vadd.s32 %v681, %v683
        %v686 = vadd.s32 %v685, %v675
        %v687 = vadd.s32 %v686, %v677
        %v688 = vmul.u32 %v643, %v634
        %v689 = vadd.s32 %v665, %v684
        %vm690 = vc.u32 %v665, %v684
        %v691 = vadd.s32 %v687, 1
        %v692 = vsel %vm690, %v691, %v687
        %v693 = vadd.s32 %v688, %v692
        %v694 = vadd.s32 %v693, 536870912
        %v695 = vshrl.u32 %v694, 30
        %v696 = vshll.u32 %v695, 30
        %v697 = vsub.s32 %v693, %v696
        %vm698 = vcmp.lt.s32.totalorder %v697, 0
        %v699 = vsub.s32 0, %v697
        %v700 = vsel %vm698, %v699, %v697
        %v701 = vclz %v700
        %v702 = vsub.s32 %v701, 2
        %vm703 = vcmp.gt.s32.totalorder 0, %v702
        %v704 = vsel %vm703, 0, %v702
        %v705 = vsub.s32 32, %v704
        %v706 = vshll.u32 %v697, %v704
        %v707 = vshrl.u32 %v689, %v705
        %v708 = vor.u32 %v706, %v707
        %v709 = vsub.s32 4294967266, %v704
        %v710 = vadd.s32 %v709, 127
        %v711 = vshll.u32 %v710, 23
        %v712 = vor.u32 4788187, %v711
        %v713 = vand.u32 2147483647, %v712
        %v715 = vcvt.s32.f32 %v708
        %v716 = vmul.f32 %v715, %v713
        %v717 = vxor.u32 %v716, 2147483648
        %v718 = vsel %vm597, %v717, %v716
        %v719 = vsub.s32 4, %v695
        %v720 = vsel %vm597, %v719, %v695
        %v721 = vsel %vm596, %v453, %v718
        %v722 = vsel %vm596, 0, %v720
        %v723 = vmul.f32 %v721, %v721
        %v724 = vmul.f32 %v723, -0.001358992
        %v725 = vadd.f32 %v724, 0.041655596
        %v726 = vmul.f32 %v723, %v725
        %v727 = vadd.f32 %v726, -0.4999988
        %v728 = vmul.f32 %v723, %v727
        %v729 = vadd.f32 1.0, %v728
        %v730 = vmul.f32 %v721, %v721
        %v731 = vmul.f32 %v730, -0.00019511016
        %v732 = vadd.f32 %v731, 0.008332121
        %v733 = vmul.f32 %v730, %v732
        %v734 = vadd.f32 %v733, -0.16666654
        %v735 = vmul.f32 %v730, %v734
        %v736 = vadd.f32 %v735, 1.0
        %v737 = vmul.f32 %v736, %v721
        %vm738 = vweird.f32 %v453
        %v739 = vand.u32 %v722, 3
        %vm740 = vcmp.lt.s32.totalorder %v739, 2
        %vm741 = vcmp.eq.s32.totalorder %v739, 0
        %v742 = vxor.u32 %v737, 2147483648
        %v743 = vsel %vm741, %v729, %v742
        %vm744 = vcmp.eq.s32.totalorder %v739, 2
        %v745 = vxor.u32 %v729, 2147483648
        %v746 = vsel %vm744, %v745, %v737
        %v747 = vsel %vm740, %v743, %v746
        %v748 = vsel %vm738, nan, %v747
        %v749 = vand.u32 2147483647, %v473
        %vm750 = vcmp.le.f32.partialorder %v749, 0.7853982
        %vm751 = vcmp.lt.s32.totalorder %v473, 0
        %v752 = vand.u32 %v473, 2139095040
        %v753 = vshrl.u32 %v752, 23
        %v754 = vsub.s32 %v753, 127
        %v755 = vand.u32 2147483647, %v473
        %v756 = vand.u32 %v755, 8388607
        %v757 = vor.u32 %v756, 8388608
        %v758 = vsub.s32 0, %v757
        %v759 = vadd.s32 %v754, 1
        %vm760 = vcmp.gt.s32.totalorder %v759, 0
        %v761 = vsel %vm760, %v759, 0
        %v762 = vshrl.u32 %v761, 5
        %v763 = vand.u32 %v761, 31
        %v764 = vsub.s32 32, %v763
        %v765 = vshrl.u32 683565275, %v764
        %v766 = vshll.u32 683565275, %v763
        %v767 = vshrl.u32 2475754826, %v764
        %v768 = vor.u32 %v766, %v767
        %v769 = vshll.u32 2475754826, %v763
        %v770 = vshrl.u32 2131351028, %v764
        %v771 = vor.u32 %v769, %v770
        %v772 = vshll.u32 2131351028, %v763
        %v773 = vshrl.u32 2102212464, %v764
        %v774 = vor.u32 %v772, %v773
        %v775 = vshll.u32 2102212464, %v763
        %v776 = vshrl.u32 920167782, %v764
        %v777 = vor.u32 %v775, %v776
        %v778 = vshll.u32 920167782, %v763
        %v779 = vshrl.u32 1326507024, %v764
        %v780 = vor.u32 %v778, %v779
        %vm781 = vcmp.lt.s32.totalorder %v762, 1
        %vm782 = vcmp.lt.s32.totalorder %v762, 2
        %vm783 = vcmp.lt.s32.totalorder %v762, 3
        %vm784 = vcmp.lt.s32.totalorder %v762, 4
        %v785 = vsel %vm781, %v765, %v768
        %v786 = vsel %vm784, %v774, 2102212464
        %v787 = vsel %vm783, %v771, %v786
        %v788 = vsel %vm782, %v785, %v787
        %v789 = vsel %vm781, %v768, %v771
        %v790 = vsel %vm784, %v777, 920167782
        %v791 = vsel %vm783, %v774, %v790
        %v792 = vsel %vm782, %v789, %v791
        %v793 = vsel %vm781, %v771, %v774
        %v794 = vsel %vm784, %v780, 1326507024
        %v795 = vsel %vm783, %v777, %v794
        %v796 = vsel %vm782, %v793, %v795
        %v797 = vshll.u32 %v757, 8
        %v798 = vand.u32 %v797, 65535
        %v799 = vshrl.u32 %v797, 16
        %v800 = vand.u32 %v796, 65535
        %v801 = vshrl.u32 %v796, 16
        %v802 = vmul.u32 %v798, %v800
        %v803 = vmul.u32 %v798, %v801
        %v804 = vmul.u32 %v799, %v800
        %v805 = vmul.u32 %v799, %v801
        %v806 = vshll.u32 %v803, 16
        %v807 = vshrl.u32 %v803, 16
        %v808 = vshll.u32 %v804, 16
        %v809 = vshrl.u32 %v804, 16
        %vm810 = vc.u32 %v802, %v806
        %v811 = vsel %vm810, 1, 0
        %v812 = vadd.s32 %v802, %v806
        %v813 = vadd.s32 %v805, %v811
        %vm814 = vc.u32 %v812, %v808
        %v815 = vsel %vm814, 1, 0
        %v816 = vadd.s32 %v812, %v808
        %v817 = vadd.s32 %v813, %v815
        %v818 = vadd.s32 %v817, %v807
        %v819 = vadd.s32 %v818, %v809
        %v820 = vand.u32 %v797, 65535
        %v821 = vshrl.u32 %v797, 16
        %v822 = vand.u32 %v792, 65535
        %v823 = vshrl.u32 %v792, 16
        %v824 = vmul.u32 %v820, %v822
        %v825 = vmul.u32 %v820, %v823
        %v826 = vmul.u32 %v821, %v822
        %v827 = vmul.u32 %v821, %v823
        %v828 = vshll.u32 %v825, 16
        %v829 = vshrl.u32 %v825, 16
        %v830 = vshll.u32 %v826, 16
        %v831 = vshrl.u32 %v826, 16
        %vm832 = vc.u32 %v824, %v828
        %v833 = vsel %vm832, 1, 0
        %v834 = vadd.s32 %v824, %v828
        %v835 = vadd.s32 %v827, %v833
        %vm836 = vc.u32 %v834, %v830
        %v837 = vsel %vm836, 1, 0
        %v838 = vadd.s32 %v834, %v830
        %v839 = vadd.s32 %v835, %v837
        %v840 = vadd.s32 %v839, %v829
        %v841 = vadd.s32 %v840, %v831
        %v842 = vmul.u32 %v797, %v788
        %v843 = vadd.s32 %v819, %v838
        %vm844 = vc.u32 %v819, %v838
        %v845 = vadd.s32 %v841, 1
        %v846 = vsel %vm844, %v845, %v841
        %v847 = vadd.s32 %v842, %v846
        %v848 = vadd.s32 %v847, 536870912
        %v849 = vshrl.u32 %v848, 30
        %v850 = vshll.u32 %v849, 30
        %v851 = vsub.s32 %v847, %v850
        %vm852 = vcmp.lt.s32.totalorder %v851, 0
        %v853 = vsub.s32 0, %v851
        %v854 = vsel %vm852, %v853, %v851
        %v855 = vclz %v854
        %v856 = vsub.s32 %v855, 2
        %vm857 = vcmp.gt.s32.totalorder 0, %v856
        %v858 = vsel %vm857, 0, %v856
        %v859 = vsub.s32 32, %v858
        %v860 = vshll.u32 %v851, %v858
        %v861 = vshrl.u32 %v843, %v859
        %v862 = vor.u32 %v860, %v861
        %v863 = vsub.s32 4294967266, %v858
        %v864 = vadd.s32 %v863, 127
        %v865 = vshll.u32 %v864, 23
        %v866 = vor.u32 4788187, %v865
        %v867 = vand.u32 2147483647, %v866
        %v869 = vcvt.s32.f32 %v862
        %v870 = vmul.f32 %v869, %v867
        %v871 = vxor.u32 %v870, 2147483648
        %v872 = vsel %vm751, %v871, %v870
        %v873 = vsub.s32 4, %v849
        %v874 = vsel %vm751, %v873, %v849
        %v875 = vsel %vm750, %v473, %v872
        %v876 = vsel %vm750, 0, %v874
        %v877 = vmul.f32 %v875, %v875
        %v878 = vmul.f32 %v877, -0.001358992
        %v879 = vadd.f32 %v878, 0.041655596
        %v880 = vmul.f32 %v877, %v879
        %v881 = vadd.f32 %v880, -0.4999988
        %v882 = vmul.f32 %v877, %v881
        %v883 = vadd.f32 1.0, %v882
        %v884 = vmul.f32 %v875, %v875
        %v885 = vmul.f32 %v884, -0.00019511016
        %v886 = vadd.f32 %v885, 0.008332121
        %v887 = vmul.f32 %v884, %v886
        %v888 = vadd.f32 %v887, -0.16666654
        %v889 = vmul.f32 %v884, %v888
        %v890 = vadd.f32 %v889, 1.0
        %v891 = vmul.f32 %v890, %v875
        %vm892 = vweird.f32 %v473
        %v893 = vand.u32 %v876, 3
        %vm894 = vcmp.lt.s32.totalorder %v893, 2
        %vm895 = vcmp.eq.s32.totalorder %v893, 0
        %v896 = vxor.u32 %v891, 2147483648
        %v897 = vsel %vm895, %v883, %v896
        %vm898 = vcmp.eq.s32.totalorder %v893, 2
        %v899 = vxor.u32 %v883, 2147483648
        %v900 = vsel %vm898, %v899, %v891
        %v901 = vsel %vm894, %v897, %v900
        %v902 = vsel %vm892, nan, %v901
        %v903 = vand.u32 2147483647, %v493
        %vm904 = vcmp.le.f32.partialorder %v903, 0.7853982
        %vm905 = vcmp.lt.s32.totalorder %v493, 0
        %v906 = vand.u32 %v493, 2139095040
        %v907 = vshrl.u32 %v906, 23
        %v908 = vsub.s32 %v907, 127
        %v909 = vand.u32 2147483647, %v493
        %v910 = vand.u32 %v909, 8388607
        %v911 = vor.u32 %v910, 8388608
        %v912 = vsub.s32 0, %v911
        %v913 = vadd.s32 %v908, 1
        %vm914 = vcmp.gt.s32.totalorder %v913, 0
        %v915 = vsel %vm914, %v913, 0
        %v916 = vshrl.u32 %v915, 5
        %v917 = vand.u32 %v915, 31
        %v918 = vsub.s32 32, %v917
        %v919 = vshrl.u32 683565275, %v918
        %v920 = vshll.u32 683565275, %v917
        %v921 = vshrl.u32 2475754826, %v918
        %v922 = vor.u32 %v920, %v921
        %v923 = vshll.u32 2475754826, %v917
        %v924 = vshrl.u32 2131351028, %v918
        %v925 = vor.u32 %v923, %v924
        %v926 = vshll.u32 2131351028, %v917
        %v927 = vshrl.u32 2102212464, %v918
        %v928 = vor.u32 %v926, %v927
        %v929 = vshll.u32 2102212464, %v917
        %v930 = vshrl.u32 920167782, %v918
        %v931 = vor.u32 %v929, %v930
        %v932 = vshll.u32 920167782, %v917
        %v933 = vshrl.u32 1326507024, %v918
        %v934 = vor.u32 %v932, %v933
        %vm935 = vcmp.lt.s32.totalorder %v916, 1
        %vm936 = vcmp.lt.s32.totalorder %v916, 2
        %vm937 = vcmp.lt.s32.totalorder %v916, 3
        %vm938 = vcmp.lt.s32.totalorder %v916, 4
        %v939 = vsel %vm935, %v919, %v922
        %v940 = vsel %vm938, %v928, 2102212464
        %v941 = vsel %vm937, %v925, %v940
        %v942 = vsel %vm936, %v939, %v941
        %v943 = vsel %vm935, %v922, %v925
        %v944 = vsel %vm938, %v931, 920167782
        %v945 = vsel %vm937, %v928, %v944
        %v946 = vsel %vm936, %v943, %v945
        %v947 = vsel %vm935, %v925, %v928
        %v948 = vsel %vm938, %v934, 1326507024
        %v949 = vsel %vm937, %v931, %v948
        %v950 = vsel %vm936, %v947, %v949
        %v951 = vshll.u32 %v911, 8
        %v952 = vand.u32 %v951, 65535
        %v953 = vshrl.u32 %v951, 16
        %v954 = vand.u32 %v950, 65535
        %v955 = vshrl.u32 %v950, 16
        %v956 = vmul.u32 %v952, %v954
        %v957 = vmul.u32 %v952, %v955
        %v958 = vmul.u32 %v953, %v954
        %v959 = vmul.u32 %v953, %v955
        %v960 = vshll.u32 %v957, 16
        %v961 = vshrl.u32 %v957, 16
        %v962 = vshll.u32 %v958, 16
        %v963 = vshrl.u32 %v958, 16
        %vm964 = vc.u32 %v956, %v960
        %v965 = vsel %vm964, 1, 0
        %v966 = vadd.s32 %v956, %v960
        %v967 = vadd.s32 %v959, %v965
        %vm968 = vc.u32 %v966, %v962
        %v969 = vsel %vm968, 1, 0
        %v970 = vadd.s32 %v966, %v962
        %v971 = vadd.s32 %v967, %v969
        %v972 = vadd.s32 %v971, %v961
        %v973 = vadd.s32 %v972, %v963
        %v974 = vand.u32 %v951, 65535
        %v975 = vshrl.u32 %v951, 16
        %v976 = vand.u32 %v946, 65535
        %v977 = vshrl.u32 %v946, 16
        %v978 = vmul.u32 %v974, %v976
        %v979 = vmul.u32 %v974, %v977
        %v980 = vmul.u32 %v975, %v976
        %v981 = vmul.u32 %v975, %v977
        %v982 = vshll.u32 %v979, 16
        %v983 = vshrl.u32 %v979, 16
        %v984 = vshll.u32 %v980, 16
        %v985 = vshrl.u32 %v980, 16
        %vm986 = vc.u32 %v978, %v982
        %v987 = vsel %vm986, 1, 0
        %v988 = vadd.s32 %v978, %v982
        %v989 = vadd.s32 %v981, %v987
        %vm990 = vc.u32 %v988, %v984
        %v991 = vsel %vm990, 1, 0
        %v992 = vadd.s32 %v988, %v984
        %v993 = vadd.s32 %v989, %v991
        %v994 = vadd.s32 %v993, %v983
        %v995 = vadd.s32 %v994, %v985
        %v996 = vmul.u32 %v951, %v942
        %v997 = vadd.s32 %v973, %v992
        %vm998 = vc.u32 %v973, %v992
        %v999 = vadd.s32 %v995, 1
        %v1000 = vsel %vm998, %v999, %v995
        %v1001 = vadd.s32 %v996, %v1000
        %v1002 = vadd.s32 %v1001, 536870912
        %v1003 = vshrl.u32 %v1002, 30
        %v1004 = vshll.u32 %v1003, 30
        %v1005 = vsub.s32 %v1001, %v1004
        %vm1006 = vcmp.lt.s32.totalorder %v1005, 0
        %v1007 = vsub.s32 0, %v1005
        %v1008 = vsel %vm1006, %v1007, %v1005
        %v1009 = vclz %v1008
        %v1010 = vsub.s32 %v1009, 2
        %vm1011 = vcmp.gt.s32.totalorder 0, %v1010
        %v1012 = vsel %vm1011, 0, %v1010
        %v1013 = vsub.s32 32, %v1012
        %v1014 = vshll.u32 %v1005, %v1012
        %v1015 = vshrl.u32 %v997, %v1013
        %v1016 = vor.u32 %v1014, %v1015
        %v1017 = vsub.s32 4294967266, %v1012
        %v1018 = vadd.s32 %v1017, 127
        %v1019 = vshll.u32 %v1018, 23
        %v1020 = vor.u32 4788187, %v1019
        %v1021 = vand.u32 2147483647, %v1020
        %v1023 = vcvt.s32.f32 %v1016
        %v1024 = vmul.f32 %v1023, %v1021
        %v1025 = vxor.u32 %v1024, 2147483648
        %v1026 = vsel %vm905, %v1025, %v1024
        %v1027 = vsub.s32 4, %v1003
        %v1028 = vsel %vm905, %v1027, %v1003
        %v1029 = vsel %vm904, %v493, %v1026
        %v1030 = vsel %vm904, 0, %v1028
        %v1031 = vmul.f32 %v1029, %v1029
        %v1032 = vmul.f32 %v1031, -0.001358992
        %v1033 = vadd.f32 %v1032, 0.041655596
        %v1034 = vmul.f32 %v1031, %v1033
        %v1035 = vadd.f32 %v1034, -0.4999988
        %v1036 = vmul.f32 %v1031, %v1035
        %v1037 = vadd.f32 1.0, %v1036
        %v1038 = vmul.f32 %v1029, %v1029
        %v1039 = vmul.f32 %v1038, -0.00019511016
        %v1040 = vadd.f32 %v1039, 0.008332121
        %v1041 = vmul.f32 %v1038, %v1040
        %v1042 = vadd.f32 %v1041, -0.16666654
        %v1043 = vmul.f32 %v1038, %v1042
        %v1044 = vadd.f32 %v1043, 1.0
        %v1045 = vmul.f32 %v1044, %v1029
        %vm1046 = vweird.f32 %v493
        %v1047 = vand.u32 %v1030, 3
        %vm1048 = vcmp.lt.s32.totalorder %v1047, 2
        %vm1049 = vcmp.eq.s32.totalorder %v1047, 0
        %v1050 = vxor.u32 %v1045, 2147483648
        %v1051 = vsel %vm1049, %v1037, %v1050
        %vm1052 = vcmp.eq.s32.totalorder %v1047, 2
        %v1053 = vxor.u32 %v1037, 2147483648
        %v1054 = vsel %vm1052, %v1053, %v1045
        %v1055 = vsel %vm1048, %v1051, %v1054
        %v1056 = vsel %vm1046, nan, %v1055
        %v1057 = vand.u32 2147483647, %v513
        %vm1058 = vcmp.le.f32.partialorder %v1057, 0.7853982
        %vm1059 = vcmp.lt.s32.totalorder %v513, 0
        %v1060 = vand.u32 %v513, 2139095040
        %v1061 = vshrl.u32 %v1060, 23
        %v1062 = vsub.s32 %v1061, 127
        %v1063 = vand.u32 2147483647, %v513
        %v1064 = vand.u32 %v1063, 8388607
        %v1065 = vor.u32 %v1064, 8388608
        %v1066 = vsub.s32 0, %v1065
        %v1067 = vadd.s32 %v1062, 1
        %vm1068 = vcmp.gt.s32.totalorder %v1067, 0
        %v1069 = vsel %vm1068, %v1067, 0
        %v1070 = vshrl.u32 %v1069, 5
        %v1071 = vand.u32 %v1069, 31
        %v1072 = vsub.s32 32, %v1071
        %v1073 = vshrl.u32 683565275, %v1072
        %v1074 = vshll.u32 683565275, %v1071
        %v1075 = vshrl.u32 2475754826, %v1072
        %v1076 = vor.u32 %v1074, %v1075
        %v1077 = vshll.u32 2475754826, %v1071
        %v1078 = vshrl.u32 2131351028, %v1072
        %v1079 = vor.u32 %v1077, %v1078
        %v1080 = vshll.u32 2131351028, %v1071
        %v1081 = vshrl.u32 2102212464, %v1072
        %v1082 = vor.u32 %v1080, %v1081
        %v1083 = vshll.u32 2102212464, %v1071
        %v1084 = vshrl.u32 920167782, %v1072
        %v1085 = vor.u32 %v1083, %v1084
        %v1086 = vshll.u32 920167782, %v1071
        %v1087 = vshrl.u32 1326507024, %v1072
        %v1088 = vor.u32 %v1086, %v1087
        %vm1089 = vcmp.lt.s32.totalorder %v1070, 1
        %vm1090 = vcmp.lt.s32.totalorder %v1070, 2
        %vm1091 = vcmp.lt.s32.totalorder %v1070, 3
        %vm1092 = vcmp.lt.s32.totalorder %v1070, 4
        %v1093 = vsel %vm1089, %v1073, %v1076
        %v1094 = vsel %vm1092, %v1082, 2102212464
        %v1095 = vsel %vm1091, %v1079, %v1094
        %v1096 = vsel %vm1090, %v1093, %v1095
        %v1097 = vsel %vm1089, %v1076, %v1079
        %v1098 = vsel %vm1092, %v1085, 920167782
        %v1099 = vsel %vm1091, %v1082, %v1098
        %v1100 = vsel %vm1090, %v1097, %v1099
        %v1101 = vsel %vm1089, %v1079, %v1082
        %v1102 = vsel %vm1092, %v1088, 1326507024
        %v1103 = vsel %vm1091, %v1085, %v1102
        %v1104 = vsel %vm1090, %v1101, %v1103
        %v1105 = vshll.u32 %v1065, 8
        %v1106 = vand.u32 %v1105, 65535
        %v1107 = vshrl.u32 %v1105, 16
        %v1108 = vand.u32 %v1104, 65535
        %v1109 = vshrl.u32 %v1104, 16
        %v1110 = vmul.u32 %v1106, %v1108
        %v1111 = vmul.u32 %v1106, %v1109
        %v1112 = vmul.u32 %v1107, %v1108
        %v1113 = vmul.u32 %v1107, %v1109
        %v1114 = vshll.u32 %v1111, 16
        %v1115 = vshrl.u32 %v1111, 16
        %v1116 = vshll.u32 %v1112, 16
        %v1117 = vshrl.u32 %v1112, 16
        %vm1118 = vc.u32 %v1110, %v1114
        %v1119 = vsel %vm1118, 1, 0
        %v1120 = vadd.s32 %v1110, %v1114
        %v1121 = vadd.s32 %v1113, %v1119
        %vm1122 = vc.u32 %v1120, %v1116
        %v1123 = vsel %vm1122, 1, 0
        %v1124 = vadd.s32 %v1120, %v1116
        %v1125 = vadd.s32 %v1121, %v1123
        %v1126 = vadd.s32 %v1125, %v1115
        %v1127 = vadd.s32 %v1126, %v1117
        %v1128 = vand.u32 %v1105, 65535
        %v1129 = vshrl.u32 %v1105, 16
        %v1130 = vand.u32 %v1100, 65535
        %v1131 = vshrl.u32 %v1100, 16
        %v1132 = vmul.u32 %v1128, %v1130
        %v1133 = vmul.u32 %v1128, %v1131
        %v1134 = vmul.u32 %v1129, %v1130
        %v1135 = vmul.u32 %v1129, %v1131
        %v1136 = vshll.u32 %v1133, 16
        %v1137 = vshrl.u32 %v1133, 16
        %v1138 = vshll.u32 %v1134, 16
        %v1139 = vshrl.u32 %v1134, 16
        %vm1140 = vc.u32 %v1132, %v1136
        %v1141 = vsel %vm1140, 1, 0
        %v1142 = vadd.s32 %v1132, %v1136
        %v1143 = vadd.s32 %v1135, %v1141
        %vm1144 = vc.u32 %v1142, %v1138
        %v1145 = vsel %vm1144, 1, 0
        %v1146 = vadd.s32 %v1142, %v1138
        %v1147 = vadd.s32 %v1143, %v1145
        %v1148 = vadd.s32 %v1147, %v1137
        %v1149 = vadd.s32 %v1148, %v1139
        %v1150 = vmul.u32 %v1105, %v1096
        %v1151 = vadd.s32 %v1127, %v1146
        %vm1152 = vc.u32 %v1127, %v1146
        %v1153 = vadd.s32 %v1149, 1
        %v1154 = vsel %vm1152, %v1153, %v1149
        %v1155 = vadd.s32 %v1150, %v1154
        %v1156 = vadd.s32 %v1155, 536870912
        %v1157 = vshrl.u32 %v1156, 30
        %v1158 = vshll.u32 %v1157, 30
        %v1159 = vsub.s32 %v1155, %v1158
        %vm1160 = vcmp.lt.s32.totalorder %v1159, 0
        %v1161 = vsub.s32 0, %v1159
        %v1162 = vsel %vm1160, %v1161, %v1159
        %v1163 = vclz %v1162
        %v1164 = vsub.s32 %v1163, 2
        %vm1165 = vcmp.gt.s32.totalorder 0, %v1164
        %v1166 = vsel %vm1165, 0, %v1164
        %v1167 = vsub.s32 32, %v1166
        %v1168 = vshll.u32 %v1159, %v1166
        %v1169 = vshrl.u32 %v1151, %v1167
        %v1170 = vor.u32 %v1168, %v1169
        %v1171 = vsub.s32 4294967266, %v1166
        %v1172 = vadd.s32 %v1171, 127
        %v1173 = vshll.u32 %v1172, 23
        %v1174 = vor.u32 4788187, %v1173
        %v1175 = vand.u32 2147483647, %v1174
        %v1177 = vcvt.s32.f32 %v1170
        %v1178 = vmul.f32 %v1177, %v1175
        %v1179 = vxor.u32 %v1178, 2147483648
        %v1180 = vsel %vm1059, %v1179, %v1178
        %v1181 = vsub.s32 4, %v1157
        %v1182 = vsel %vm1059, %v1181, %v1157
        %v1183 = vsel %vm1058, %v513, %v1180
        %v1184 = vsel %vm1058, 0, %v1182
        %v1185 = vmul.f32 %v1183, %v1183
        %v1186 = vmul.f32 %v1185, -0.001358992
        %v1187 = vadd.f32 %v1186, 0.041655596
        %v1188 = vmul.f32 %v1185, %v1187
        %v1189 = vadd.f32 %v1188, -0.4999988
        %v1190 = vmul.f32 %v1185, %v1189
        %v1191 = vadd.f32 1.0, %v1190
        %v1192 = vmul.f32 %v1183, %v1183
        %v1193 = vmul.f32 %v1192, -0.00019511016
        %v1194 = vadd.f32 %v1193, 0.008332121
        %v1195 = vmul.f32 %v1192, %v1194
        %v1196 = vadd.f32 %v1195, -0.16666654
        %v1197 = vmul.f32 %v1192, %v1196
        %v1198 = vadd.f32 %v1197, 1.0
        %v1199 = vmul.f32 %v1198, %v1183
        %vm1200 = vweird.f32 %v513
        %v1201 = vand.u32 %v1184, 3
        %vm1202 = vcmp.lt.s32.totalorder %v1201, 2
        %vm1203 = vcmp.eq.s32.totalorder %v1201, 0
        %v1204 = vxor.u32 %v1199, 2147483648
        %v1205 = vsel %vm1203, %v1191, %v1204
        %vm1206 = vcmp.eq.s32.totalorder %v1201, 2
        %v1207 = vxor.u32 %v1191, 2147483648
        %v1208 = vsel %vm1206, %v1207, %v1199
        %v1209 = vsel %vm1202, %v1205, %v1208
        %v1210 = vsel %vm1200, nan, %v1209
        %v1211 = vand.u32 2147483647, %v533
        %vm1212 = vcmp.le.f32.partialorder %v1211, 0.7853982
        %vm1213 = vcmp.lt.s32.totalorder %v533, 0
        %v1214 = vand.u32 %v533, 2139095040
        %v1215 = vshrl.u32 %v1214, 23
        %v1216 = vsub.s32 %v1215, 127
        %v1217 = vand.u32 2147483647, %v533
        %v1218 = vand.u32 %v1217, 8388607
        %v1219 = vor.u32 %v1218, 8388608
        %v1220 = vsub.s32 0, %v1219
        %v1221 = vadd.s32 %v1216, 1
        %vm1222 = vcmp.gt.s32.totalorder %v1221, 0
        %v1223 = vsel %vm1222, %v1221, 0
        %v1224 = vshrl.u32 %v1223, 5
        %v1225 = vand.u32 %v1223, 31
        %v1226 = vsub.s32 32, %v1225
        %v1227 = vshrl.u32 683565275, %v1226
        %v1228 = vshll.u32 683565275, %v1225
        %v1229 = vshrl.u32 2475754826, %v1226
        %v1230 = vor.u32 %v1228, %v1229
        %v1231 = vshll.u32 2475754826, %v1225
        %v1232 = vshrl.u32 2131351028, %v1226
        %v1233 = vor.u32 %v1231, %v1232
        %v1234 = vshll.u32 2131351028, %v1225
        %v1235 = vshrl.u32 2102212464, %v1226
        %v1236 = vor.u32 %v1234, %v1235
        %v1237 = vshll.u32 2102212464, %v1225
        %v1238 = vshrl.u32 920167782, %v1226
        %v1239 = vor.u32 %v1237, %v1238
        %v1240 = vshll.u32 920167782, %v1225
        %v1241 = vshrl.u32 1326507024, %v1226
        %v1242 = vor.u32 %v1240, %v1241
        %vm1243 = vcmp.lt.s32.totalorder %v1224, 1
        %vm1244 = vcmp.lt.s32.totalorder %v1224, 2
        %vm1245 = vcmp.lt.s32.totalorder %v1224, 3
        %vm1246 = vcmp.lt.s32.totalorder %v1224, 4
        %v1247 = vsel %vm1243, %v1227, %v1230
        %v1248 = vsel %vm1246, %v1236, 2102212464
        %v1249 = vsel %vm1245, %v1233, %v1248
        %v1250 = vsel %vm1244, %v1247, %v1249
        %v1251 = vsel %vm1243, %v1230, %v1233
        %v1252 = vsel %vm1246, %v1239, 920167782
        %v1253 = vsel %vm1245, %v1236, %v1252
        %v1254 = vsel %vm1244, %v1251, %v1253
        %v1255 = vsel %vm1243, %v1233, %v1236
        %v1256 = vsel %vm1246, %v1242, 1326507024
        %v1257 = vsel %vm1245, %v1239, %v1256
        %v1258 = vsel %vm1244, %v1255, %v1257
        %v1259 = vshll.u32 %v1219, 8
        %v1260 = vand.u32 %v1259, 65535
        %v1261 = vshrl.u32 %v1259, 16
        %v1262 = vand.u32 %v1258, 65535
        %v1263 = vshrl.u32 %v1258, 16
        %v1264 = vmul.u32 %v1260, %v1262
        %v1265 = vmul.u32 %v1260, %v1263
        %v1266 = vmul.u32 %v1261, %v1262
        %v1267 = vmul.u32 %v1261, %v1263
        %v1268 = vshll.u32 %v1265, 16
        %v1269 = vshrl.u32 %v1265, 16
        %v1270 = vshll.u32 %v1266, 16
        %v1271 = vshrl.u32 %v1266, 16
        %vm1272 = vc.u32 %v1264, %v1268
        %v1273 = vsel %vm1272, 1, 0
        %v1274 = vadd.s32 %v1264, %v1268
        %v1275 = vadd.s32 %v1267, %v1273
        %vm1276 = vc.u32 %v1274, %v1270
        %v1277 = vsel %vm1276, 1, 0
        %v1278 = vadd.s32 %v1274, %v1270
        %v1279 = vadd.s32 %v1275, %v1277
        %v1280 = vadd.s32 %v1279, %v1269
        %v1281 = vadd.s32 %v1280, %v1271
        %v1282 = vand.u32 %v1259, 65535
        %v1283 = vshrl.u32 %v1259, 16
        %v1284 = vand.u32 %v1254, 65535
        %v1285 = vshrl.u32 %v1254, 16
        %v1286 = vmul.u32 %v1282, %v1284
        %v1287 = vmul.u32 %v1282, %v1285
        %v1288 = vmul.u32 %v1283, %v1284
        %v1289 = vmul.u32 %v1283, %v1285
        %v1290 = vshll.u32 %v1287, 16
        %v1291 = vshrl.u32 %v1287, 16
        %v1292 = vshll.u32 %v1288, 16
        %v1293 = vshrl.u32 %v1288, 16
        %vm1294 = vc.u32 %v1286, %v1290
        %v1295 = vsel %vm1294, 1, 0
        %v1296 = vadd.s32 %v1286, %v1290
        %v1297 = vadd.s32 %v1289, %v1295
        %vm1298 = vc.u32 %v1296, %v1292
        %v1299 = vsel %vm1298, 1, 0
        %v1300 = vadd.s32 %v1296, %v1292
        %v1301 = vadd.s32 %v1297, %v1299
        %v1302 = vadd.s32 %v1301, %v1291
        %v1303 = vadd.s32 %v1302, %v1293
        %v1304 = vmul.u32 %v1259, %v1250
        %v1305 = vadd.s32 %v1281, %v1300
        %vm1306 = vc.u32 %v1281, %v1300
        %v1307 = vadd.s32 %v1303, 1
        %v1308 = vsel %vm1306, %v1307, %v1303
        %v1309 = vadd.s32 %v1304, %v1308
        %v1310 = vadd.s32 %v1309, 536870912
        %v1311 = vshrl.u32 %v1310, 30
        %v1312 = vshll.u32 %v1311, 30
        %v1313 = vsub.s32 %v1309, %v1312
        %vm1314 = vcmp.lt.s32.totalorder %v1313, 0
        %v1315 = vsub.s32 0, %v1313
        %v1316 = vsel %vm1314, %v1315, %v1313
        %v1317 = vclz %v1316
        %v1318 = vsub.s32 %v1317, 2
        %vm1319 = vcmp.gt.s32.totalorder 0, %v1318
        %v1320 = vsel %vm1319, 0, %v1318
        %v1321 = vsub.s32 32, %v1320
        %v1322 = vshll.u32 %v1313, %v1320
        %v1323 = vshrl.u32 %v1305, %v1321
        %v1324 = vor.u32 %v1322, %v1323
        %v1325 = vsub.s32 4294967266, %v1320
        %v1326 = vadd.s32 %v1325, 127
        %v1327 = vshll.u32 %v1326, 23
        %v1328 = vor.u32 4788187, %v1327
        %v1329 = vand.u32 2147483647, %v1328
        %v1331 = vcvt.s32.f32 %v1324
        %v1332 = vmul.f32 %v1331, %v1329
        %v1333 = vxor.u32 %v1332, 2147483648
        %v1334 = vsel %vm1213, %v1333, %v1332
        %v1335 = vsub.s32 4, %v1311
        %v1336 = vsel %vm1213, %v1335, %v1311
        %v1337 = vsel %vm1212, %v533, %v1334
        %v1338 = vsel %vm1212, 0, %v1336
        %v1339 = vmul.f32 %v1337, %v1337
        %v1340 = vmul.f32 %v1339, -0.001358992
        %v1341 = vadd.f32 %v1340, 0.041655596
        %v1342 = vmul.f32 %v1339, %v1341
        %v1343 = vadd.f32 %v1342, -0.4999988
        %v1344 = vmul.f32 %v1339, %v1343
        %v1345 = vadd.f32 1.0, %v1344
        %v1346 = vmul.f32 %v1337, %v1337
        %v1347 = vmul.f32 %v1346, -0.00019511016
        %v1348 = vadd.f32 %v1347, 0.008332121
        %v1349 = vmul.f32 %v1346, %v1348
        %v1350 = vadd.f32 %v1349, -0.16666654
        %v1351 = vmul.f32 %v1346, %v1350
        %v1352 = vadd.f32 %v1351, 1.0
        %v1353 = vmul.f32 %v1352, %v1337
        %vm1354 = vweird.f32 %v533
        %v1355 = vand.u32 %v1338, 3
        %vm1356 = vcmp.lt.s32.totalorder %v1355, 2
        %vm1357 = vcmp.eq.s32.totalorder %v1355, 0
        %v1358 = vxor.u32 %v1353, 2147483648
        %v1359 = vsel %vm1357, %v1345, %v1358
        %vm1360 = vcmp.eq.s32.totalorder %v1355, 2
        %v1361 = vxor.u32 %v1345, 2147483648
        %v1362 = vsel %vm1360, %v1361, %v1353
        %v1363 = vsel %vm1356, %v1359, %v1362
        %v1364 = vsel %vm1354, nan, %v1363
        %v1365 = vand.u32 2147483647, %v553
        %vm1366 = vcmp.le.f32.partialorder %v1365, 0.7853982
        %vm1367 = vcmp.lt.s32.totalorder %v553, 0
        %v1368 = vand.u32 %v553, 2139095040
        %v1369 = vshrl.u32 %v1368, 23
        %v1370 = vsub.s32 %v1369, 127
        %v1371 = vand.u32 2147483647, %v553
        %v1372 = vand.u32 %v1371, 8388607
        %v1373 = vor.u32 %v1372, 8388608
        %v1374 = vsub.s32 0, %v1373
        %v1375 = vadd.s32 %v1370, 1
        %vm1376 = vcmp.gt.s32.totalorder %v1375, 0
        %v1377 = vsel %vm1376, %v1375, 0
        %v1378 = vshrl.u32 %v1377, 5
        %v1379 = vand.u32 %v1377, 31
        %v1380 = vsub.s32 32, %v1379
        %v1381 = vshrl.u32 683565275, %v1380
        %v1382 = vshll.u32 683565275, %v1379
        %v1383 = vshrl.u32 2475754826, %v1380
        %v1384 = vor.u32 %v1382, %v1383
        %v1385 = vshll.u32 2475754826, %v1379
        %v1386 = vshrl.u32 2131351028, %v1380
        %v1387 = vor.u32 %v1385, %v1386
        %v1388 = vshll.u32 2131351028, %v1379
        %v1389 = vshrl.u32 2102212464, %v1380
        %v1390 = vor.u32 %v1388, %v1389
        %v1391 = vshll.u32 2102212464, %v1379
        %v1392 = vshrl.u32 920167782, %v1380
        %v1393 = vor.u32 %v1391, %v1392
        %v1394 = vshll.u32 920167782, %v1379
        %v1395 = vshrl.u32 1326507024, %v1380
        %v1396 = vor.u32 %v1394, %v1395
        %vm1397 = vcmp.lt.s32.totalorder %v1378, 1
        %vm1398 = vcmp.lt.s32.totalorder %v1378, 2
        %vm1399 = vcmp.lt.s32.totalorder %v1378, 3
        %vm1400 = vcmp.lt.s32.totalorder %v1378, 4
        %v1401 = vsel %vm1397, %v1381, %v1384
        %v1402 = vsel %vm1400, %v1390, 2102212464
        %v1403 = vsel %vm1399, %v1387, %v1402
        %v1404 = vsel %vm1398, %v1401, %v1403
        %v1405 = vsel %vm1397, %v1384, %v1387
        %v1406 = vsel %vm1400, %v1393, 920167782
        %v1407 = vsel %vm1399, %v1390, %v1406
        %v1408 = vsel %vm1398, %v1405, %v1407
        %v1409 = vsel %vm1397, %v1387, %v1390
        %v1410 = vsel %vm1400, %v1396, 1326507024
        %v1411 = vsel %vm1399, %v1393, %v1410
        %v1412 = vsel %vm1398, %v1409, %v1411
        %v1413 = vshll.u32 %v1373, 8
        %v1414 = vand.u32 %v1413, 65535
        %v1415 = vshrl.u32 %v1413, 16
        %v1416 = vand.u32 %v1412, 65535
        %v1417 = vshrl.u32 %v1412, 16
        %v1418 = vmul.u32 %v1414, %v1416
        %v1419 = vmul.u32 %v1414, %v1417
        %v1420 = vmul.u32 %v1415, %v1416
        %v1421 = vmul.u32 %v1415, %v1417
        %v1422 = vshll.u32 %v1419, 16
        %v1423 = vshrl.u32 %v1419, 16
        %v1424 = vshll.u32 %v1420, 16
        %v1425 = vshrl.u32 %v1420, 16
        %vm1426 = vc.u32 %v1418, %v1422
        %v1427 = vsel %vm1426, 1, 0
        %v1428 = vadd.s32 %v1418, %v1422
        %v1429 = vadd.s32 %v1421, %v1427
        %vm1430 = vc.u32 %v1428, %v1424
        %v1431 = vsel %vm1430, 1, 0
        %v1432 = vadd.s32 %v1428, %v1424
        %v1433 = vadd.s32 %v1429, %v1431
        %v1434 = vadd.s32 %v1433, %v1423
        %v1435 = vadd.s32 %v1434, %v1425
        %v1436 = vand.u32 %v1413, 65535
        %v1437 = vshrl.u32 %v1413, 16
        %v1438 = vand.u32 %v1408, 65535
        %v1439 = vshrl.u32 %v1408, 16
        %v1440 = vmul.u32 %v1436, %v1438
        %v1441 = vmul.u32 %v1436, %v1439
        %v1442 = vmul.u32 %v1437, %v1438
        %v1443 = vmul.u32 %v1437, %v1439
        %v1444 = vshll.u32 %v1441, 16
        %v1445 = vshrl.u32 %v1441, 16
        %v1446 = vshll.u32 %v1442, 16
        %v1447 = vshrl.u32 %v1442, 16
        %vm1448 = vc.u32 %v1440, %v1444
        %v1449 = vsel %vm1448, 1, 0
        %v1450 = vadd.s32 %v1440, %v1444
        %v1451 = vadd.s32 %v1443, %v1449
        %vm1452 = vc.u32 %v1450, %v1446
        %v1453 = vsel %vm1452, 1, 0
        %v1454 = vadd.s32 %v1450, %v1446
        %v1455 = vadd.s32 %v1451, %v1453
        %v1456 = vadd.s32 %v1455, %v1445
        %v1457 = vadd.s32 %v1456, %v1447
        %v1458 = vmul.u32 %v1413, %v1404
        %v1459 = vadd.s32 %v1435, %v1454
        %vm1460 = vc.u32 %v1435, %v1454
        %v1461 = vadd.s32 %v1457, 1
        %v1462 = vsel %vm1460, %v1461, %v1457
        %v1463 = vadd.s32 %v1458, %v1462
        %v1464 = vadd.s32 %v1463, 536870912
        %v1465 = vshrl.u32 %v1464, 30
        %v1466 = vshll.u32 %v1465, 30
        %v1467 = vsub.s32 %v1463, %v1466
        %vm1468 = vcmp.lt.s32.totalorder %v1467, 0
        %v1469 = vsub.s32 0, %v1467
        %v1470 = vsel %vm1468, %v1469, %v1467
        %v1471 = vclz %v1470
        %v1472 = vsub.s32 %v1471, 2
        %vm1473 = vcmp.gt.s32.totalorder 0, %v1472
        %v1474 = vsel %vm1473, 0, %v1472
        %v1475 = vsub.s32 32, %v1474
        %v1476 = vshll.u32 %v1467, %v1474
        %v1477 = vshrl.u32 %v1459, %v1475
        %v1478 = vor.u32 %v1476, %v1477
        %v1479 = vsub.s32 4294967266, %v1474
        %v1480 = vadd.s32 %v1479, 127
        %v1481 = vshll.u32 %v1480, 23
        %v1482 = vor.u32 4788187, %v1481
        %v1483 = vand.u32 2147483647, %v1482
        %v1485 = vcvt.s32.f32 %v1478
        %v1486 = vmul.f32 %v1485, %v1483
        %v1487 = vxor.u32 %v1486, 2147483648
        %v1488 = vsel %vm1367, %v1487, %v1486
        %v1489 = vsub.s32 4, %v1465
        %v1490 = vsel %vm1367, %v1489, %v1465
        %v1491 = vsel %vm1366, %v553, %v1488
        %v1492 = vsel %vm1366, 0, %v1490
        %v1493 = vmul.f32 %v1491, %v1491
        %v1494 = vmul.f32 %v1493, -0.001358992
        %v1495 = vadd.f32 %v1494, 0.041655596
        %v1496 = vmul.f32 %v1493, %v1495
        %v1497 = vadd.f32 %v1496, -0.4999988
        %v1498 = vmul.f32 %v1493, %v1497
        %v1499 = vadd.f32 1.0, %v1498
        %v1500 = vmul.f32 %v1491, %v1491
        %v1501 = vmul.f32 %v1500, -0.00019511016
        %v1502 = vadd.f32 %v1501, 0.008332121
        %v1503 = vmul.f32 %v1500, %v1502
        %v1504 = vadd.f32 %v1503, -0.16666654
        %v1505 = vmul.f32 %v1500, %v1504
        %v1506 = vadd.f32 %v1505, 1.0
        %v1507 = vmul.f32 %v1506, %v1491
        %vm1508 = vweird.f32 %v553
        %v1509 = vand.u32 %v1492, 3
        %vm1510 = vcmp.lt.s32.totalorder %v1509, 2
        %vm1511 = vcmp.eq.s32.totalorder %v1509, 0
        %v1512 = vxor.u32 %v1507, 2147483648
        %v1513 = vsel %vm1511, %v1499, %v1512
        %vm1514 = vcmp.eq.s32.totalorder %v1509, 2
        %v1515 = vxor.u32 %v1499, 2147483648
        %v1516 = vsel %vm1514, %v1515, %v1507
        %v1517 = vsel %vm1510, %v1513, %v1516
        %v1518 = vsel %vm1508, nan, %v1517
        %v1519 = vand.u32 2147483647, %v573
        %vm1520 = vcmp.le.f32.partialorder %v1519, 0.7853982
        %vm1521 = vcmp.lt.s32.totalorder %v573, 0
        %v1522 = vand.u32 %v573, 2139095040
        %v1523 = vshrl.u32 %v1522, 23
        %v1524 = vsub.s32 %v1523, 127
        %v1525 = vand.u32 2147483647, %v573
        %v1526 = vand.u32 %v1525, 8388607
        %v1527 = vor.u32 %v1526, 8388608
        %v1528 = vsub.s32 0, %v1527
        %v1529 = vadd.s32 %v1524, 1
        %vm1530 = vcmp.gt.s32.totalorder %v1529, 0
        %v1531 = vsel %vm1530, %v1529, 0
        %v1532 = vshrl.u32 %v1531, 5
        %v1533 = vand.u32 %v1531, 31
        %v1534 = vsub.s32 32, %v1533
        %v1535 = vshrl.u32 683565275, %v1534
        %v1536 = vshll.u32 683565275, %v1533
        %v1537 = vshrl.u32 2475754826, %v1534
        %v1538 = vor.u32 %v1536, %v1537
        %v1539 = vshll.u32 2475754826, %v1533
        %v1540 = vshrl.u32 2131351028, %v1534
        %v1541 = vor.u32 %v1539, %v1540
        %v1542 = vshll.u32 2131351028, %v1533
        %v1543 = vshrl.u32 2102212464, %v1534
        %v1544 = vor.u32 %v1542, %v1543
        %v1545 = vshll.u32 2102212464, %v1533
        %v1546 = vshrl.u32 920167782, %v1534
        %v1547 = vor.u32 %v1545, %v1546
        %v1548 = vshll.u32 920167782, %v1533
        %v1549 = vshrl.u32 1326507024, %v1534
        %v1550 = vor.u32 %v1548, %v1549
        %vm1551 = vcmp.lt.s32.totalorder %v1532, 1
        %vm1552 = vcmp.lt.s32.totalorder %v1532, 2
        %vm1553 = vcmp.lt.s32.totalorder %v1532, 3
        %vm1554 = vcmp.lt.s32.totalorder %v1532, 4
        %v1555 = vsel %vm1551, %v1535, %v1538
        %v1556 = vsel %vm1554, %v1544, 2102212464
        %v1557 = vsel %vm1553, %v1541, %v1556
        %v1558 = vsel %vm1552, %v1555, %v1557
        %v1559 = vsel %vm1551, %v1538, %v1541
        %v1560 = vsel %vm1554, %v1547, 920167782
        %v1561 = vsel %vm1553, %v1544, %v1560
        %v1562 = vsel %vm1552, %v1559, %v1561
        %v1563 = vsel %vm1551, %v1541, %v1544
        %v1564 = vsel %vm1554, %v1550, 1326507024
        %v1565 = vsel %vm1553, %v1547, %v1564
        %v1566 = vsel %vm1552, %v1563, %v1565
        %v1567 = vshll.u32 %v1527, 8
        %v1568 = vand.u32 %v1567, 65535
        %v1569 = vshrl.u32 %v1567, 16
        %v1570 = vand.u32 %v1566, 65535
        %v1571 = vshrl.u32 %v1566, 16
        %v1572 = vmul.u32 %v1568, %v1570
        %v1573 = vmul.u32 %v1568, %v1571
        %v1574 = vmul.u32 %v1569, %v1570
        %v1575 = vmul.u32 %v1569, %v1571
        %v1576 = vshll.u32 %v1573, 16
        %v1577 = vshrl.u32 %v1573, 16
        %v1578 = vshll.u32 %v1574, 16
        %v1579 = vshrl.u32 %v1574, 16
        %vm1580 = vc.u32 %v1572, %v1576
        %v1581 = vsel %vm1580, 1, 0
        %v1582 = vadd.s32 %v1572, %v1576
        %v1583 = vadd.s32 %v1575, %v1581
        %vm1584 = vc.u32 %v1582, %v1578
        %v1585 = vsel %vm1584, 1, 0
        %v1586 = vadd.s32 %v1582, %v1578
        %v1587 = vadd.s32 %v1583, %v1585
        %v1588 = vadd.s32 %v1587, %v1577
        %v1589 = vadd.s32 %v1588, %v1579
        %v1590 = vand.u32 %v1567, 65535
        %v1591 = vshrl.u32 %v1567, 16
        %v1592 = vand.u32 %v1562, 65535
        %v1593 = vshrl.u32 %v1562, 16
        %v1594 = vmul.u32 %v1590, %v1592
        %v1595 = vmul.u32 %v1590, %v1593
        %v1596 = vmul.u32 %v1591, %v1592
        %v1597 = vmul.u32 %v1591, %v1593
        %v1598 = vshll.u32 %v1595, 16
        %v1599 = vshrl.u32 %v1595, 16
        %v1600 = vshll.u32 %v1596, 16
        %v1601 = vshrl.u32 %v1596, 16
        %vm1602 = vc.u32 %v1594, %v1598
        %v1603 = vsel %vm1602, 1, 0
        %v1604 = vadd.s32 %v1594, %v1598
        %v1605 = vadd.s32 %v1597, %v1603
        %vm1606 = vc.u32 %v1604, %v1600
        %v1607 = vsel %vm1606, 1, 0
        %v1608 = vadd.s32 %v1604, %v1600
        %v1609 = vadd.s32 %v1605, %v1607
        %v1610 = vadd.s32 %v1609, %v1599
        %v1611 = vadd.s32 %v1610, %v1601
        %v1612 = vmul.u32 %v1567, %v1558
        %v1613 = vadd.s32 %v1589, %v1608
        %vm1614 = vc.u32 %v1589, %v1608
        %v1615 = vadd.s32 %v1611, 1
        %v1616 = vsel %vm1614, %v1615, %v1611
        %v1617 = vadd.s32 %v1612, %v1616
        %v1618 = vadd.s32 %v1617, 536870912
        %v1619 = vshrl.u32 %v1618, 30
        %v1620 = vshll.u32 %v1619, 30
        %v1621 = vsub.s32 %v1617, %v1620
        %vm1622 = vcmp.lt.s32.totalorder %v1621, 0
        %v1623 = vsub.s32 0, %v1621
        %v1624 = vsel %vm1622, %v1623, %v1621
        %v1625 = vclz %v1624
        %v1626 = vsub.s32 %v1625, 2
        %vm1627 = vcmp.gt.s32.totalorder 0, %v1626
        %v1628 = vsel %vm1627, 0, %v1626
        %v1629 = vsub.s32 32, %v1628
        %v1630 = vshll.u32 %v1621, %v1628
        %v1631 = vshrl.u32 %v1613, %v1629
        %v1632 = vor.u32 %v1630, %v1631
        %v1633 = vsub.s32 4294967266, %v1628
        %v1634 = vadd.s32 %v1633, 127
        %v1635 = vshll.u32 %v1634, 23
        %v1636 = vor.u32 4788187, %v1635
        %v1637 = vand.u32 2147483647, %v1636
        %v1639 = vcvt.s32.f32 %v1632
        %v1640 = vmul.f32 %v1639, %v1637
        %v1641 = vxor.u32 %v1640, 2147483648
        %v1642 = vsel %vm1521, %v1641, %v1640
        %v1643 = vsub.s32 4, %v1619
        %v1644 = vsel %vm1521, %v1643, %v1619
        %v1645 = vsel %vm1520, %v573, %v1642
        %v1646 = vsel %vm1520, 0, %v1644
        %v1647 = vmul.f32 %v1645, %v1645
        %v1648 = vmul.f32 %v1647, -0.001358992
        %v1649 = vadd.f32 %v1648, 0.041655596
        %v1650 = vmul.f32 %v1647, %v1649
        %v1651 = vadd.f32 %v1650, -0.4999988
        %v1652 = vmul.f32 %v1647, %v1651
        %v1653 = vadd.f32 1.0, %v1652
        %v1654 = vmul.f32 %v1645, %v1645
        %v1655 = vmul.f32 %v1654, -0.00019511016
        %v1656 = vadd.f32 %v1655, 0.008332121
        %v1657 = vmul.f32 %v1654, %v1656
        %v1658 = vadd.f32 %v1657, -0.16666654
        %v1659 = vmul.f32 %v1654, %v1658
        %v1660 = vadd.f32 %v1659, 1.0
        %v1661 = vmul.f32 %v1660, %v1645
        %vm1662 = vweird.f32 %v573
        %v1663 = vand.u32 %v1646, 3
        %vm1664 = vcmp.lt.s32.totalorder %v1663, 2
        %vm1665 = vcmp.eq.s32.totalorder %v1663, 0
        %v1666 = vxor.u32 %v1661, 2147483648
        %v1667 = vsel %vm1665, %v1653, %v1666
        %vm1668 = vcmp.eq.s32.totalorder %v1663, 2
        %v1669 = vxor.u32 %v1653, 2147483648
        %v1670 = vsel %vm1668, %v1669, %v1661
        %v1671 = vsel %vm1664, %v1667, %v1670
        %v1672 = vsel %vm1662, nan, %v1671
        %v1673 = vand.u32 2147483647, %v593
        %vm1674 = vcmp.le.f32.partialorder %v1673, 0.7853982
        %vm1675 = vcmp.lt.s32.totalorder %v593, 0
        %v1676 = vand.u32 %v593, 2139095040
        %v1677 = vshrl.u32 %v1676, 23
        %v1678 = vsub.s32 %v1677, 127
        %v1679 = vand.u32 2147483647, %v593
        %v1680 = vand.u32 %v1679, 8388607
        %v1681 = vor.u32 %v1680, 8388608
        %v1682 = vsub.s32 0, %v1681
        %v1683 = vadd.s32 %v1678, 1
        %vm1684 = vcmp.gt.s32.totalorder %v1683, 0
        %v1685 = vsel %vm1684, %v1683, 0
        %v1686 = vshrl.u32 %v1685, 5
        %v1687 = vand.u32 %v1685, 31
        %v1688 = vsub.s32 32, %v1687
        %v1689 = vshrl.u32 683565275, %v1688
        %v1690 = vshll.u32 683565275, %v1687
        %v1691 = vshrl.u32 2475754826, %v1688
        %v1692 = vor.u32 %v1690, %v1691
        %v1693 = vshll.u32 2475754826, %v1687
        %v1694 = vshrl.u32 2131351028, %v1688
        %v1695 = vor.u32 %v1693, %v1694
        %v1696 = vshll.u32 2131351028, %v1687
        %v1697 = vshrl.u32 2102212464, %v1688
        %v1698 = vor.u32 %v1696, %v1697
        %v1699 = vshll.u32 2102212464, %v1687
        %v1700 = vshrl.u32 920167782, %v1688
        %v1701 = vor.u32 %v1699, %v1700
        %v1702 = vshll.u32 920167782, %v1687
        %v1703 = vshrl.u32 1326507024, %v1688
        %v1704 = vor.u32 %v1702, %v1703
        %vm1705 = vcmp.lt.s32.totalorder %v1686, 1
        %vm1706 = vcmp.lt.s32.totalorder %v1686, 2
        %vm1707 = vcmp.lt.s32.totalorder %v1686, 3
        %vm1708 = vcmp.lt.s32.totalorder %v1686, 4
        %v1709 = vsel %vm1705, %v1689, %v1692
        %v1710 = vsel %vm1708, %v1698, 2102212464
        %v1711 = vsel %vm1707, %v1695, %v1710
        %v1712 = vsel %vm1706, %v1709, %v1711
        %v1713 = vsel %vm1705, %v1692, %v1695
        %v1714 = vsel %vm1708, %v1701, 920167782
        %v1715 = vsel %vm1707, %v1698, %v1714
        %v1716 = vsel %vm1706, %v1713, %v1715
        %v1717 = vsel %vm1705, %v1695, %v1698
        %v1718 = vsel %vm1708, %v1704, 1326507024
        %v1719 = vsel %vm1707, %v1701, %v1718
        %v1720 = vsel %vm1706, %v1717, %v1719
        %v1721 = vshll.u32 %v1681, 8
        %v1722 = vand.u32 %v1721, 65535
        %v1723 = vshrl.u32 %v1721, 16
        %v1724 = vand.u32 %v1720, 65535
        %v1725 = vshrl.u32 %v1720, 16
        %v1726 = vmul.u32 %v1722, %v1724
        %v1727 = vmul.u32 %v1722, %v1725
        %v1728 = vmul.u32 %v1723, %v1724
        %v1729 = vmul.u32 %v1723, %v1725
        %v1730 = vshll.u32 %v1727, 16
        %v1731 = vshrl.u32 %v1727, 16
        %v1732 = vshll.u32 %v1728, 16
        %v1733 = vshrl.u32 %v1728, 16
        %vm1734 = vc.u32 %v1726, %v1730
        %v1735 = vsel %vm1734, 1, 0
        %v1736 = vadd.s32 %v1726, %v1730
        %v1737 = vadd.s32 %v1729, %v1735
        %vm1738 = vc.u32 %v1736, %v1732
        %v1739 = vsel %vm1738, 1, 0
        %v1740 = vadd.s32 %v1736, %v1732
        %v1741 = vadd.s32 %v1737, %v1739
        %v1742 = vadd.s32 %v1741, %v1731
        %v1743 = vadd.s32 %v1742, %v1733
        %v1744 = vand.u32 %v1721, 65535
        %v1745 = vshrl.u32 %v1721, 16
        %v1746 = vand.u32 %v1716, 65535
        %v1747 = vshrl.u32 %v1716, 16
        %v1748 = vmul.u32 %v1744, %v1746
        %v1749 = vmul.u32 %v1744, %v1747
        %v1750 = vmul.u32 %v1745, %v1746
        %v1751 = vmul.u32 %v1745, %v1747
        %v1752 = vshll.u32 %v1749, 16
        %v1753 = vshrl.u32 %v1749, 16
        %v1754 = vshll.u32 %v1750, 16
        %v1755 = vshrl.u32 %v1750, 16
        %vm1756 = vc.u32 %v1748, %v1752
        %v1757 = vsel %vm1756, 1, 0
        %v1758 = vadd.s32 %v1748, %v1752
        %v1759 = vadd.s32 %v1751, %v1757
        %vm1760 = vc.u32 %v1758, %v1754
        %v1761 = vsel %vm1760, 1, 0
        %v1762 = vadd.s32 %v1758, %v1754
        %v1763 = vadd.s32 %v1759, %v1761
        %v1764 = vadd.s32 %v1763, %v1753
        %v1765 = vadd.s32 %v1764, %v1755
        %v1766 = vmul.u32 %v1721, %v1712
        %v1767 = vadd.s32 %v1743, %v1762
        %vm1768 = vc.u32 %v1743, %v1762
        %v1769 = vadd.s32 %v1765, 1
        %v1770 = vsel %vm1768, %v1769, %v1765
        %v1771 = vadd.s32 %v1766, %v1770
        %v1772 = vadd.s32 %v1771, 536870912
        %v1773 = vshrl.u32 %v1772, 30
        %v1774 = vshll.u32 %v1773, 30
        %v1775 = vsub.s32 %v1771, %v1774
        %vm1776 = vcmp.lt.s32.totalorder %v1775, 0
        %v1777 = vsub.s32 0, %v1775
        %v1778 = vsel %vm1776, %v1777, %v1775
        %v1779 = vclz %v1778
        %v1780 = vsub.s32 %v1779, 2
        %vm1781 = vcmp.gt.s32.totalorder 0, %v1780
        %v1782 = vsel %vm1781, 0, %v1780
        %v1783 = vsub.s32 32, %v1782
        %v1784 = vshll.u32 %v1775, %v1782
        %v1785 = vshrl.u32 %v1767, %v1783
        %v1786 = vor.u32 %v1784, %v1785
        %v1787 = vsub.s32 4294967266, %v1782
        %v1788 = vadd.s32 %v1787, 127
        %v1789 = vshll.u32 %v1788, 23
        %v1790 = vor.u32 4788187, %v1789
        %v1791 = vand.u32 2147483647, %v1790
        %v1793 = vcvt.s32.f32 %v1786
        %v1794 = vmul.f32 %v1793, %v1791
        %v1795 = vxor.u32 %v1794, 2147483648
        %v1796 = vsel %vm1675, %v1795, %v1794
        %v1797 = vsub.s32 4, %v1773
        %v1798 = vsel %vm1675, %v1797, %v1773
        %v1799 = vsel %vm1674, %v593, %v1796
        %v1800 = vsel %vm1674, 0, %v1798
        %v1801 = vmul.f32 %v1799, %v1799
        %v1802 = vmul.f32 %v1801, -0.001358992
        %v1803 = vadd.f32 %v1802, 0.041655596
        %v1804 = vmul.f32 %v1801, %v1803
        %v1805 = vadd.f32 %v1804, -0.4999988
        %v1806 = vmul.f32 %v1801, %v1805
        %v1807 = vadd.f32 1.0, %v1806
        %v1808 = vmul.f32 %v1799, %v1799
        %v1809 = vmul.f32 %v1808, -0.00019511016
        %v1810 = vadd.f32 %v1809, 0.008332121
        %v1811 = vmul.f32 %v1808, %v1810
        %v1812 = vadd.f32 %v1811, -0.16666654
        %v1813 = vmul.f32 %v1808, %v1812
        %v1814 = vadd.f32 %v1813, 1.0
        %v1815 = vmul.f32 %v1814, %v1799
        %vm1816 = vweird.f32 %v593
        %v1817 = vand.u32 %v1800, 3
        %vm1818 = vcmp.lt.s32.totalorder %v1817, 2
        %vm1819 = vcmp.eq.s32.totalorder %v1817, 0
        %v1820 = vxor.u32 %v1815, 2147483648
        %v1821 = vsel %vm1819, %v1807, %v1820
        %vm1822 = vcmp.eq.s32.totalorder %v1817, 2
        %v1823 = vxor.u32 %v1807, 2147483648
        %v1824 = vsel %vm1822, %v1823, %v1815
        %v1825 = vsel %vm1818, %v1821, %v1824
        %v1826 = vsel %vm1816, nan, %v1825
        %v1827 = vand.u32 2147483647, %v453
        %vm1828 = vcmp.le.f32.partialorder %v1827, 0.7853982
        %vm1829 = vcmp.lt.s32.totalorder %v453, 0
        %v1830 = vand.u32 %v453, 2139095040
        %v1831 = vshrl.u32 %v1830, 23
        %v1832 = vsub.s32 %v1831, 127
        %v1833 = vand.u32 2147483647, %v453
        %v1834 = vand.u32 %v1833, 8388607
        %v1835 = vor.u32 %v1834, 8388608
        %v1836 = vsub.s32 0, %v1835
        %v1837 = vadd.s32 %v1832, 1
        %vm1838 = vcmp.gt.s32.totalorder %v1837, 0
        %v1839 = vsel %vm1838, %v1837, 0
        %v1840 = vshrl.u32 %v1839, 5
        %v1841 = vand.u32 %v1839, 31
        %v1842 = vsub.s32 32, %v1841
        %v1843 = vshrl.u32 683565275, %v1842
        %v1844 = vshll.u32 683565275, %v1841
        %v1845 = vshrl.u32 2475754826, %v1842
        %v1846 = vor.u32 %v1844, %v1845
        %v1847 = vshll.u32 2475754826, %v1841
        %v1848 = vshrl.u32 2131351028, %v1842
        %v1849 = vor.u32 %v1847, %v1848
        %v1850 = vshll.u32 2131351028, %v1841
        %v1851 = vshrl.u32 2102212464, %v1842
        %v1852 = vor.u32 %v1850, %v1851
        %v1853 = vshll.u32 2102212464, %v1841
        %v1854 = vshrl.u32 920167782, %v1842
        %v1855 = vor.u32 %v1853, %v1854
        %v1856 = vshll.u32 920167782, %v1841
        %v1857 = vshrl.u32 1326507024, %v1842
        %v1858 = vor.u32 %v1856, %v1857
        %vm1859 = vcmp.lt.s32.totalorder %v1840, 1
        %vm1860 = vcmp.lt.s32.totalorder %v1840, 2
        %vm1861 = vcmp.lt.s32.totalorder %v1840, 3
        %vm1862 = vcmp.lt.s32.totalorder %v1840, 4
        %v1863 = vsel %vm1859, %v1843, %v1846
        %v1864 = vsel %vm1862, %v1852, 2102212464
        %v1865 = vsel %vm1861, %v1849, %v1864
        %v1866 = vsel %vm1860, %v1863, %v1865
        %v1867 = vsel %vm1859, %v1846, %v1849
        %v1868 = vsel %vm1862, %v1855, 920167782
        %v1869 = vsel %vm1861, %v1852, %v1868
        %v1870 = vsel %vm1860, %v1867, %v1869
        %v1871 = vsel %vm1859, %v1849, %v1852
        %v1872 = vsel %vm1862, %v1858, 1326507024
        %v1873 = vsel %vm1861, %v1855, %v1872
        %v1874 = vsel %vm1860, %v1871, %v1873
        %v1875 = vshll.u32 %v1835, 8
        %v1876 = vand.u32 %v1875, 65535
        %v1877 = vshrl.u32 %v1875, 16
        %v1878 = vand.u32 %v1874, 65535
        %v1879 = vshrl.u32 %v1874, 16
        %v1880 = vmul.u32 %v1876, %v1878
        %v1881 = vmul.u32 %v1876, %v1879
        %v1882 = vmul.u32 %v1877, %v1878
        %v1883 = vmul.u32 %v1877, %v1879
        %v1884 = vshll.u32 %v1881, 16
        %v1885 = vshrl.u32 %v1881, 16
        %v1886 = vshll.u32 %v1882, 16
        %v1887 = vshrl.u32 %v1882, 16
        %vm1888 = vc.u32 %v1880, %v1884
        %v1889 = vsel %vm1888, 1, 0
        %v1890 = vadd.s32 %v1880, %v1884
        %v1891 = vadd.s32 %v1883, %v1889
        %vm1892 = vc.u32 %v1890, %v1886
        %v1893 = vsel %vm1892, 1, 0
        %v1894 = vadd.s32 %v1890, %v1886
        %v1895 = vadd.s32 %v1891, %v1893
        %v1896 = vadd.s32 %v1895, %v1885
        %v1897 = vadd.s32 %v1896, %v1887
        %v1898 = vand.u32 %v1875, 65535
        %v1899 = vshrl.u32 %v1875, 16
        %v1900 = vand.u32 %v1870, 65535
        %v1901 = vshrl.u32 %v1870, 16
        %v1902 = vmul.u32 %v1898, %v1900
        %v1903 = vmul.u32 %v1898, %v1901
        %v1904 = vmul.u32 %v1899, %v1900
        %v1905 = vmul.u32 %v1899, %v1901
        %v1906 = vshll.u32 %v1903, 16
        %v1907 = vshrl.u32 %v1903, 16
        %v1908 = vshll.u32 %v1904, 16
        %v1909 = vshrl.u32 %v1904, 16
        %vm1910 = vc.u32 %v1902, %v1906
        %v1911 = vsel %vm1910, 1, 0
        %v1912 = vadd.s32 %v1902, %v1906
        %v1913 = vadd.s32 %v1905, %v1911
        %vm1914 = vc.u32 %v1912, %v1908
        %v1915 = vsel %vm1914, 1, 0
        %v1916 = vadd.s32 %v1912, %v1908
        %v1917 = vadd.s32 %v1913, %v1915
        %v1918 = vadd.s32 %v1917, %v1907
        %v1919 = vadd.s32 %v1918, %v1909
        %v1920 = vmul.u32 %v1875, %v1866
        %v1921 = vadd.s32 %v1897, %v1916
        %vm1922 = vc.u32 %v1897, %v1916
        %v1923 = vadd.s32 %v1919, 1
        %v1924 = vsel %vm1922, %v1923, %v1919
        %v1925 = vadd.s32 %v1920, %v1924
        %v1926 = vadd.s32 %v1925, 536870912
        %v1927 = vshrl.u32 %v1926, 30
        %v1928 = vshll.u32 %v1927, 30
        %v1929 = vsub.s32 %v1925, %v1928
        %vm1930 = vcmp.lt.s32.totalorder %v1929, 0
        %v1931 = vsub.s32 0, %v1929
        %v1932 = vsel %vm1930, %v1931, %v1929
        %v1933 = vclz %v1932
        %v1934 = vsub.s32 %v1933, 2
        %vm1935 = vcmp.gt.s32.totalorder 0, %v1934
        %v1936 = vsel %vm1935, 0, %v1934
        %v1937 = vsub.s32 32, %v1936
        %v1938 = vshll.u32 %v1929, %v1936
        %v1939 = vshrl.u32 %v1921, %v1937
        %v1940 = vor.u32 %v1938, %v1939
        %v1941 = vsub.s32 4294967266, %v1936
        %v1942 = vadd.s32 %v1941, 127
        %v1943 = vshll.u32 %v1942, 23
        %v1944 = vor.u32 4788187, %v1943
        %v1945 = vand.u32 2147483647, %v1944
        %v1947 = vcvt.s32.f32 %v1940
        %v1948 = vmul.f32 %v1947, %v1945
        %v1949 = vxor.u32 %v1948, 2147483648
        %v1950 = vsel %vm1829, %v1949, %v1948
        %v1951 = vsub.s32 4, %v1927
        %v1952 = vsel %vm1829, %v1951, %v1927
        %v1953 = vsel %vm1828, %v453, %v1950
        %v1954 = vsel %vm1828, 0, %v1952
        %v1955 = vmul.f32 %v1953, %v1953
        %v1956 = vmul.f32 %v1955, -0.001358992
        %v1957 = vadd.f32 %v1956, 0.041655596
        %v1958 = vmul.f32 %v1955, %v1957
        %v1959 = vadd.f32 %v1958, -0.4999988
        %v1960 = vmul.f32 %v1955, %v1959
        %v1961 = vadd.f32 1.0, %v1960
        %v1962 = vmul.f32 %v1953, %v1953
        %v1963 = vmul.f32 %v1962, -0.00019511016
        %v1964 = vadd.f32 %v1963, 0.008332121
        %v1965 = vmul.f32 %v1962, %v1964
        %v1966 = vadd.f32 %v1965, -0.16666654
        %v1967 = vmul.f32 %v1962, %v1966
        %v1968 = vadd.f32 %v1967, 1.0
        %v1969 = vmul.f32 %v1968, %v1953
        %vm1970 = vweird.f32 %v453
        %v1971 = vadd.s32 %v1954, 3
        %v1972 = vand.u32 %v1971, 3
        %vm1973 = vcmp.lt.s32.totalorder %v1972, 2
        %vm1974 = vcmp.eq.s32.totalorder %v1972, 0
        %v1975 = vxor.u32 %v1969, 2147483648
        %v1976 = vsel %vm1974, %v1961, %v1975
        %vm1977 = vcmp.eq.s32.totalorder %v1972, 2
        %v1978 = vxor.u32 %v1961, 2147483648
        %v1979 = vsel %vm1977, %v1978, %v1969
        %v1980 = vsel %vm1973, %v1976, %v1979
        %v1981 = vsel %vm1970, nan, %v1980
        %v1982 = vand.u32 2147483647, %v473
        %vm1983 = vcmp.le.f32.partialorder %v1982, 0.7853982
        %vm1984 = vcmp.lt.s32.totalorder %v473, 0
        %v1985 = vand.u32 %v473, 2139095040
        %v1986 = vshrl.u32 %v1985, 23
        %v1987 = vsub.s32 %v1986, 127
        %v1988 = vand.u32 2147483647, %v473
        %v1989 = vand.u32 %v1988, 8388607
        %v1990 = vor.u32 %v1989, 8388608
        %v1991 = vsub.s32 0, %v1990
        %v1992 = vadd.s32 %v1987, 1
        %vm1993 = vcmp.gt.s32.totalorder %v1992, 0
        %v1994 = vsel %vm1993, %v1992, 0
        %v1995 = vshrl.u32 %v1994, 5
        %v1996 = vand.u32 %v1994, 31
        %v1997 = vsub.s32 32, %v1996
        %v1998 = vshrl.u32 683565275, %v1997
        %v1999 = vshll.u32 683565275, %v1996
        %v2000 = vshrl.u32 2475754826, %v1997
        %v2001 = vor.u32 %v1999, %v2000
        %v2002 = vshll.u32 2475754826, %v1996
        %v2003 = vshrl.u32 2131351028, %v1997
        %v2004 = vor.u32 %v2002, %v2003
        %v2005 = vshll.u32 2131351028, %v1996
        %v2006 = vshrl.u32 2102212464, %v1997
        %v2007 = vor.u32 %v2005, %v2006
        %v2008 = vshll.u32 2102212464, %v1996
        %v2009 = vshrl.u32 920167782, %v1997
        %v2010 = vor.u32 %v2008, %v2009
        %v2011 = vshll.u32 920167782, %v1996
        %v2012 = vshrl.u32 1326507024, %v1997
        %v2013 = vor.u32 %v2011, %v2012
        %vm2014 = vcmp.lt.s32.totalorder %v1995, 1
        %vm2015 = vcmp.lt.s32.totalorder %v1995, 2
        %vm2016 = vcmp.lt.s32.totalorder %v1995, 3
        %vm2017 = vcmp.lt.s32.totalorder %v1995, 4
        %v2018 = vsel %vm2014, %v1998, %v2001
        %v2019 = vsel %vm2017, %v2007, 2102212464
        %v2020 = vsel %vm2016, %v2004, %v2019
        %v2021 = vsel %vm2015, %v2018, %v2020
        %v2022 = vsel %vm2014, %v2001, %v2004
        %v2023 = vsel %vm2017, %v2010, 920167782
        %v2024 = vsel %vm2016, %v2007, %v2023
        %v2025 = vsel %vm2015, %v2022, %v2024
        %v2026 = vsel %vm2014, %v2004, %v2007
        %v2027 = vsel %vm2017, %v2013, 1326507024
        %v2028 = vsel %vm2016, %v2010, %v2027
        %v2029 = vsel %vm2015, %v2026, %v2028
        %v2030 = vshll.u32 %v1990, 8
        %v2031 = vand.u32 %v2030, 65535
        %v2032 = vshrl.u32 %v2030, 16
        %v2033 = vand.u32 %v2029, 65535
        %v2034 = vshrl.u32 %v2029, 16
        %v2035 = vmul.u32 %v2031, %v2033
        %v2036 = vmul.u32 %v2031, %v2034
        %v2037 = vmul.u32 %v2032, %v2033
        %v2038 = vmul.u32 %v2032, %v2034
        %v2039 = vshll.u32 %v2036, 16
        %v2040 = vshrl.u32 %v2036, 16
        %v2041 = vshll.u32 %v2037, 16
        %v2042 = vshrl.u32 %v2037, 16
        %vm2043 = vc.u32 %v2035, %v2039
        %v2044 = vsel %vm2043, 1, 0
        %v2045 = vadd.s32 %v2035, %v2039
        %v2046 = vadd.s32 %v2038, %v2044
        %vm2047 = vc.u32 %v2045, %v2041
        %v2048 = vsel %vm2047, 1, 0
        %v2049 = vadd.s32 %v2045, %v2041
        %v2050 = vadd.s32 %v2046, %v2048
        %v2051 = vadd.s32 %v2050, %v2040
        %v2052 = vadd.s32 %v2051, %v2042
        %v2053 = vand.u32 %v2030, 65535
        %v2054 = vshrl.u32 %v2030, 16
        %v2055 = vand.u32 %v2025, 65535
        %v2056 = vshrl.u32 %v2025, 16
        %v2057 = vmul.u32 %v2053, %v2055
        %v2058 = vmul.u32 %v2053, %v2056
        %v2059 = vmul.u32 %v2054, %v2055
        %v2060 = vmul.u32 %v2054, %v2056
        %v2061 = vshll.u32 %v2058, 16
        %v2062 = vshrl.u32 %v2058, 16
        %v2063 = vshll.u32 %v2059, 16
        %v2064 = vshrl.u32 %v2059, 16
        %vm2065 = vc.u32 %v2057, %v2061
        %v2066 = vsel %vm2065, 1, 0
        %v2067 = vadd.s32 %v2057, %v2061
        %v2068 = vadd.s32 %v2060, %v2066
        %vm2069 = vc.u32 %v2067, %v2063
        %v2070 = vsel %vm2069, 1, 0
        %v2071 = vadd.s32 %v2067, %v2063
        %v2072 = vadd.s32 %v2068, %v2070
        %v2073 = vadd.s32 %v2072, %v2062
        %v2074 = vadd.s32 %v2073, %v2064
        %v2075 = vmul.u32 %v2030, %v2021
        %v2076 = vadd.s32 %v2052, %v2071
        %vm2077 = vc.u32 %v2052, %v2071
        %v2078 = vadd.s32 %v2074, 1
        %v2079 = vsel %vm2077, %v2078, %v2074
        %v2080 = vadd.s32 %v2075, %v2079
        %v2081 = vadd.s32 %v2080, 536870912
        %v2082 = vshrl.u32 %v2081, 30
        %v2083 = vshll.u32 %v2082, 30
        %v2084 = vsub.s32 %v2080, %v2083
        %vm2085 = vcmp.lt.s32.totalorder %v2084, 0
        %v2086 = vsub.s32 0, %v2084
        %v2087 = vsel %vm2085, %v2086, %v2084
        %v2088 = vclz %v2087
        %v2089 = vsub.s32 %v2088, 2
        %vm2090 = vcmp.gt.s32.totalorder 0, %v2089
        %v2091 = vsel %vm2090, 0, %v2089
        %v2092 = vsub.s32 32, %v2091
        %v2093 = vshll.u32 %v2084, %v2091
        %v2094 = vshrl.u32 %v2076, %v2092
        %v2095 = vor.u32 %v2093, %v2094
        %v2096 = vsub.s32 4294967266, %v2091
        %v2097 = vadd.s32 %v2096, 127
        %v2098 = vshll.u32 %v2097, 23
        %v2099 = vor.u32 4788187, %v2098
        %v2100 = vand.u32 2147483647, %v2099
        %v2102 = vcvt.s32.f32 %v2095
        %v2103 = vmul.f32 %v2102, %v2100
        %v2104 = vxor.u32 %v2103, 2147483648
        %v2105 = vsel %vm1984, %v2104, %v2103
        %v2106 = vsub.s32 4, %v2082
        %v2107 = vsel %vm1984, %v2106, %v2082
        %v2108 = vsel %vm1983, %v473, %v2105
        %v2109 = vsel %vm1983, 0, %v2107
        %v2110 = vmul.f32 %v2108, %v2108
        %v2111 = vmul.f32 %v2110, -0.001358992
        %v2112 = vadd.f32 %v2111, 0.041655596
        %v2113 = vmul.f32 %v2110, %v2112
        %v2114 = vadd.f32 %v2113, -0.4999988
        %v2115 = vmul.f32 %v2110, %v2114
        %v2116 = vadd.f32 1.0, %v2115
        %v2117 = vmul.f32 %v2108, %v2108
        %v2118 = vmul.f32 %v2117, -0.00019511016
        %v2119 = vadd.f32 %v2118, 0.008332121
        %v2120 = vmul.f32 %v2117, %v2119
        %v2121 = vadd.f32 %v2120, -0.16666654
        %v2122 = vmul.f32 %v2117, %v2121
        %v2123 = vadd.f32 %v2122, 1.0
        %v2124 = vmul.f32 %v2123, %v2108
        %vm2125 = vweird.f32 %v473
        %v2126 = vadd.s32 %v2109, 3
        %v2127 = vand.u32 %v2126, 3
        %vm2128 = vcmp.lt.s32.totalorder %v2127, 2
        %vm2129 = vcmp.eq.s32.totalorder %v2127, 0
        %v2130 = vxor.u32 %v2124, 2147483648
        %v2131 = vsel %vm2129, %v2116, %v2130
        %vm2132 = vcmp.eq.s32.totalorder %v2127, 2
        %v2133 = vxor.u32 %v2116, 2147483648
        %v2134 = vsel %vm2132, %v2133, %v2124
        %v2135 = vsel %vm2128, %v2131, %v2134
        %v2136 = vsel %vm2125, nan, %v2135
        %v2137 = vand.u32 2147483647, %v493
        %vm2138 = vcmp.le.f32.partialorder %v2137, 0.7853982
        %vm2139 = vcmp.lt.s32.totalorder %v493, 0
        %v2140 = vand.u32 %v493, 2139095040
        %v2141 = vshrl.u32 %v2140, 23
        %v2142 = vsub.s32 %v2141, 127
        %v2143 = vand.u32 2147483647, %v493
        %v2144 = vand.u32 %v2143, 8388607
        %v2145 = vor.u32 %v2144, 8388608
        %v2146 = vsub.s32 0, %v2145
        %v2147 = vadd.s32 %v2142, 1
        %vm2148 = vcmp.gt.s32.totalorder %v2147, 0
        %v2149 = vsel %vm2148, %v2147, 0
        %v2150 = vshrl.u32 %v2149, 5
        %v2151 = vand.u32 %v2149, 31
        %v2152 = vsub.s32 32, %v2151
        %v2153 = vshrl.u32 683565275, %v2152
        %v2154 = vshll.u32 683565275, %v2151
        %v2155 = vshrl.u32 2475754826, %v2152
        %v2156 = vor.u32 %v2154, %v2155
        %v2157 = vshll.u32 2475754826, %v2151
        %v2158 = vshrl.u32 2131351028, %v2152
        %v2159 = vor.u32 %v2157, %v2158
        %v2160 = vshll.u32 2131351028, %v2151
        %v2161 = vshrl.u32 2102212464, %v2152
        %v2162 = vor.u32 %v2160, %v2161
        %v2163 = vshll.u32 2102212464, %v2151
        %v2164 = vshrl.u32 920167782, %v2152
        %v2165 = vor.u32 %v2163, %v2164
        %v2166 = vshll.u32 920167782, %v2151
        %v2167 = vshrl.u32 1326507024, %v2152
        %v2168 = vor.u32 %v2166, %v2167
        %vm2169 = vcmp.lt.s32.totalorder %v2150, 1
        %vm2170 = vcmp.lt.s32.totalorder %v2150, 2
        %vm2171 = vcmp.lt.s32.totalorder %v2150, 3
        %vm2172 = vcmp.lt.s32.totalorder %v2150, 4
        %v2173 = vsel %vm2169, %v2153, %v2156
        %v2174 = vsel %vm2172, %v2162, 2102212464
        %v2175 = vsel %vm2171, %v2159, %v2174
        %v2176 = vsel %vm2170, %v2173, %v2175
        %v2177 = vsel %vm2169, %v2156, %v2159
        %v2178 = vsel %vm2172, %v2165, 920167782
        %v2179 = vsel %vm2171, %v2162, %v2178
        %v2180 = vsel %vm2170, %v2177, %v2179
        %v2181 = vsel %vm2169, %v2159, %v2162
        %v2182 = vsel %vm2172, %v2168, 1326507024
        %v2183 = vsel %vm2171, %v2165, %v2182
        %v2184 = vsel %vm2170, %v2181, %v2183
        %v2185 = vshll.u32 %v2145, 8
        %v2186 = vand.u32 %v2185, 65535
        %v2187 = vshrl.u32 %v2185, 16
        %v2188 = vand.u32 %v2184, 65535
        %v2189 = vshrl.u32 %v2184, 16
        %v2190 = vmul.u32 %v2186, %v2188
        %v2191 = vmul.u32 %v2186, %v2189
        %v2192 = vmul.u32 %v2187, %v2188
        %v2193 = vmul.u32 %v2187, %v2189
        %v2194 = vshll.u32 %v2191, 16
        %v2195 = vshrl.u32 %v2191, 16
        %v2196 = vshll.u32 %v2192, 16
        %v2197 = vshrl.u32 %v2192, 16
        %vm2198 = vc.u32 %v2190, %v2194
        %v2199 = vsel %vm2198, 1, 0
        %v2200 = vadd.s32 %v2190, %v2194
        %v2201 = vadd.s32 %v2193, %v2199
        %vm2202 = vc.u32 %v2200, %v2196
        %v2203 = vsel %vm2202, 1, 0
        %v2204 = vadd.s32 %v2200, %v2196
        %v2205 = vadd.s32 %v2201, %v2203
        %v2206 = vadd.s32 %v2205, %v2195
        %v2207 = vadd.s32 %v2206, %v2197
        %v2208 = vand.u32 %v2185, 65535
        %v2209 = vshrl.u32 %v2185, 16
        %v2210 = vand.u32 %v2180, 65535
        %v2211 = vshrl.u32 %v2180, 16
        %v2212 = vmul.u32 %v2208, %v2210
        %v2213 = vmul.u32 %v2208, %v2211
        %v2214 = vmul.u32 %v2209, %v2210
        %v2215 = vmul.u32 %v2209, %v2211
        %v2216 = vshll.u32 %v2213, 16
        %v2217 = vshrl.u32 %v2213, 16
        %v2218 = vshll.u32 %v2214, 16
        %v2219 = vshrl.u32 %v2214, 16
        %vm2220 = vc.u32 %v2212, %v2216
        %v2221 = vsel %vm2220, 1, 0
        %v2222 = vadd.s32 %v2212, %v2216
        %v2223 = vadd.s32 %v2215, %v2221
        %vm2224 = vc.u32 %v2222, %v2218
        %v2225 = vsel %vm2224, 1, 0
        %v2226 = vadd.s32 %v2222, %v2218
        %v2227 = vadd.s32 %v2223, %v2225
        %v2228 = vadd.s32 %v2227, %v2217
        %v2229 = vadd.s32 %v2228, %v2219
        %v2230 = vmul.u32 %v2185, %v2176
        %v2231 = vadd.s32 %v2207, %v2226
        %vm2232 = vc.u32 %v2207, %v2226
        %v2233 = vadd.s32 %v2229, 1
        %v2234 = vsel %vm2232, %v2233, %v2229
        %v2235 = vadd.s32 %v2230, %v2234
        %v2236 = vadd.s32 %v2235, 536870912
        %v2237 = vshrl.u32 %v2236, 30
        %v2238 = vshll.u32 %v2237, 30
        %v2239 = vsub.s32 %v2235, %v2238
        %vm2240 = vcmp.lt.s32.totalorder %v2239, 0
        %v2241 = vsub.s32 0, %v2239
        %v2242 = vsel %vm2240, %v2241, %v2239
        %v2243 = vclz %v2242
        %v2244 = vsub.s32 %v2243, 2
        %vm2245 = vcmp.gt.s32.totalorder 0, %v2244
        %v2246 = vsel %vm2245, 0, %v2244
        %v2247 = vsub.s32 32, %v2246
        %v2248 = vshll.u32 %v2239, %v2246
        %v2249 = vshrl.u32 %v2231, %v2247
        %v2250 = vor.u32 %v2248, %v2249
        %v2251 = vsub.s32 4294967266, %v2246
        %v2252 = vadd.s32 %v2251, 127
        %v2253 = vshll.u32 %v2252, 23
        %v2254 = vor.u32 4788187, %v2253
        %v2255 = vand.u32 2147483647, %v2254
        %v2257 = vcvt.s32.f32 %v2250
        %v2258 = vmul.f32 %v2257, %v2255
        %v2259 = vxor.u32 %v2258, 2147483648
        %v2260 = vsel %vm2139, %v2259, %v2258
        %v2261 = vsub.s32 4, %v2237
        %v2262 = vsel %vm2139, %v2261, %v2237
        %v2263 = vsel %vm2138, %v493, %v2260
        %v2264 = vsel %vm2138, 0, %v2262
        %v2265 = vmul.f32 %v2263, %v2263
        %v2266 = vmul.f32 %v2265, -0.001358992
        %v2267 = vadd.f32 %v2266, 0.041655596
        %v2268 = vmul.f32 %v2265, %v2267
        %v2269 = vadd.f32 %v2268, -0.4999988
        %v2270 = vmul.f32 %v2265, %v2269
        %v2271 = vadd.f32 1.0, %v2270
        %v2272 = vmul.f32 %v2263, %v2263
        %v2273 = vmul.f32 %v2272, -0.00019511016
        %v2274 = vadd.f32 %v2273, 0.008332121
        %v2275 = vmul.f32 %v2272, %v2274
        %v2276 = vadd.f32 %v2275, -0.16666654
        %v2277 = vmul.f32 %v2272, %v2276
        %v2278 = vadd.f32 %v2277, 1.0
        %v2279 = vmul.f32 %v2278, %v2263
        %vm2280 = vweird.f32 %v493
        %v2281 = vadd.s32 %v2264, 3
        %v2282 = vand.u32 %v2281, 3
        %vm2283 = vcmp.lt.s32.totalorder %v2282, 2
        %vm2284 = vcmp.eq.s32.totalorder %v2282, 0
        %v2285 = vxor.u32 %v2279, 2147483648
        %v2286 = vsel %vm2284, %v2271, %v2285
        %vm2287 = vcmp.eq.s32.totalorder %v2282, 2
        %v2288 = vxor.u32 %v2271, 2147483648
        %v2289 = vsel %vm2287, %v2288, %v2279
        %v2290 = vsel %vm2283, %v2286, %v2289
        %v2291 = vsel %vm2280, nan, %v2290
        %v2292 = vand.u32 2147483647, %v513
        %vm2293 = vcmp.le.f32.partialorder %v2292, 0.7853982
        %vm2294 = vcmp.lt.s32.totalorder %v513, 0
        %v2295 = vand.u32 %v513, 2139095040
        %v2296 = vshrl.u32 %v2295, 23
        %v2297 = vsub.s32 %v2296, 127
        %v2298 = vand.u32 2147483647, %v513
        %v2299 = vand.u32 %v2298, 8388607
        %v2300 = vor.u32 %v2299, 8388608
        %v2301 = vsub.s32 0, %v2300
        %v2302 = vadd.s32 %v2297, 1
        %vm2303 = vcmp.gt.s32.totalorder %v2302, 0
        %v2304 = vsel %vm2303, %v2302, 0
        %v2305 = vshrl.u32 %v2304, 5
        %v2306 = vand.u32 %v2304, 31
        %v2307 = vsub.s32 32, %v2306
        %v2308 = vshrl.u32 683565275, %v2307
        %v2309 = vshll.u32 683565275, %v2306
        %v2310 = vshrl.u32 2475754826, %v2307
        %v2311 = vor.u32 %v2309, %v2310
        %v2312 = vshll.u32 2475754826, %v2306
        %v2313 = vshrl.u32 2131351028, %v2307
        %v2314 = vor.u32 %v2312, %v2313
        %v2315 = vshll.u32 2131351028, %v2306
        %v2316 = vshrl.u32 2102212464, %v2307
        %v2317 = vor.u32 %v2315, %v2316
        %v2318 = vshll.u32 2102212464, %v2306
        %v2319 = vshrl.u32 920167782, %v2307
        %v2320 = vor.u32 %v2318, %v2319
        %v2321 = vshll.u32 920167782, %v2306
        %v2322 = vshrl.u32 1326507024, %v2307
        %v2323 = vor.u32 %v2321, %v2322
        %vm2324 = vcmp.lt.s32.totalorder %v2305, 1
        %vm2325 = vcmp.lt.s32.totalorder %v2305, 2
        %vm2326 = vcmp.lt.s32.totalorder %v2305, 3
        %vm2327 = vcmp.lt.s32.totalorder %v2305, 4
        %v2328 = vsel %vm2324, %v2308, %v2311
        %v2329 = vsel %vm2327, %v2317, 2102212464
        %v2330 = vsel %vm2326, %v2314, %v2329
        %v2331 = vsel %vm2325, %v2328, %v2330
        %v2332 = vsel %vm2324, %v2311, %v2314
        %v2333 = vsel %vm2327, %v2320, 920167782
        %v2334 = vsel %vm2326, %v2317, %v2333
        %v2335 = vsel %vm2325, %v2332, %v2334
        %v2336 = vsel %vm2324, %v2314, %v2317
        %v2337 = vsel %vm2327, %v2323, 1326507024
        %v2338 = vsel %vm2326, %v2320, %v2337
        %v2339 = vsel %vm2325, %v2336, %v2338
        %v2340 = vshll.u32 %v2300, 8
        %v2341 = vand.u32 %v2340, 65535
        %v2342 = vshrl.u32 %v2340, 16
        %v2343 = vand.u32 %v2339, 65535
        %v2344 = vshrl.u32 %v2339, 16
        %v2345 = vmul.u32 %v2341, %v2343
        %v2346 = vmul.u32 %v2341, %v2344
        %v2347 = vmul.u32 %v2342, %v2343
        %v2348 = vmul.u32 %v2342, %v2344
        %v2349 = vshll.u32 %v2346, 16
        %v2350 = vshrl.u32 %v2346, 16
        %v2351 = vshll.u32 %v2347, 16
        %v2352 = vshrl.u32 %v2347, 16
        %vm2353 = vc.u32 %v2345, %v2349
        %v2354 = vsel %vm2353, 1, 0
        %v2355 = vadd.s32 %v2345, %v2349
        %v2356 = vadd.s32 %v2348, %v2354
        %vm2357 = vc.u32 %v2355, %v2351
        %v2358 = vsel %vm2357, 1, 0
        %v2359 = vadd.s32 %v2355, %v2351
        %v2360 = vadd.s32 %v2356, %v2358
        %v2361 = vadd.s32 %v2360, %v2350
        %v2362 = vadd.s32 %v2361, %v2352
        %v2363 = vand.u32 %v2340, 65535
        %v2364 = vshrl.u32 %v2340, 16
        %v2365 = vand.u32 %v2335, 65535
        %v2366 = vshrl.u32 %v2335, 16
        %v2367 = vmul.u32 %v2363, %v2365
        %v2368 = vmul.u32 %v2363, %v2366
        %v2369 = vmul.u32 %v2364, %v2365
        %v2370 = vmul.u32 %v2364, %v2366
        %v2371 = vshll.u32 %v2368, 16
        %v2372 = vshrl.u32 %v2368, 16
        %v2373 = vshll.u32 %v2369, 16
        %v2374 = vshrl.u32 %v2369, 16
        %vm2375 = vc.u32 %v2367, %v2371
        %v2376 = vsel %vm2375, 1, 0
        %v2377 = vadd.s32 %v2367, %v2371
        %v2378 = vadd.s32 %v2370, %v2376
        %vm2379 = vc.u32 %v2377, %v2373
        %v2380 = vsel %vm2379, 1, 0
        %v2381 = vadd.s32 %v2377, %v2373
        %v2382 = vadd.s32 %v2378, %v2380
        %v2383 = vadd.s32 %v2382, %v2372
        %v2384 = vadd.s32 %v2383, %v2374
        %v2385 = vmul.u32 %v2340, %v2331
        %v2386 = vadd.s32 %v2362, %v2381
        %vm2387 = vc.u32 %v2362, %v2381
        %v2388 = vadd.s32 %v2384, 1
        %v2389 = vsel %vm2387, %v2388, %v2384
        %v2390 = vadd.s32 %v2385, %v2389
        %v2391 = vadd.s32 %v2390, 536870912
        %v2392 = vshrl.u32 %v2391, 30
        %v2393 = vshll.u32 %v2392, 30
        %v2394 = vsub.s32 %v2390, %v2393
        %vm2395 = vcmp.lt.s32.totalorder %v2394, 0
        %v2396 = vsub.s32 0, %v2394
        %v2397 = vsel %vm2395, %v2396, %v2394
        %v2398 = vclz %v2397
        %v2399 = vsub.s32 %v2398, 2
        %vm2400 = vcmp.gt.s32.totalorder 0, %v2399
        %v2401 = vsel %vm2400, 0, %v2399
        %v2402 = vsub.s32 32, %v2401
        %v2403 = vshll.u32 %v2394, %v2401
        %v2404 = vshrl.u32 %v2386, %v2402
        %v2405 = vor.u32 %v2403, %v2404
        %v2406 = vsub.s32 4294967266, %v2401
        %v2407 = vadd.s32 %v2406, 127
        %v2408 = vshll.u32 %v2407, 23
        %v2409 = vor.u32 4788187, %v2408
        %v2410 = vand.u32 2147483647, %v2409
        %v2412 = vcvt.s32.f32 %v2405
        %v2413 = vmul.f32 %v2412, %v2410
        %v2414 = vxor.u32 %v2413, 2147483648
        %v2415 = vsel %vm2294, %v2414, %v2413
        %v2416 = vsub.s32 4, %v2392
        %v2417 = vsel %vm2294, %v2416, %v2392
        %v2418 = vsel %vm2293, %v513, %v2415
        %v2419 = vsel %vm2293, 0, %v2417
        %v2420 = vmul.f32 %v2418, %v2418
        %v2421 = vmul.f32 %v2420, -0.001358992
        %v2422 = vadd.f32 %v2421, 0.041655596
        %v2423 = vmul.f32 %v2420, %v2422
        %v2424 = vadd.f32 %v2423, -0.4999988
        %v2425 = vmul.f32 %v2420, %v2424
        %v2426 = vadd.f32 1.0, %v2425
        %v2427 = vmul.f32 %v2418, %v2418
        %v2428 = vmul.f32 %v2427, -0.00019511016
        %v2429 = vadd.f32 %v2428, 0.008332121
        %v2430 = vmul.f32 %v2427, %v2429
        %v2431 = vadd.f32 %v2430, -0.16666654
        %v2432 = vmul.f32 %v2427, %v2431
        %v2433 = vadd.f32 %v2432, 1.0
        %v2434 = vmul.f32 %v2433, %v2418
        %vm2435 = vweird.f32 %v513
        %v2436 = vadd.s32 %v2419, 3
        %v2437 = vand.u32 %v2436, 3
        %vm2438 = vcmp.lt.s32.totalorder %v2437, 2
        %vm2439 = vcmp.eq.s32.totalorder %v2437, 0
        %v2440 = vxor.u32 %v2434, 2147483648
        %v2441 = vsel %vm2439, %v2426, %v2440
        %vm2442 = vcmp.eq.s32.totalorder %v2437, 2
        %v2443 = vxor.u32 %v2426, 2147483648
        %v2444 = vsel %vm2442, %v2443, %v2434
        %v2445 = vsel %vm2438, %v2441, %v2444
        %v2446 = vsel %vm2435, nan, %v2445
        %v2447 = vand.u32 2147483647, %v533
        %vm2448 = vcmp.le.f32.partialorder %v2447, 0.7853982
        %vm2449 = vcmp.lt.s32.totalorder %v533, 0
        %v2450 = vand.u32 %v533, 2139095040
        %v2451 = vshrl.u32 %v2450, 23
        %v2452 = vsub.s32 %v2451, 127
        %v2453 = vand.u32 2147483647, %v533
        %v2454 = vand.u32 %v2453, 8388607
        %v2455 = vor.u32 %v2454, 8388608
        %v2456 = vsub.s32 0, %v2455
        %v2457 = vadd.s32 %v2452, 1
        %vm2458 = vcmp.gt.s32.totalorder %v2457, 0
        %v2459 = vsel %vm2458, %v2457, 0
        %v2460 = vshrl.u32 %v2459, 5
        %v2461 = vand.u32 %v2459, 31
        %v2462 = vsub.s32 32, %v2461
        %v2463 = vshrl.u32 683565275, %v2462
        %v2464 = vshll.u32 683565275, %v2461
        %v2465 = vshrl.u32 2475754826, %v2462
        %v2466 = vor.u32 %v2464, %v2465
        %v2467 = vshll.u32 2475754826, %v2461
        %v2468 = vshrl.u32 2131351028, %v2462
        %v2469 = vor.u32 %v2467, %v2468
        %v2470 = vshll.u32 2131351028, %v2461
        %v2471 = vshrl.u32 2102212464, %v2462
        %v2472 = vor.u32 %v2470, %v2471
        %v2473 = vshll.u32 2102212464, %v2461
        %v2474 = vshrl.u32 920167782, %v2462
        %v2475 = vor.u32 %v2473, %v2474
        %v2476 = vshll.u32 920167782, %v2461
        %v2477 = vshrl.u32 1326507024, %v2462
        %v2478 = vor.u32 %v2476, %v2477
        %vm2479 = vcmp.lt.s32.totalorder %v2460, 1
        %vm2480 = vcmp.lt.s32.totalorder %v2460, 2
        %vm2481 = vcmp.lt.s32.totalorder %v2460, 3
        %vm2482 = vcmp.lt.s32.totalorder %v2460, 4
        %v2483 = vsel %vm2479, %v2463, %v2466
        %v2484 = vsel %vm2482, %v2472, 2102212464
        %v2485 = vsel %vm2481, %v2469, %v2484
        %v2486 = vsel %vm2480, %v2483, %v2485
        %v2487 = vsel %vm2479, %v2466, %v2469
        %v2488 = vsel %vm2482, %v2475, 920167782
        %v2489 = vsel %vm2481, %v2472, %v2488
        %v2490 = vsel %vm2480, %v2487, %v2489
        %v2491 = vsel %vm2479, %v2469, %v2472
        %v2492 = vsel %vm2482, %v2478, 1326507024
        %v2493 = vsel %vm2481, %v2475, %v2492
        %v2494 = vsel %vm2480, %v2491, %v2493
        %v2495 = vshll.u32 %v2455, 8
        %v2496 = vand.u32 %v2495, 65535
        %v2497 = vshrl.u32 %v2495, 16
        %v2498 = vand.u32 %v2494, 65535
        %v2499 = vshrl.u32 %v2494, 16
        %v2500 = vmul.u32 %v2496, %v2498
        %v2501 = vmul.u32 %v2496, %v2499
        %v2502 = vmul.u32 %v2497, %v2498
        %v2503 = vmul.u32 %v2497, %v2499
        %v2504 = vshll.u32 %v2501, 16
        %v2505 = vshrl.u32 %v2501, 16
        %v2506 = vshll.u32 %v2502, 16
        %v2507 = vshrl.u32 %v2502, 16
        %vm2508 = vc.u32 %v2500, %v2504
        %v2509 = vsel %vm2508, 1, 0
        %v2510 = vadd.s32 %v2500, %v2504
        %v2511 = vadd.s32 %v2503, %v2509
        %vm2512 = vc.u32 %v2510, %v2506
        %v2513 = vsel %vm2512, 1, 0
        %v2514 = vadd.s32 %v2510, %v2506
        %v2515 = vadd.s32 %v2511, %v2513
        %v2516 = vadd.s32 %v2515, %v2505
        %v2517 = vadd.s32 %v2516, %v2507
        %v2518 = vand.u32 %v2495, 65535
        %v2519 = vshrl.u32 %v2495, 16
        %v2520 = vand.u32 %v2490, 65535
        %v2521 = vshrl.u32 %v2490, 16
        %v2522 = vmul.u32 %v2518, %v2520
        %v2523 = vmul.u32 %v2518, %v2521
        %v2524 = vmul.u32 %v2519, %v2520
        %v2525 = vmul.u32 %v2519, %v2521
        %v2526 = vshll.u32 %v2523, 16
        %v2527 = vshrl.u32 %v2523, 16
        %v2528 = vshll.u32 %v2524, 16
        %v2529 = vshrl.u32 %v2524, 16
        %vm2530 = vc.u32 %v2522, %v2526
        %v2531 = vsel %vm2530, 1, 0
        %v2532 = vadd.s32 %v2522, %v2526
        %v2533 = vadd.s32 %v2525, %v2531
        %vm2534 = vc.u32 %v2532, %v2528
        %v2535 = vsel %vm2534, 1, 0
        %v2536 = vadd.s32 %v2532, %v2528
        %v2537 = vadd.s32 %v2533, %v2535
        %v2538 = vadd.s32 %v2537, %v2527
        %v2539 = vadd.s32 %v2538, %v2529
        %v2540 = vmul.u32 %v2495, %v2486
        %v2541 = vadd.s32 %v2517, %v2536
        %vm2542 = vc.u32 %v2517, %v2536
        %v2543 = vadd.s32 %v2539, 1
        %v2544 = vsel %vm2542, %v2543, %v2539
        %v2545 = vadd.s32 %v2540, %v2544
        %v2546 = vadd.s32 %v2545, 536870912
        %v2547 = vshrl.u32 %v2546, 30
        %v2548 = vshll.u32 %v2547, 30
        %v2549 = vsub.s32 %v2545, %v2548
        %vm2550 = vcmp.lt.s32.totalorder %v2549, 0
        %v2551 = vsub.s32 0, %v2549
        %v2552 = vsel %vm2550, %v2551, %v2549
        %v2553 = vclz %v2552
        %v2554 = vsub.s32 %v2553, 2
        %vm2555 = vcmp.gt.s32.totalorder 0, %v2554
        %v2556 = vsel %vm2555, 0, %v2554
        %v2557 = vsub.s32 32, %v2556
        %v2558 = vshll.u32 %v2549, %v2556
        %v2559 = vshrl.u32 %v2541, %v2557
        %v2560 = vor.u32 %v2558, %v2559
        %v2561 = vsub.s32 4294967266, %v2556
        %v2562 = vadd.s32 %v2561, 127
        %v2563 = vshll.u32 %v2562, 23
        %v2564 = vor.u32 4788187, %v2563
        %v2565 = vand.u32 2147483647, %v2564
        %v2567 = vcvt.s32.f32 %v2560
        %v2568 = vmul.f32 %v2567, %v2565
        %v2569 = vxor.u32 %v2568, 2147483648
        %v2570 = vsel %vm2449, %v2569, %v2568
        %v2571 = vsub.s32 4, %v2547
        %v2572 = vsel %vm2449, %v2571, %v2547
        %v2573 = vsel %vm2448, %v533, %v2570
        %v2574 = vsel %vm2448, 0, %v2572
        %v2575 = vmul.f32 %v2573, %v2573
        %v2576 = vmul.f32 %v2575, -0.001358992
        %v2577 = vadd.f32 %v2576, 0.041655596
        %v2578 = vmul.f32 %v2575, %v2577
        %v2579 = vadd.f32 %v2578, -0.4999988
        %v2580 = vmul.f32 %v2575, %v2579
        %v2581 = vadd.f32 1.0, %v2580
        %v2582 = vmul.f32 %v2573, %v2573
        %v2583 = vmul.f32 %v2582, -0.00019511016
        %v2584 = vadd.f32 %v2583, 0.008332121
        %v2585 = vmul.f32 %v2582, %v2584
        %v2586 = vadd.f32 %v2585, -0.16666654
        %v2587 = vmul.f32 %v2582, %v2586
        %v2588 = vadd.f32 %v2587, 1.0
        %v2589 = vmul.f32 %v2588, %v2573
        %vm2590 = vweird.f32 %v533
        %v2591 = vadd.s32 %v2574, 3
        %v2592 = vand.u32 %v2591, 3
        %vm2593 = vcmp.lt.s32.totalorder %v2592, 2
        %vm2594 = vcmp.eq.s32.totalorder %v2592, 0
        %v2595 = vxor.u32 %v2589, 2147483648
        %v2596 = vsel %vm2594, %v2581, %v2595
        %vm2597 = vcmp.eq.s32.totalorder %v2592, 2
        %v2598 = vxor.u32 %v2581, 2147483648
        %v2599 = vsel %vm2597, %v2598, %v2589
        %v2600 = vsel %vm2593, %v2596, %v2599
        %v2601 = vsel %vm2590, nan, %v2600
        %v2602 = vand.u32 2147483647, %v553
        %vm2603 = vcmp.le.f32.partialorder %v2602, 0.7853982
        %vm2604 = vcmp.lt.s32.totalorder %v553, 0
        %v2605 = vand.u32 %v553, 2139095040
        %v2606 = vshrl.u32 %v2605, 23
        %v2607 = vsub.s32 %v2606, 127
        %v2608 = vand.u32 2147483647, %v553
        %v2609 = vand.u32 %v2608, 8388607
        %v2610 = vor.u32 %v2609, 8388608
        %v2611 = vsub.s32 0, %v2610
        %v2612 = vadd.s32 %v2607, 1
        %vm2613 = vcmp.gt.s32.totalorder %v2612, 0
        %v2614 = vsel %vm2613, %v2612, 0
        %v2615 = vshrl.u32 %v2614, 5
        %v2616 = vand.u32 %v2614, 31
        %v2617 = vsub.s32 32, %v2616
        %v2618 = vshrl.u32 683565275, %v2617
        %v2619 = vshll.u32 683565275, %v2616
        %v2620 = vshrl.u32 2475754826, %v2617
        %v2621 = vor.u32 %v2619, %v2620
        %v2622 = vshll.u32 2475754826, %v2616
        %v2623 = vshrl.u32 2131351028, %v2617
        %v2624 = vor.u32 %v2622, %v2623
        %v2625 = vshll.u32 2131351028, %v2616
        %v2626 = vshrl.u32 2102212464, %v2617
        %v2627 = vor.u32 %v2625, %v2626
        %v2628 = vshll.u32 2102212464, %v2616
        %v2629 = vshrl.u32 920167782, %v2617
        %v2630 = vor.u32 %v2628, %v2629
        %v2631 = vshll.u32 920167782, %v2616
        %v2632 = vshrl.u32 1326507024, %v2617
        %v2633 = vor.u32 %v2631, %v2632
        %vm2634 = vcmp.lt.s32.totalorder %v2615, 1
        %vm2635 = vcmp.lt.s32.totalorder %v2615, 2
        %vm2636 = vcmp.lt.s32.totalorder %v2615, 3
        %vm2637 = vcmp.lt.s32.totalorder %v2615, 4
        %v2638 = vsel %vm2634, %v2618, %v2621
        %v2639 = vsel %vm2637, %v2627, 2102212464
        %v2640 = vsel %vm2636, %v2624, %v2639
        %v2641 = vsel %vm2635, %v2638, %v2640
        %v2642 = vsel %vm2634, %v2621, %v2624
        %v2643 = vsel %vm2637, %v2630, 920167782
        %v2644 = vsel %vm2636, %v2627, %v2643
        %v2645 = vsel %vm2635, %v2642, %v2644
        %v2646 = vsel %vm2634, %v2624, %v2627
        %v2647 = vsel %vm2637, %v2633, 1326507024
        %v2648 = vsel %vm2636, %v2630, %v2647
        %v2649 = vsel %vm2635, %v2646, %v2648
        %v2650 = vshll.u32 %v2610, 8
        %v2651 = vand.u32 %v2650, 65535
        %v2652 = vshrl.u32 %v2650, 16
        %v2653 = vand.u32 %v2649, 65535
        %v2654 = vshrl.u32 %v2649, 16
        %v2655 = vmul.u32 %v2651, %v2653
        %v2656 = vmul.u32 %v2651, %v2654
        %v2657 = vmul.u32 %v2652, %v2653
        %v2658 = vmul.u32 %v2652, %v2654
        %v2659 = vshll.u32 %v2656, 16
        %v2660 = vshrl.u32 %v2656, 16
        %v2661 = vshll.u32 %v2657, 16
        %v2662 = vshrl.u32 %v2657, 16
        %vm2663 = vc.u32 %v2655, %v2659
        %v2664 = vsel %vm2663, 1, 0
        %v2665 = vadd.s32 %v2655, %v2659
        %v2666 = vadd.s32 %v2658, %v2664
        %vm2667 = vc.u32 %v2665, %v2661
        %v2668 = vsel %vm2667, 1, 0
        %v2669 = vadd.s32 %v2665, %v2661
        %v2670 = vadd.s32 %v2666, %v2668
        %v2671 = vadd.s32 %v2670, %v2660
        %v2672 = vadd.s32 %v2671, %v2662
        %v2673 = vand.u32 %v2650, 65535
        %v2674 = vshrl.u32 %v2650, 16
        %v2675 = vand.u32 %v2645, 65535
        %v2676 = vshrl.u32 %v2645, 16
        %v2677 = vmul.u32 %v2673, %v2675
        %v2678 = vmul.u32 %v2673, %v2676
        %v2679 = vmul.u32 %v2674, %v2675
        %v2680 = vmul.u32 %v2674, %v2676
        %v2681 = vshll.u32 %v2678, 16
        %v2682 = vshrl.u32 %v2678, 16
        %v2683 = vshll.u32 %v2679, 16
        %v2684 = vshrl.u32 %v2679, 16
        %vm2685 = vc.u32 %v2677, %v2681
        %v2686 = vsel %vm2685, 1, 0
        %v2687 = vadd.s32 %v2677, %v2681
        %v2688 = vadd.s32 %v2680, %v2686
        %vm2689 = vc.u32 %v2687, %v2683
        %v2690 = vsel %vm2689, 1, 0
        %v2691 = vadd.s32 %v2687, %v2683
        %v2692 = vadd.s32 %v2688, %v2690
        %v2693 = vadd.s32 %v2692, %v2682
        %v2694 = vadd.s32 %v2693, %v2684
        %v2695 = vmul.u32 %v2650, %v2641
        %v2696 = vadd.s32 %v2672, %v2691
        %vm2697 = vc.u32 %v2672, %v2691
        %v2698 = vadd.s32 %v2694, 1
        %v2699 = vsel %vm2697, %v2698, %v2694
        %v2700 = vadd.s32 %v2695, %v2699
        %v2701 = vadd.s32 %v2700, 536870912
        %v2702 = vshrl.u32 %v2701, 30
        %v2703 = vshll.u32 %v2702, 30
        %v2704 = vsub.s32 %v2700, %v2703
        %vm2705 = vcmp.lt.s32.totalorder %v2704, 0
        %v2706 = vsub.s32 0, %v2704
        %v2707 = vsel %vm2705, %v2706, %v2704
        %v2708 = vclz %v2707
        %v2709 = vsub.s32 %v2708, 2
        %vm2710 = vcmp.gt.s32.totalorder 0, %v2709
        %v2711 = vsel %vm2710, 0, %v2709
        %v2712 = vsub.s32 32, %v2711
        %v2713 = vshll.u32 %v2704, %v2711
        %v2714 = vshrl.u32 %v2696, %v2712
        %v2715 = vor.u32 %v2713, %v2714
        %v2716 = vsub.s32 4294967266, %v2711
        %v2717 = vadd.s32 %v2716, 127
        %v2718 = vshll.u32 %v2717, 23
        %v2719 = vor.u32 4788187, %v2718
        %v2720 = vand.u32 2147483647, %v2719
        %v2722 = vcvt.s32.f32 %v2715
        %v2723 = vmul.f32 %v2722, %v2720
        %v2724 = vxor.u32 %v2723, 2147483648
        %v2725 = vsel %vm2604, %v2724, %v2723
        %v2726 = vsub.s32 4, %v2702
        %v2727 = vsel %vm2604, %v2726, %v2702
        %v2728 = vsel %vm2603, %v553, %v2725
        %v2729 = vsel %vm2603, 0, %v2727
        %v2730 = vmul.f32 %v2728, %v2728
        %v2731 = vmul.f32 %v2730, -0.001358992
        %v2732 = vadd.f32 %v2731, 0.041655596
        %v2733 = vmul.f32 %v2730, %v2732
        %v2734 = vadd.f32 %v2733, -0.4999988
        %v2735 = vmul.f32 %v2730, %v2734
        %v2736 = vadd.f32 1.0, %v2735
        %v2737 = vmul.f32 %v2728, %v2728
        %v2738 = vmul.f32 %v2737, -0.00019511016
        %v2739 = vadd.f32 %v2738, 0.008332121
        %v2740 = vmul.f32 %v2737, %v2739
        %v2741 = vadd.f32 %v2740, -0.16666654
        %v2742 = vmul.f32 %v2737, %v2741
        %v2743 = vadd.f32 %v2742, 1.0
        %v2744 = vmul.f32 %v2743, %v2728
        %vm2745 = vweird.f32 %v553
        %v2746 = vadd.s32 %v2729, 3
        %v2747 = vand.u32 %v2746, 3
        %vm2748 = vcmp.lt.s32.totalorder %v2747, 2
        %vm2749 = vcmp.eq.s32.totalorder %v2747, 0
        %v2750 = vxor.u32 %v2744, 2147483648
        %v2751 = vsel %vm2749, %v2736, %v2750
        %vm2752 = vcmp.eq.s32.totalorder %v2747, 2
        %v2753 = vxor.u32 %v2736, 2147483648
        %v2754 = vsel %vm2752, %v2753, %v2744
        %v2755 = vsel %vm2748, %v2751, %v2754
        %v2756 = vsel %vm2745, nan, %v2755
        %v2757 = vand.u32 2147483647, %v573
        %vm2758 = vcmp.le.f32.partialorder %v2757, 0.7853982
        %vm2759 = vcmp.lt.s32.totalorder %v573, 0
        %v2760 = vand.u32 %v573, 2139095040
        %v2761 = vshrl.u32 %v2760, 23
        %v2762 = vsub.s32 %v2761, 127
        %v2763 = vand.u32 2147483647, %v573
        %v2764 = vand.u32 %v2763, 8388607
        %v2765 = vor.u32 %v2764, 8388608
        %v2766 = vsub.s32 0, %v2765
        %v2767 = vadd.s32 %v2762, 1
        %vm2768 = vcmp.gt.s32.totalorder %v2767, 0
        %v2769 = vsel %vm2768, %v2767, 0
        %v2770 = vshrl.u32 %v2769, 5
        %v2771 = vand.u32 %v2769, 31
        %v2772 = vsub.s32 32, %v2771
        %v2773 = vshrl.u32 683565275, %v2772
        %v2774 = vshll.u32 683565275, %v2771
        %v2775 = vshrl.u32 2475754826, %v2772
        %v2776 = vor.u32 %v2774, %v2775
        %v2777 = vshll.u32 2475754826, %v2771
        %v2778 = vshrl.u32 2131351028, %v2772
        %v2779 = vor.u32 %v2777, %v2778
        %v2780 = vshll.u32 2131351028, %v2771
        %v2781 = vshrl.u32 2102212464, %v2772
        %v2782 = vor.u32 %v2780, %v2781
        %v2783 = vshll.u32 2102212464, %v2771
        %v2784 = vshrl.u32 920167782, %v2772
        %v2785 = vor.u32 %v2783, %v2784
        %v2786 = vshll.u32 920167782, %v2771
        %v2787 = vshrl.u32 1326507024, %v2772
        %v2788 = vor.u32 %v2786, %v2787
        %vm2789 = vcmp.lt.s32.totalorder %v2770, 1
        %vm2790 = vcmp.lt.s32.totalorder %v2770, 2
        %vm2791 = vcmp.lt.s32.totalorder %v2770, 3
        %vm2792 = vcmp.lt.s32.totalorder %v2770, 4
        %v2793 = vsel %vm2789, %v2773, %v2776
        %v2794 = vsel %vm2792, %v2782, 2102212464
        %v2795 = vsel %vm2791, %v2779, %v2794
        %v2796 = vsel %vm2790, %v2793, %v2795
        %v2797 = vsel %vm2789, %v2776, %v2779
        %v2798 = vsel %vm2792, %v2785, 920167782
        %v2799 = vsel %vm2791, %v2782, %v2798
        %v2800 = vsel %vm2790, %v2797, %v2799
        %v2801 = vsel %vm2789, %v2779, %v2782
        %v2802 = vsel %vm2792, %v2788, 1326507024
        %v2803 = vsel %vm2791, %v2785, %v2802
        %v2804 = vsel %vm2790, %v2801, %v2803
        %v2805 = vshll.u32 %v2765, 8
        %v2806 = vand.u32 %v2805, 65535
        %v2807 = vshrl.u32 %v2805, 16
        %v2808 = vand.u32 %v2804, 65535
        %v2809 = vshrl.u32 %v2804, 16
        %v2810 = vmul.u32 %v2806, %v2808
        %v2811 = vmul.u32 %v2806, %v2809
        %v2812 = vmul.u32 %v2807, %v2808
        %v2813 = vmul.u32 %v2807, %v2809
        %v2814 = vshll.u32 %v2811, 16
        %v2815 = vshrl.u32 %v2811, 16
        %v2816 = vshll.u32 %v2812, 16
        %v2817 = vshrl.u32 %v2812, 16
        %vm2818 = vc.u32 %v2810, %v2814
        %v2819 = vsel %vm2818, 1, 0
        %v2820 = vadd.s32 %v2810, %v2814
        %v2821 = vadd.s32 %v2813, %v2819
        %vm2822 = vc.u32 %v2820, %v2816
        %v2823 = vsel %vm2822, 1, 0
        %v2824 = vadd.s32 %v2820, %v2816
        %v2825 = vadd.s32 %v2821, %v2823
        %v2826 = vadd.s32 %v2825, %v2815
        %v2827 = vadd.s32 %v2826, %v2817
        %v2828 = vand.u32 %v2805, 65535
        %v2829 = vshrl.u32 %v2805, 16
        %v2830 = vand.u32 %v2800, 65535
        %v2831 = vshrl.u32 %v2800, 16
        %v2832 = vmul.u32 %v2828, %v2830
        %v2833 = vmul.u32 %v2828, %v2831
        %v2834 = vmul.u32 %v2829, %v2830
        %v2835 = vmul.u32 %v2829, %v2831
        %v2836 = vshll.u32 %v2833, 16
        %v2837 = vshrl.u32 %v2833, 16
        %v2838 = vshll.u32 %v2834, 16
        %v2839 = vshrl.u32 %v2834, 16
        %vm2840 = vc.u32 %v2832, %v2836
        %v2841 = vsel %vm2840, 1, 0
        %v2842 = vadd.s32 %v2832, %v2836
        %v2843 = vadd.s32 %v2835, %v2841
        %vm2844 = vc.u32 %v2842, %v2838
        %v2845 = vsel %vm2844, 1, 0
        %v2846 = vadd.s32 %v2842, %v2838
        %v2847 = vadd.s32 %v2843, %v2845
        %v2848 = vadd.s32 %v2847, %v2837
        %v2849 = vadd.s32 %v2848, %v2839
        %v2850 = vmul.u32 %v2805, %v2796
        %v2851 = vadd.s32 %v2827, %v2846
        %vm2852 = vc.u32 %v2827, %v2846
        %v2853 = vadd.s32 %v2849, 1
        %v2854 = vsel %vm2852, %v2853, %v2849
        %v2855 = vadd.s32 %v2850, %v2854
        %v2856 = vadd.s32 %v2855, 536870912
        %v2857 = vshrl.u32 %v2856, 30
        %v2858 = vshll.u32 %v2857, 30
        %v2859 = vsub.s32 %v2855, %v2858
        %vm2860 = vcmp.lt.s32.totalorder %v2859, 0
        %v2861 = vsub.s32 0, %v2859
        %v2862 = vsel %vm2860, %v2861, %v2859
        %v2863 = vclz %v2862
        %v2864 = vsub.s32 %v2863, 2
        %vm2865 = vcmp.gt.s32.totalorder 0, %v2864
        %v2866 = vsel %vm2865, 0, %v2864
        %v2867 = vsub.s32 32, %v2866
        %v2868 = vshll.u32 %v2859, %v2866
        %v2869 = vshrl.u32 %v2851, %v2867
        %v2870 = vor.u32 %v2868, %v2869
        %v2871 = vsub.s32 4294967266, %v2866
        %v2872 = vadd.s32 %v2871, 127
        %v2873 = vshll.u32 %v2872, 23
        %v2874 = vor.u32 4788187, %v2873
        %v2875 = vand.u32 2147483647, %v2874
        %v2877 = vcvt.s32.f32 %v2870
        %v2878 = vmul.f32 %v2877, %v2875
        %v2879 = vxor.u32 %v2878, 2147483648
        %v2880 = vsel %vm2759, %v2879, %v2878
        %v2881 = vsub.s32 4, %v2857
        %v2882 = vsel %vm2759, %v2881, %v2857
        %v2883 = vsel %vm2758, %v573, %v2880
        %v2884 = vsel %vm2758, 0, %v2882
        %v2885 = vmul.f32 %v2883, %v2883
        %v2886 = vmul.f32 %v2885, -0.001358992
        %v2887 = vadd.f32 %v2886, 0.041655596
        %v2888 = vmul.f32 %v2885, %v2887
        %v2889 = vadd.f32 %v2888, -0.4999988
        %v2890 = vmul.f32 %v2885, %v2889
        %v2891 = vadd.f32 1.0, %v2890
        %v2892 = vmul.f32 %v2883, %v2883
        %v2893 = vmul.f32 %v2892, -0.00019511016
        %v2894 = vadd.f32 %v2893, 0.008332121
        %v2895 = vmul.f32 %v2892, %v2894
        %v2896 = vadd.f32 %v2895, -0.16666654
        %v2897 = vmul.f32 %v2892, %v2896
        %v2898 = vadd.f32 %v2897, 1.0
        %v2899 = vmul.f32 %v2898, %v2883
        %vm2900 = vweird.f32 %v573
        %v2901 = vadd.s32 %v2884, 3
        %v2902 = vand.u32 %v2901, 3
        %vm2903 = vcmp.lt.s32.totalorder %v2902, 2
        %vm2904 = vcmp.eq.s32.totalorder %v2902, 0
        %v2905 = vxor.u32 %v2899, 2147483648
        %v2906 = vsel %vm2904, %v2891, %v2905
        %vm2907 = vcmp.eq.s32.totalorder %v2902, 2
        %v2908 = vxor.u32 %v2891, 2147483648
        %v2909 = vsel %vm2907, %v2908, %v2899
        %v2910 = vsel %vm2903, %v2906, %v2909
        %v2911 = vsel %vm2900, nan, %v2910
        %v2912 = vand.u32 2147483647, %v593
        %vm2913 = vcmp.le.f32.partialorder %v2912, 0.7853982
        %vm2914 = vcmp.lt.s32.totalorder %v593, 0
        %v2915 = vand.u32 %v593, 2139095040
        %v2916 = vshrl.u32 %v2915, 23
        %v2917 = vsub.s32 %v2916, 127
        %v2918 = vand.u32 2147483647, %v593
        %v2919 = vand.u32 %v2918, 8388607
        %v2920 = vor.u32 %v2919, 8388608
        %v2921 = vsub.s32 0, %v2920
        %v2922 = vadd.s32 %v2917, 1
        %vm2923 = vcmp.gt.s32.totalorder %v2922, 0
        %v2924 = vsel %vm2923, %v2922, 0
        %v2925 = vshrl.u32 %v2924, 5
        %v2926 = vand.u32 %v2924, 31
        %v2927 = vsub.s32 32, %v2926
        %v2928 = vshrl.u32 683565275, %v2927
        %v2929 = vshll.u32 683565275, %v2926
        %v2930 = vshrl.u32 2475754826, %v2927
        %v2931 = vor.u32 %v2929, %v2930
        %v2932 = vshll.u32 2475754826, %v2926
        %v2933 = vshrl.u32 2131351028, %v2927
        %v2934 = vor.u32 %v2932, %v2933
        %v2935 = vshll.u32 2131351028, %v2926
        %v2936 = vshrl.u32 2102212464, %v2927
        %v2937 = vor.u32 %v2935, %v2936
        %v2938 = vshll.u32 2102212464, %v2926
        %v2939 = vshrl.u32 920167782, %v2927
        %v2940 = vor.u32 %v2938, %v2939
        %v2941 = vshll.u32 920167782, %v2926
        %v2942 = vshrl.u32 1326507024, %v2927
        %v2943 = vor.u32 %v2941, %v2942
        %vm2944 = vcmp.lt.s32.totalorder %v2925, 1
        %vm2945 = vcmp.lt.s32.totalorder %v2925, 2
        %vm2946 = vcmp.lt.s32.totalorder %v2925, 3
        %vm2947 = vcmp.lt.s32.totalorder %v2925, 4
        %v2948 = vsel %vm2944, %v2928, %v2931
        %v2949 = vsel %vm2947, %v2937, 2102212464
        %v2950 = vsel %vm2946, %v2934, %v2949
        %v2951 = vsel %vm2945, %v2948, %v2950
        %v2952 = vsel %vm2944, %v2931, %v2934
        %v2953 = vsel %vm2947, %v2940, 920167782
        %v2954 = vsel %vm2946, %v2937, %v2953
        %v2955 = vsel %vm2945, %v2952, %v2954
        %v2956 = vsel %vm2944, %v2934, %v2937
        %v2957 = vsel %vm2947, %v2943, 1326507024
        %v2958 = vsel %vm2946, %v2940, %v2957
        %v2959 = vsel %vm2945, %v2956, %v2958
        %v2960 = vshll.u32 %v2920, 8
        %v2961 = vand.u32 %v2960, 65535
        %v2962 = vshrl.u32 %v2960, 16
        %v2963 = vand.u32 %v2959, 65535
        %v2964 = vshrl.u32 %v2959, 16
        %v2965 = vmul.u32 %v2961, %v2963
        %v2966 = vmul.u32 %v2961, %v2964
        %v2967 = vmul.u32 %v2962, %v2963
        %v2968 = vmul.u32 %v2962, %v2964
        %v2969 = vshll.u32 %v2966, 16
        %v2970 = vshrl.u32 %v2966, 16
        %v2971 = vshll.u32 %v2967, 16
        %v2972 = vshrl.u32 %v2967, 16
        %vm2973 = vc.u32 %v2965, %v2969
        %v2974 = vsel %vm2973, 1, 0
        %v2975 = vadd.s32 %v2965, %v2969
        %v2976 = vadd.s32 %v2968, %v2974
        %vm2977 = vc.u32 %v2975, %v2971
        %v2978 = vsel %vm2977, 1, 0
        %v2979 = vadd.s32 %v2975, %v2971
        %v2980 = vadd.s32 %v2976, %v2978
        %v2981 = vadd.s32 %v2980, %v2970
        %v2982 = vadd.s32 %v2981, %v2972
        %v2983 = vand.u32 %v2960, 65535
        %v2984 = vshrl.u32 %v2960, 16
        %v2985 = vand.u32 %v2955, 65535
        %v2986 = vshrl.u32 %v2955, 16
        %v2987 = vmul.u32 %v2983, %v2985
        %v2988 = vmul.u32 %v2983, %v2986
        %v2989 = vmul.u32 %v2984, %v2985
        %v2990 = vmul.u32 %v2984, %v2986
        %v2991 = vshll.u32 %v2988, 16
        %v2992 = vshrl.u32 %v2988, 16
        %v2993 = vshll.u32 %v2989, 16
        %v2994 = vshrl.u32 %v2989, 16
        %vm2995 = vc.u32 %v2987, %v2991
        %v2996 = vsel %vm2995, 1, 0
        %v2997 = vadd.s32 %v2987, %v2991
        %v2998 = vadd.s32 %v2990, %v2996
        %vm2999 = vc.u32 %v2997, %v2993
        %v3000 = vsel %vm2999, 1, 0
        %v3001 = vadd.s32 %v2997, %v2993
        %v3002 = vadd.s32 %v2998, %v3000
        %v3003 = vadd.s32 %v3002, %v2992
        %v3004 = vadd.s32 %v3003, %v2994
        %v3005 = vmul.u32 %v2960, %v2951
        %v3006 = vadd.s32 %v2982, %v3001
        %vm3007 = vc.u32 %v2982, %v3001
        %v3008 = vadd.s32 %v3004, 1
        %v3009 = vsel %vm3007, %v3008, %v3004
        %v3010 = vadd.s32 %v3005, %v3009
        %v3011 = vadd.s32 %v3010, 536870912
        %v3012 = vshrl.u32 %v3011, 30
        %v3013 = vshll.u32 %v3012, 30
        %v3014 = vsub.s32 %v3010, %v3013
        %vm3015 = vcmp.lt.s32.totalorder %v3014, 0
        %v3016 = vsub.s32 0, %v3014
        %v3017 = vsel %vm3015, %v3016, %v3014
        %v3018 = vclz %v3017
        %v3019 = vsub.s32 %v3018, 2
        %vm3020 = vcmp.gt.s32.totalorder 0, %v3019
        %v3021 = vsel %vm3020, 0, %v3019
        %v3022 = vsub.s32 32, %v3021
        %v3023 = vshll.u32 %v3014, %v3021
        %v3024 = vshrl.u32 %v3006, %v3022
        %v3025 = vor.u32 %v3023, %v3024
        %v3026 = vsub.s32 4294967266, %v3021
        %v3027 = vadd.s32 %v3026, 127
        %v3028 = vshll.u32 %v3027, 23
        %v3029 = vor.u32 4788187, %v3028
        %v3030 = vand.u32 2147483647, %v3029
        %v3032 = vcvt.s32.f32 %v3025
        %v3033 = vmul.f32 %v3032, %v3030
        %v3034 = vxor.u32 %v3033, 2147483648
        %v3035 = vsel %vm2914, %v3034, %v3033
        %v3036 = vsub.s32 4, %v3012
        %v3037 = vsel %vm2914, %v3036, %v3012
        %v3038 = vsel %vm2913, %v593, %v3035
        %v3039 = vsel %vm2913, 0, %v3037
        %v3040 = vmul.f32 %v3038, %v3038
        %v3041 = vmul.f32 %v3040, -0.001358992
        %v3042 = vadd.f32 %v3041, 0.041655596
        %v3043 = vmul.f32 %v3040, %v3042
        %v3044 = vadd.f32 %v3043, -0.4999988
        %v3045 = vmul.f32 %v3040, %v3044
        %v3046 = vadd.f32 1.0, %v3045
        %v3047 = vmul.f32 %v3038, %v3038
        %v3048 = vmul.f32 %v3047, -0.00019511016
        %v3049 = vadd.f32 %v3048, 0.008332121
        %v3050 = vmul.f32 %v3047, %v3049
        %v3051 = vadd.f32 %v3050, -0.16666654
        %v3052 = vmul.f32 %v3047, %v3051
        %v3053 = vadd.f32 %v3052, 1.0
        %v3054 = vmul.f32 %v3053, %v3038
        %vm3055 = vweird.f32 %v593
        %v3056 = vadd.s32 %v3039, 3
        %v3057 = vand.u32 %v3056, 3
        %vm3058 = vcmp.lt.s32.totalorder %v3057, 2
        %vm3059 = vcmp.eq.s32.totalorder %v3057, 0
        %v3060 = vxor.u32 %v3054, 2147483648
        %v3061 = vsel %vm3059, %v3046, %v3060
        %vm3062 = vcmp.eq.s32.totalorder %v3057, 2
        %v3063 = vxor.u32 %v3046, 2147483648
        %v3064 = vsel %vm3062, %v3063, %v3054
        %v3065 = vsel %vm3058, %v3061, %v3064
        %v3066 = vsel %vm3055, nan, %v3065
        %v3067 = vld [vmem:[%s2] sm:$0xff]
        %v3068 = vld [vmem:[%s2 + $0x8] sm:$0xff]
        %v3069 = vld [vmem:[%s2 + $0x10] sm:$0xff]
        %v3070 = vld [vmem:[%s2 + $0x18] sm:$0xff]
        %v3071 = vld [vmem:[%s2 + $0x20] sm:$0xff]
        %v3072 = vld [vmem:[%s2 + $0x28] sm:$0xff]
        %v3073 = vld [vmem:[%s2 + $0x30] sm:$0xff]
        %v3074 = vld [vmem:[%s2 + $0x38] sm:$0xff]
        %v3075 = vld [vmem:[%s2 + $0x40] sm:$0xff]
        %v3076 = vld [vmem:[%s2 + $0x48] sm:$0xff]
        %v3077 = vld [vmem:[%s2 + $0x50] sm:$0xff]
        %v3078 = vld [vmem:[%s2 + $0x58] sm:$0xff]
        %v3079 = vld [vmem:[%s3] sm:$0xff]
        %v3080 = vld [vmem:[%s3 + $0x8] sm:$0xff]
        %v3081 = vld [vmem:[%s3 + $0x10] sm:$0xff]
        %v3082 = vld [vmem:[%s3 + $0x18] sm:$0xff]
        %v3083 = vld [vmem:[%s3 + $0x20] sm:$0xff]
        %v3084 = vld [vmem:[%s3 + $0x28] sm:$0xff]
        %v3085 = vld [vmem:[%s3 + $0x30] sm:$0xff]
        %v3086 = vld [vmem:[%s3 + $0x38] sm:$0xff]
        %v3087 = vld [vmem:[%s3 + $0x40] sm:$0xff]
        %v3088 = vld [vmem:[%s3 + $0x48] sm:$0xff]
        %v3089 = vld [vmem:[%s3 + $0x50] sm:$0xff]
        %v3090 = vld [vmem:[%s3 + $0x58] sm:$0xff]
        %vm3091 = vcmask 39936
        %v3093 = vsel %vm3091, %v3079, 0
        %v3096 = vsel %vm3091, %v3080, 0
        %v3099 = vsel %vm3091, %v3081, 0
        %v3102 = vsel %vm3091, %v3082, 0
        %v3105 = vsel %vm3091, %v3083, 0
        %v3108 = vsel %vm3091, %v3084, 0
        %v3111 = vsel %vm3091, %v3085, 0
        %v3114 = vsel %vm3091, %v3086, 0
        %v3117 = vsel %vm3091, %v3087, 0
        %v3120 = vsel %vm3091, %v3088, 0
        %v3123 = vsel %vm3091, %v3089, 0
        %v3126 = vsel %vm3091, %v3090, 0
        %vm3128 = vcmask 1044480
        %v3130 = vsel %vm3128, %v748, 0
        %v3133 = vsel %vm3128, %v902, 0
        %v3136 = vsel %vm3128, %v1056, 0
        %v3139 = vsel %vm3128, %v1210, 0
        %v3142 = vsel %vm3128, %v1364, 0
        %v3145 = vsel %vm3128, %v1518, 0
        %v3148 = vsel %vm3128, %v1672, 0
        %v3151 = vsel %vm3128, %v1826, 0
        %3153 = vmatpush.msra.mxu0 0.0
        %3154 = vmatpush.msra.mxu0 0.0
        %3155 = vmatpush.msra.mxu0 0.0
        %3156 = vmatpush.msra.mxu0 0.0
        %3157 = vmatpush.msra.mxu0 0.0
        %3158 = vmatpush.msra.mxu0 0.0
        %3159 = vmatpush.msra.mxu0 0.0
        %3160 = vmatpush.msra.mxu0 0.0
        %3161 = vmatpush.msra.mxu0 0.0
        %3162 = vmatpush.msra.mxu0 0.0
        %3163 = vmatpush.msra.mxu0 0.0
        %3164 = vmatpush.msra.mxu0 0.0
        %3165 = vmatpush.msra.mxu0 0.0
        %3166 = vmatpush.msra.mxu0 0.0
        %3167 = vmatpush.msra.mxu0 0.0
        %3168 = vmatpush.msra.mxu0 %v3130
        %3169 = vmatmul.f32.gmra.mxu0 %v3093
        %v3170 = vpop.f32.mrf.mxu0
        %v3171 = vadd.f32 0.0, %v3170
        %3172 = vmatmul.f32.gmra.mxu0 %v3096
        %v3173 = vpop.f32.mrf.mxu0
        %v3174 = vadd.f32 0.0, %v3173
        %3175 = vmatmul.f32.gmra.mxu0 %v3099
        %v3176 = vpop.f32.mrf.mxu0
        %v3177 = vadd.f32 0.0, %v3176
        %3178 = vmatmul.f32.gmra.mxu0 %v3102
        %v3179 = vpop.f32.mrf.mxu0
        %v3180 = vadd.f32 0.0, %v3179
        %3181 = vmatmul.f32.gmra.mxu0 %v3105
        %v3182 = vpop.f32.mrf.mxu0
        %v3183 = vadd.f32 0.0, %v3182
        %3184 = vmatmul.f32.gmra.mxu0 %v3108
        %v3185 = vpop.f32.mrf.mxu0
        %v3186 = vadd.f32 0.0, %v3185
        %3187 = vmatmul.f32.gmra.mxu0 %v3111
        %v3188 = vpop.f32.mrf.mxu0
        %v3189 = vadd.f32 0.0, %v3188
        %3190 = vmatmul.f32.gmra.mxu0 %v3114
        %v3191 = vpop.f32.mrf.mxu0
        %v3192 = vadd.f32 0.0, %v3191
        %3193 = vmatmul.f32.gmra.mxu0 %v3117
        %v3194 = vpop.f32.mrf.mxu0
        %v3195 = vadd.f32 0.0, %v3194
        %3196 = vmatmul.f32.gmra.mxu0 %v3120
        %v3197 = vpop.f32.mrf.mxu0
        %v3198 = vadd.f32 0.0, %v3197
        %3199 = vmatmul.f32.gmra.mxu0 %v3123
        %v3200 = vpop.f32.mrf.mxu0
        %v3201 = vadd.f32 0.0, %v3200
        %3202 = vmatmul.f32.gmra.mxu0 %v3126
        %v3203 = vpop.f32.mrf.mxu0
        %v3204 = vadd.f32 0.0, %v3203
        %3205 = vdwg.mxu0
        %3206 = vmatpush.msra.mxu0 0.0
        %3207 = vmatpush.msra.mxu0 0.0
        %3208 = vmatpush.msra.mxu0 0.0
        %3209 = vmatpush.msra.mxu0 0.0
        %3210 = vmatpush.msra.mxu0 0.0
        %3211 = vmatpush.msra.mxu0 0.0
        %3212 = vmatpush.msra.mxu0 0.0
        %3213 = vmatpush.msra.mxu0 0.0
        %3214 = vmatpush.msra.mxu0 0.0
        %3215 = vmatpush.msra.mxu0 0.0
        %3216 = vmatpush.msra.mxu0 0.0
        %3217 = vmatpush.msra.mxu0 0.0
        %3218 = vmatpush.msra.mxu0 0.0
        %3219 = vmatpush.msra.mxu0 0.0
        %3220 = vmatpush.msra.mxu0 0.0
        %3221 = vmatpush.msra.mxu0 %v3133
        %3222 = vmatmul.f32.gmra.mxu0 %v3093
        %v3223 = vpop.f32.mrf.mxu0
        %v3224 = vadd.f32 0.0, %v3223
        %3225 = vmatmul.f32.gmra.mxu0 %v3096
        %v3226 = vpop.f32.mrf.mxu0
        %v3227 = vadd.f32 0.0, %v3226
        %3228 = vmatmul.f32.gmra.mxu0 %v3099
        %v3229 = vpop.f32.mrf.mxu0
        %v3230 = vadd.f32 0.0, %v3229
        %3231 = vmatmul.f32.gmra.mxu0 %v3102
        %v3232 = vpop.f32.mrf.mxu0
        %v3233 = vadd.f32 0.0, %v3232
        %3234 = vmatmul.f32.gmra.mxu0 %v3105
        %v3235 = vpop.f32.mrf.mxu0
        %v3236 = vadd.f32 0.0, %v3235
        %3237 = vmatmul.f32.gmra.mxu0 %v3108
        %v3238 = vpop.f32.mrf.mxu0
        %v3239 = vadd.f32 0.0, %v3238
        %3240 = vmatmul.f32.gmra.mxu0 %v3111
        %v3241 = vpop.f32.mrf.mxu0
        %v3242 = vadd.f32 0.0, %v3241
        %3243 = vmatmul.f32.gmra.mxu0 %v3114
        %v3244 = vpop.f32.mrf.mxu0
        %v3245 = vadd.f32 0.0, %v3244
        %3246 = vmatmul.f32.gmra.mxu0 %v3117
        %v3247 = vpop.f32.mrf.mxu0
        %v3248 = vadd.f32 0.0, %v3247
        %3249 = vmatmul.f32.gmra.mxu0 %v3120
        %v3250 = vpop.f32.mrf.mxu0
        %v3251 = vadd.f32 0.0, %v3250
        %3252 = vmatmul.f32.gmra.mxu0 %v3123
        %v3253 = vpop.f32.mrf.mxu0
        %v3254 = vadd.f32 0.0, %v3253
        %3255 = vmatmul.f32.gmra.mxu0 %v3126
        %v3256 = vpop.f32.mrf.mxu0
        %v3257 = vadd.f32 0.0, %v3256
        %3258 = vdwg.mxu0
        %3259 = vmatpush.msra.mxu0 0.0
        %3260 = vmatpush.msra.mxu0 0.0
        %3261 = vmatpush.msra.mxu0 0.0
        %3262 = vmatpush.msra.mxu0 0.0
        %3263 = vmatpush.msra.mxu0 0.0
        %3264 = vmatpush.msra.mxu0 0.0
        %3265 = vmatpush.msra.mxu0 0.0
        %3266 = vmatpush.msra.mxu0 0.0
        %3267 = vmatpush.msra.mxu0 0.0
        %3268 = vmatpush.msra.mxu0 0.0
        %3269 = vmatpush.msra.mxu0 0.0
        %3270 = vmatpush.msra.mxu0 0.0
        %3271 = vmatpush.msra.mxu0 0.0
        %3272 = vmatpush.msra.mxu0 0.0
        %3273 = vmatpush.msra.mxu0 0.0
        %3274 = vmatpush.msra.mxu0 %v3136
        %3275 = vmatmul.f32.gmra.mxu0 %v3093
        %v3276 = vpop.f32.mrf.mxu0
        %v3277 = vadd.f32 0.0, %v3276
        %3278 = vmatmul.f32.gmra.mxu0 %v3096
        %v3279 = vpop.f32.mrf.mxu0
        %v3280 = vadd.f32 0.0, %v3279
        %3281 = vmatmul.f32.gmra.mxu0 %v3099
        %v3282 = vpop.f32.mrf.mxu0
        %v3283 = vadd.f32 0.0, %v3282
        %3284 = vmatmul.f32.gmra.mxu0 %v3102
        %v3285 = vpop.f32.mrf.mxu0
        %v3286 = vadd.f32 0.0, %v3285
        %3287 = vmatmul.f32.gmra.mxu0 %v3105
        %v3288 = vpop.f32.mrf.mxu0
        %v3289 = vadd.f32 0.0, %v3288
        %3290 = vmatmul.f32.gmra.mxu0 %v3108
        %v3291 = vpop.f32.mrf.mxu0
        %v3292 = vadd.f32 0.0, %v3291
        %3293 = vmatmul.f32.gmra.mxu0 %v3111
        %v3294 = vpop.f32.mrf.mxu0
        %v3295 = vadd.f32 0.0, %v3294
        %3296 = vmatmul.f32.gmra.mxu0 %v3114
        %v3297 = vpop.f32.mrf.mxu0
        %v3298 = vadd.f32 0.0, %v3297
        %3299 = vmatmul.f32.gmra.mxu0 %v3117
        %v3300 = vpop.f32.mrf.mxu0
        %v3301 = vadd.f32 0.0, %v3300
        %3302 = vmatmul.f32.gmra.mxu0 %v3120
        %v3303 = vpop.f32.mrf.mxu0
        %v3304 = vadd.f32 0.0, %v3303
        %3305 = vmatmul.f32.gmra.mxu0 %v3123
        %v3306 = vpop.f32.mrf.mxu0
        %v3307 = vadd.f32 0.0, %v3306
        %3308 = vmatmul.f32.gmra.mxu0 %v3126
        %v3309 = vpop.f32.mrf.mxu0
        %v3310 = vadd.f32 0.0, %v3309
        %3311 = vdwg.mxu0
        %3312 = vmatpush.msra.mxu0 0.0
        %3313 = vmatpush.msra.mxu0 0.0
        %3314 = vmatpush.msra.mxu0 0.0
        %3315 = vmatpush.msra.mxu0 0.0
        %3316 = vmatpush.msra.mxu0 0.0
        %3317 = vmatpush.msra.mxu0 0.0
        %3318 = vmatpush.msra.mxu0 0.0
        %3319 = vmatpush.msra.mxu0 0.0
        %3320 = vmatpush.msra.mxu0 0.0
        %3321 = vmatpush.msra.mxu0 0.0
        %3322 = vmatpush.msra.mxu0 0.0
        %3323 = vmatpush.msra.mxu0 0.0
        %3324 = vmatpush.msra.mxu0 0.0
        %3325 = vmatpush.msra.mxu0 0.0
        %3326 = vmatpush.msra.mxu0 0.0
        %3327 = vmatpush.msra.mxu0 %v3139
        %3328 = vmatmul.f32.gmra.mxu0 %v3093
        %v3329 = vpop.f32.mrf.mxu0
        %v3330 = vadd.f32 0.0, %v3329
        %3331 = vmatmul.f32.gmra.mxu0 %v3096
        %v3332 = vpop.f32.mrf.mxu0
        %v3333 = vadd.f32 0.0, %v3332
        %3334 = vmatmul.f32.gmra.mxu0 %v3099
        %v3335 = vpop.f32.mrf.mxu0
        %v3336 = vadd.f32 0.0, %v3335
        %3337 = vmatmul.f32.gmra.mxu0 %v3102
        %v3338 = vpop.f32.mrf.mxu0
        %v3339 = vadd.f32 0.0, %v3338
        %3340 = vmatmul.f32.gmra.mxu0 %v3105
        %v3341 = vpop.f32.mrf.mxu0
        %v3342 = vadd.f32 0.0, %v3341
        %3343 = vmatmul.f32.gmra.mxu0 %v3108
        %v3344 = vpop.f32.mrf.mxu0
        %v3345 = vadd.f32 0.0, %v3344
        %3346 = vmatmul.f32.gmra.mxu0 %v3111
        %v3347 = vpop.f32.mrf.mxu0
        %v3348 = vadd.f32 0.0, %v3347
        %3349 = vmatmul.f32.gmra.mxu0 %v3114
        %v3350 = vpop.f32.mrf.mxu0
        %v3351 = vadd.f32 0.0, %v3350
        %3352 = vmatmul.f32.gmra.mxu0 %v3117
        %v3353 = vpop.f32.mrf.mxu0
        %v3354 = vadd.f32 0.0, %v3353
        %3355 = vmatmul.f32.gmra.mxu0 %v3120
        %v3356 = vpop.f32.mrf.mxu0
        %v3357 = vadd.f32 0.0, %v3356
        %3358 = vmatmul.f32.gmra.mxu0 %v3123
        %v3359 = vpop.f32.mrf.mxu0
        %v3360 = vadd.f32 0.0, %v3359
        %3361 = vmatmul.f32.gmra.mxu0 %v3126
        %v3362 = vpop.f32.mrf.mxu0
        %v3363 = vadd.f32 0.0, %v3362
        %3364 = vdwg.mxu0
        %3365 = vmatpush.msra.mxu0 0.0
        %3366 = vmatpush.msra.mxu0 0.0
        %3367 = vmatpush.msra.mxu0 0.0
        %3368 = vmatpush.msra.mxu0 0.0
        %3369 = vmatpush.msra.mxu0 0.0
        %3370 = vmatpush.msra.mxu0 0.0
        %3371 = vmatpush.msra.mxu0 0.0
        %3372 = vmatpush.msra.mxu0 0.0
        %3373 = vmatpush.msra.mxu0 0.0
        %3374 = vmatpush.msra.mxu0 0.0
        %3375 = vmatpush.msra.mxu0 0.0
        %3376 = vmatpush.msra.mxu0 0.0
        %3377 = vmatpush.msra.mxu0 0.0
        %3378 = vmatpush.msra.mxu0 0.0
        %3379 = vmatpush.msra.mxu0 0.0
        %3380 = vmatpush.msra.mxu0 %v3142
        %3381 = vmatmul.f32.gmra.mxu0 %v3093
        %v3382 = vpop.f32.mrf.mxu0
        %v3383 = vadd.f32 0.0, %v3382
        %3384 = vmatmul.f32.gmra.mxu0 %v3096
        %v3385 = vpop.f32.mrf.mxu0
        %v3386 = vadd.f32 0.0, %v3385
        %3387 = vmatmul.f32.gmra.mxu0 %v3099
        %v3388 = vpop.f32.mrf.mxu0
        %v3389 = vadd.f32 0.0, %v3388
        %3390 = vmatmul.f32.gmra.mxu0 %v3102
        %v3391 = vpop.f32.mrf.mxu0
        %v3392 = vadd.f32 0.0, %v3391
        %3393 = vmatmul.f32.gmra.mxu0 %v3105
        %v3394 = vpop.f32.mrf.mxu0
        %v3395 = vadd.f32 0.0, %v3394
        %3396 = vmatmul.f32.gmra.mxu0 %v3108
        %v3397 = vpop.f32.mrf.mxu0
        %v3398 = vadd.f32 0.0, %v3397
        %3399 = vmatmul.f32.gmra.mxu0 %v3111
        %v3400 = vpop.f32.mrf.mxu0
        %v3401 = vadd.f32 0.0, %v3400
        %3402 = vmatmul.f32.gmra.mxu0 %v3114
        %v3403 = vpop.f32.mrf.mxu0
        %v3404 = vadd.f32 0.0, %v3403
        %3405 = vmatmul.f32.gmra.mxu0 %v3117
        %v3406 = vpop.f32.mrf.mxu0
        %v3407 = vadd.f32 0.0, %v3406
        %3408 = vmatmul.f32.gmra.mxu0 %v3120
        %v3409 = vpop.f32.mrf.mxu0
        %v3410 = vadd.f32 0.0, %v3409
        %3411 = vmatmul.f32.gmra.mxu0 %v3123
        %v3412 = vpop.f32.mrf.mxu0
        %v3413 = vadd.f32 0.0, %v3412
        %3414 = vmatmul.f32.gmra.mxu0 %v3126
        %v3415 = vpop.f32.mrf.mxu0
        %v3416 = vadd.f32 0.0, %v3415
        %3417 = vdwg.mxu0
        %3418 = vmatpush.msra.mxu0 0.0
        %3419 = vmatpush.msra.mxu0 0.0
        %3420 = vmatpush.msra.mxu0 0.0
        %3421 = vmatpush.msra.mxu0 0.0
        %3422 = vmatpush.msra.mxu0 0.0
        %3423 = vmatpush.msra.mxu0 0.0
        %3424 = vmatpush.msra.mxu0 0.0
        %3425 = vmatpush.msra.mxu0 0.0
        %3426 = vmatpush.msra.mxu0 0.0
        %3427 = vmatpush.msra.mxu0 0.0
        %3428 = vmatpush.msra.mxu0 0.0
        %3429 = vmatpush.msra.mxu0 0.0
        %3430 = vmatpush.msra.mxu0 0.0
        %3431 = vmatpush.msra.mxu0 0.0
        %3432 = vmatpush.msra.mxu0 0.0
        %3433 = vmatpush.msra.mxu0 %v3145
        %3434 = vmatmul.f32.gmra.mxu0 %v3093
        %v3435 = vpop.f32.mrf.mxu0
        %v3436 = vadd.f32 0.0, %v3435
        %3437 = vmatmul.f32.gmra.mxu0 %v3096
        %v3438 = vpop.f32.mrf.mxu0
        %v3439 = vadd.f32 0.0, %v3438
        %3440 = vmatmul.f32.gmra.mxu0 %v3099
        %v3441 = vpop.f32.mrf.mxu0
        %v3442 = vadd.f32 0.0, %v3441
        %3443 = vmatmul.f32.gmra.mxu0 %v3102
        %v3444 = vpop.f32.mrf.mxu0
        %v3445 = vadd.f32 0.0, %v3444
        %3446 = vmatmul.f32.gmra.mxu0 %v3105
        %v3447 = vpop.f32.mrf.mxu0
        %v3448 = vadd.f32 0.0, %v3447
        %3449 = vmatmul.f32.gmra.mxu0 %v3108
        %v3450 = vpop.f32.mrf.mxu0
        %v3451 = vadd.f32 0.0, %v3450
        %3452 = vmatmul.f32.gmra.mxu0 %v3111
        %v3453 = vpop.f32.mrf.mxu0
        %v3454 = vadd.f32 0.0, %v3453
        %3455 = vmatmul.f32.gmra.mxu0 %v3114
        %v3456 = vpop.f32.mrf.mxu0
        %v3457 = vadd.f32 0.0, %v3456
        %3458 = vmatmul.f32.gmra.mxu0 %v3117
        %v3459 = vpop.f32.mrf.mxu0
        %v3460 = vadd.f32 0.0, %v3459
        %3461 = vmatmul.f32.gmra.mxu0 %v3120
        %v3462 = vpop.f32.mrf.mxu0
        %v3463 = vadd.f32 0.0, %v3462
        %3464 = vmatmul.f32.gmra.mxu0 %v3123
        %v3465 = vpop.f32.mrf.mxu0
        %v3466 = vadd.f32 0.0, %v3465
        %3467 = vmatmul.f32.gmra.mxu0 %v3126
        %v3468 = vpop.f32.mrf.mxu0
        %v3469 = vadd.f32 0.0, %v3468
        %3470 = vdwg.mxu0
        %3471 = vmatpush.msra.mxu0 0.0
        %3472 = vmatpush.msra.mxu0 0.0
        %3473 = vmatpush.msra.mxu0 0.0
        %3474 = vmatpush.msra.mxu0 0.0
        %3475 = vmatpush.msra.mxu0 0.0
        %3476 = vmatpush.msra.mxu0 0.0
        %3477 = vmatpush.msra.mxu0 0.0
        %3478 = vmatpush.msra.mxu0 0.0
        %3479 = vmatpush.msra.mxu0 0.0
        %3480 = vmatpush.msra.mxu0 0.0
        %3481 = vmatpush.msra.mxu0 0.0
        %3482 = vmatpush.msra.mxu0 0.0
        %3483 = vmatpush.msra.mxu0 0.0
        %3484 = vmatpush.msra.mxu0 0.0
        %3485 = vmatpush.msra.mxu0 0.0
        %3486 = vmatpush.msra.mxu0 %v3148
        %3487 = vmatmul.f32.gmra.mxu0 %v3093
        %v3488 = vpop.f32.mrf.mxu0
        %v3489 = vadd.f32 0.0, %v3488
        %3490 = vmatmul.f32.gmra.mxu0 %v3096
        %v3491 = vpop.f32.mrf.mxu0
        %v3492 = vadd.f32 0.0, %v3491
        %3493 = vmatmul.f32.gmra.mxu0 %v3099
        %v3494 = vpop.f32.mrf.mxu0
        %v3495 = vadd.f32 0.0, %v3494
        %3496 = vmatmul.f32.gmra.mxu0 %v3102
        %v3497 = vpop.f32.mrf.mxu0
        %v3498 = vadd.f32 0.0, %v3497
        %3499 = vmatmul.f32.gmra.mxu0 %v3105
        %v3500 = vpop.f32.mrf.mxu0
        %v3501 = vadd.f32 0.0, %v3500
        %3502 = vmatmul.f32.gmra.mxu0 %v3108
        %v3503 = vpop.f32.mrf.mxu0
        %v3504 = vadd.f32 0.0, %v3503
        %3505 = vmatmul.f32.gmra.mxu0 %v3111
        %v3506 = vpop.f32.mrf.mxu0
        %v3507 = vadd.f32 0.0, %v3506
        %3508 = vmatmul.f32.gmra.mxu0 %v3114
        %v3509 = vpop.f32.mrf.mxu0
        %v3510 = vadd.f32 0.0, %v3509
        %3511 = vmatmul.f32.gmra.mxu0 %v3117
        %v3512 = vpop.f32.mrf.mxu0
        %v3513 = vadd.f32 0.0, %v3512
        %3514 = vmatmul.f32.gmra.mxu0 %v3120
        %v3515 = vpop.f32.mrf.mxu0
        %v3516 = vadd.f32 0.0, %v3515
        %3517 = vmatmul.f32.gmra.mxu0 %v3123
        %v3518 = vpop.f32.mrf.mxu0
        %v3519 = vadd.f32 0.0, %v3518
        %3520 = vmatmul.f32.gmra.mxu0 %v3126
        %v3521 = vpop.f32.mrf.mxu0
        %v3522 = vadd.f32 0.0, %v3521
        %3523 = vdwg.mxu0
        %3524 = vmatpush.msra.mxu0 0.0
        %3525 = vmatpush.msra.mxu0 0.0
        %3526 = vmatpush.msra.mxu0 0.0
        %3527 = vmatpush.msra.mxu0 0.0
        %3528 = vmatpush.msra.mxu0 0.0
        %3529 = vmatpush.msra.mxu0 0.0
        %3530 = vmatpush.msra.mxu0 0.0
        %3531 = vmatpush.msra.mxu0 0.0
        %3532 = vmatpush.msra.mxu0 0.0
        %3533 = vmatpush.msra.mxu0 0.0
        %3534 = vmatpush.msra.mxu0 0.0
        %3535 = vmatpush.msra.mxu0 0.0
        %3536 = vmatpush.msra.mxu0 0.0
        %3537 = vmatpush.msra.mxu0 0.0
        %3538 = vmatpush.msra.mxu0 0.0
        %3539 = vmatpush.msra.mxu0 %v3151
        %3540 = vmatmul.f32.gmra.mxu0 %v3093
        %v3541 = vpop.f32.mrf.mxu0
        %v3542 = vadd.f32 0.0, %v3541
        %3543 = vmatmul.f32.gmra.mxu0 %v3096
        %v3544 = vpop.f32.mrf.mxu0
        %v3545 = vadd.f32 0.0, %v3544
        %3546 = vmatmul.f32.gmra.mxu0 %v3099
        %v3547 = vpop.f32.mrf.mxu0
        %v3548 = vadd.f32 0.0, %v3547
        %3549 = vmatmul.f32.gmra.mxu0 %v3102
        %v3550 = vpop.f32.mrf.mxu0
        %v3551 = vadd.f32 0.0, %v3550
        %3552 = vmatmul.f32.gmra.mxu0 %v3105
        %v3553 = vpop.f32.mrf.mxu0
        %v3554 = vadd.f32 0.0, %v3553
        %3555 = vmatmul.f32.gmra.mxu0 %v3108
        %v3556 = vpop.f32.mrf.mxu0
        %v3557 = vadd.f32 0.0, %v3556
        %3558 = vmatmul.f32.gmra.mxu0 %v3111
        %v3559 = vpop.f32.mrf.mxu0
        %v3560 = vadd.f32 0.0, %v3559
        %3561 = vmatmul.f32.gmra.mxu0 %v3114
        %v3562 = vpop.f32.mrf.mxu0
        %v3563 = vadd.f32 0.0, %v3562
        %3564 = vmatmul.f32.gmra.mxu0 %v3117
        %v3565 = vpop.f32.mrf.mxu0
        %v3566 = vadd.f32 0.0, %v3565
        %3567 = vmatmul.f32.gmra.mxu0 %v3120
        %v3568 = vpop.f32.mrf.mxu0
        %v3569 = vadd.f32 0.0, %v3568
        %3570 = vmatmul.f32.gmra.mxu0 %v3123
        %v3571 = vpop.f32.mrf.mxu0
        %v3572 = vadd.f32 0.0, %v3571
        %3573 = vmatmul.f32.gmra.mxu0 %v3126
        %v3574 = vpop.f32.mrf.mxu0
        %v3575 = vadd.f32 0.0, %v3574
        %3576 = vdwg.mxu0
        %3577 = vst [vmem:[#allocation1] ss:$2 sm:$0xff] %v390
        %s3578 = scalar_lea.vmem [#allocation1], 16
        %3579 = vst [vmem:[%s3578] ss:$2 sm:$0xff] %v391
        %s3580 = scalar_lea.vmem [#allocation1], 32
        %3581 = vst [vmem:[%s3580] ss:$2 sm:$0xff] %v392
        %s3582 = scalar_lea.vmem [#allocation1], 48
        %3583 = vst [vmem:[%s3582] ss:$2 sm:$0xff] %v393
        %v3584 = vld.sshfl [vmem:[#allocation1] sm:$0xff pattern:$0x75316420]
        %v3585 = vld.sshfl [vmem:[#allocation1 + $0x8] sm:$0xff pattern:$0x75316420]
        %v3586 = vld.sshfl [vmem:[#allocation1 + $0x10] sm:$0xff pattern:$0x75316420]
        %v3587 = vld.sshfl [vmem:[#allocation1 + $0x18] sm:$0xff pattern:$0x75316420]
        %v3588 = vld.sshfl [vmem:[#allocation1 + $0x20] sm:$0xff pattern:$0x75316420]
        %v3589 = vld.sshfl [vmem:[#allocation1 + $0x28] sm:$0xff pattern:$0x75316420]
        %v3590 = vld.sshfl [vmem:[#allocation1 + $0x30] sm:$0xff pattern:$0x75316420]
        %v3591 = vld.sshfl [vmem:[#allocation1 + $0x38] sm:$0xff pattern:$0x75316420]
        %v3593 = vsel %vm414, %v3067, 0
        %v3596 = vsel %vm414, %v3068, 0
        %v3599 = vsel %vm414, %v3069, 0
        %v3602 = vsel %vm414, %v3070, 0
        %v3605 = vsel %vm414, %v3071, 0
        %v3608 = vsel %vm414, %v3072, 0
        %v3611 = vsel %vm414, %v3073, 0
        %v3614 = vsel %vm414, %v3074, 0
        %v3617 = vsel %vm414, %v3075, 0
        %v3620 = vsel %vm414, %v3076, 0
        %v3623 = vsel %vm414, %v3077, 0
        %v3626 = vsel %vm414, %v3078, 0
        %v3628 = vsel %vm418, %v3584, 0
        %v3630 = vsel %vm418, %v3585, 0
        %v3632 = vsel %vm418, %v3586, 0
        %v3634 = vsel %vm418, %v3587, 0
        %v3636 = vsel %vm418, %v3588, 0
        %v3638 = vsel %vm418, %v3589, 0
        %v3640 = vsel %vm418, %v3590, 0
        %v3642 = vsel %vm418, %v3591, 0
        %3644 = vmatpush.msra.mxu0 0.0
        %3645 = vmatpush.msra.mxu0 0.0
        %3646 = vmatpush.msra.mxu0 0.0
        %3647 = vmatpush.msra.mxu0 0.0
        %3648 = vmatpush.msra.mxu0 0.0
        %3649 = vmatpush.msra.mxu0 0.0
        %3650 = vmatpush.msra.mxu0 0.0
        %3651 = vmatpush.msra.mxu0 0.0
        %3652 = vmatpush.msra.mxu0 0.0
        %3653 = vmatpush.msra.mxu0 0.0
        %3654 = vmatpush.msra.mxu0 0.0
        %3655 = vmatpush.msra.mxu0 0.0
        %3656 = vmatpush.msra.mxu0 0.0
        %3657 = vmatpush.msra.mxu0 0.0
        %3658 = vmatpush.msra.mxu0 0.0
        %3659 = vmatpush.msra.mxu0 %v3628
        %3660 = vmatmul.f32.gmra.mxu0 %v3593
        %v3661 = vpop.f32.mrf.mxu0
        %v3662 = vadd.f32 %v3171, %v3661
        %3663 = vmatmul.f32.gmra.mxu0 %v3596
        %v3664 = vpop.f32.mrf.mxu0
        %v3665 = vadd.f32 %v3174, %v3664
        %3666 = vmatmul.f32.gmra.mxu0 %v3599
        %v3667 = vpop.f32.mrf.mxu0
        %v3668 = vadd.f32 %v3177, %v3667
        %3669 = vmatmul.f32.gmra.mxu0 %v3602
        %v3670 = vpop.f32.mrf.mxu0
        %v3671 = vadd.f32 %v3180, %v3670
        %3672 = vmatmul.f32.gmra.mxu0 %v3605
        %v3673 = vpop.f32.mrf.mxu0
        %v3674 = vadd.f32 %v3183, %v3673
        %3675 = vmatmul.f32.gmra.mxu0 %v3608
        %v3676 = vpop.f32.mrf.mxu0
        %v3677 = vadd.f32 %v3186, %v3676
        %3678 = vmatmul.f32.gmra.mxu0 %v3611
        %v3679 = vpop.f32.mrf.mxu0
        %v3680 = vadd.f32 %v3189, %v3679
        %3681 = vmatmul.f32.gmra.mxu0 %v3614
        %v3682 = vpop.f32.mrf.mxu0
        %v3683 = vadd.f32 %v3192, %v3682
        %3684 = vmatmul.f32.gmra.mxu0 %v3617
        %v3685 = vpop.f32.mrf.mxu0
        %v3686 = vadd.f32 %v3195, %v3685
        %3687 = vmatmul.f32.gmra.mxu0 %v3620
        %v3688 = vpop.f32.mrf.mxu0
        %v3689 = vadd.f32 %v3198, %v3688
        %3690 = vmatmul.f32.gmra.mxu0 %v3623
        %v3691 = vpop.f32.mrf.mxu0
        %v3692 = vadd.f32 %v3201, %v3691
        %3693 = vmatmul.f32.gmra.mxu0 %v3626
        %v3694 = vpop.f32.mrf.mxu0
        %v3695 = vadd.f32 %v3204, %v3694
        %3696 = vdwg.mxu0
        %3697 = vmatpush.msra.mxu0 0.0
        %3698 = vmatpush.msra.mxu0 0.0
        %3699 = vmatpush.msra.mxu0 0.0
        %3700 = vmatpush.msra.mxu0 0.0
        %3701 = vmatpush.msra.mxu0 0.0
        %3702 = vmatpush.msra.mxu0 0.0
        %3703 = vmatpush.msra.mxu0 0.0
        %3704 = vmatpush.msra.mxu0 0.0
        %3705 = vmatpush.msra.mxu0 0.0
        %3706 = vmatpush.msra.mxu0 0.0
        %3707 = vmatpush.msra.mxu0 0.0
        %3708 = vmatpush.msra.mxu0 0.0
        %3709 = vmatpush.msra.mxu0 0.0
        %3710 = vmatpush.msra.mxu0 0.0
        %3711 = vmatpush.msra.mxu0 0.0
        %3712 = vmatpush.msra.mxu0 %v3630
        %3713 = vmatmul.f32.gmra.mxu0 %v3593
        %v3714 = vpop.f32.mrf.mxu0
        %v3715 = vadd.f32 %v3224, %v3714
        %3716 = vmatmul.f32.gmra.mxu0 %v3596
        %v3717 = vpop.f32.mrf.mxu0
        %v3718 = vadd.f32 %v3227, %v3717
        %3719 = vmatmul.f32.gmra.mxu0 %v3599
        %v3720 = vpop.f32.mrf.mxu0
        %v3721 = vadd.f32 %v3230, %v3720
        %3722 = vmatmul.f32.gmra.mxu0 %v3602
        %v3723 = vpop.f32.mrf.mxu0
        %v3724 = vadd.f32 %v3233, %v3723
        %3725 = vmatmul.f32.gmra.mxu0 %v3605
        %v3726 = vpop.f32.mrf.mxu0
        %v3727 = vadd.f32 %v3236, %v3726
        %3728 = vmatmul.f32.gmra.mxu0 %v3608
        %v3729 = vpop.f32.mrf.mxu0
        %v3730 = vadd.f32 %v3239, %v3729
        %3731 = vmatmul.f32.gmra.mxu0 %v3611
        %v3732 = vpop.f32.mrf.mxu0
        %v3733 = vadd.f32 %v3242, %v3732
        %3734 = vmatmul.f32.gmra.mxu0 %v3614
        %v3735 = vpop.f32.mrf.mxu0
        %v3736 = vadd.f32 %v3245, %v3735
        %3737 = vmatmul.f32.gmra.mxu0 %v3617
        %v3738 = vpop.f32.mrf.mxu0
        %v3739 = vadd.f32 %v3248, %v3738
        %3740 = vmatmul.f32.gmra.mxu0 %v3620
        %v3741 = vpop.f32.mrf.mxu0
        %v3742 = vadd.f32 %v3251, %v3741
        %3743 = vmatmul.f32.gmra.mxu0 %v3623
        %v3744 = vpop.f32.mrf.mxu0
        %v3745 = vadd.f32 %v3254, %v3744
        %3746 = vmatmul.f32.gmra.mxu0 %v3626
        %v3747 = vpop.f32.mrf.mxu0
        %v3748 = vadd.f32 %v3257, %v3747
        %3749 = vdwg.mxu0
        %3750 = vmatpush.msra.mxu0 0.0
        %3751 = vmatpush.msra.mxu0 0.0
        %3752 = vmatpush.msra.mxu0 0.0
        %3753 = vmatpush.msra.mxu0 0.0
        %3754 = vmatpush.msra.mxu0 0.0
        %3755 = vmatpush.msra.mxu0 0.0
        %3756 = vmatpush.msra.mxu0 0.0
        %3757 = vmatpush.msra.mxu0 0.0
        %3758 = vmatpush.msra.mxu0 0.0
        %3759 = vmatpush.msra.mxu0 0.0
        %3760 = vmatpush.msra.mxu0 0.0
        %3761 = vmatpush.msra.mxu0 0.0
        %3762 = vmatpush.msra.mxu0 0.0
        %3763 = vmatpush.msra.mxu0 0.0
        %3764 = vmatpush.msra.mxu0 0.0
        %3765 = vmatpush.msra.mxu0 %v3632
        %3766 = vmatmul.f32.gmra.mxu0 %v3593
        %v3767 = vpop.f32.mrf.mxu0
        %v3768 = vadd.f32 %v3277, %v3767
        %3769 = vmatmul.f32.gmra.mxu0 %v3596
        %v3770 = vpop.f32.mrf.mxu0
        %v3771 = vadd.f32 %v3280, %v3770
        %3772 = vmatmul.f32.gmra.mxu0 %v3599
        %v3773 = vpop.f32.mrf.mxu0
        %v3774 = vadd.f32 %v3283, %v3773
        %3775 = vmatmul.f32.gmra.mxu0 %v3602
        %v3776 = vpop.f32.mrf.mxu0
        %v3777 = vadd.f32 %v3286, %v3776
        %3778 = vmatmul.f32.gmra.mxu0 %v3605
        %v3779 = vpop.f32.mrf.mxu0
        %v3780 = vadd.f32 %v3289, %v3779
        %3781 = vmatmul.f32.gmra.mxu0 %v3608
        %v3782 = vpop.f32.mrf.mxu0
        %v3783 = vadd.f32 %v3292, %v3782
        %3784 = vmatmul.f32.gmra.mxu0 %v3611
        %v3785 = vpop.f32.mrf.mxu0
        %v3786 = vadd.f32 %v3295, %v3785
        %3787 = vmatmul.f32.gmra.mxu0 %v3614
        %v3788 = vpop.f32.mrf.mxu0
        %v3789 = vadd.f32 %v3298, %v3788
        %3790 = vmatmul.f32.gmra.mxu0 %v3617
        %v3791 = vpop.f32.mrf.mxu0
        %v3792 = vadd.f32 %v3301, %v3791
        %3793 = vmatmul.f32.gmra.mxu0 %v3620
        %v3794 = vpop.f32.mrf.mxu0
        %v3795 = vadd.f32 %v3304, %v3794
        %3796 = vmatmul.f32.gmra.mxu0 %v3623
        %v3797 = vpop.f32.mrf.mxu0
        %v3798 = vadd.f32 %v3307, %v3797
        %3799 = vmatmul.f32.gmra.mxu0 %v3626
        %v3800 = vpop.f32.mrf.mxu0
        %v3801 = vadd.f32 %v3310, %v3800
        %3802 = vdwg.mxu0
        %3803 = vmatpush.msra.mxu0 0.0
        %3804 = vmatpush.msra.mxu0 0.0
        %3805 = vmatpush.msra.mxu0 0.0
        %3806 = vmatpush.msra.mxu0 0.0
        %3807 = vmatpush.msra.mxu0 0.0
        %3808 = vmatpush.msra.mxu0 0.0
        %3809 = vmatpush.msra.mxu0 0.0
        %3810 = vmatpush.msra.mxu0 0.0
        %3811 = vmatpush.msra.mxu0 0.0
        %3812 = vmatpush.msra.mxu0 0.0
        %3813 = vmatpush.msra.mxu0 0.0
        %3814 = vmatpush.msra.mxu0 0.0
        %3815 = vmatpush.msra.mxu0 0.0
        %3816 = vmatpush.msra.mxu0 0.0
        %3817 = vmatpush.msra.mxu0 0.0
        %3818 = vmatpush.msra.mxu0 %v3634
        %3819 = vmatmul.f32.gmra.mxu0 %v3593
        %v3820 = vpop.f32.mrf.mxu0
        %v3821 = vadd.f32 %v3330, %v3820
        %3822 = vmatmul.f32.gmra.mxu0 %v3596
        %v3823 = vpop.f32.mrf.mxu0
        %v3824 = vadd.f32 %v3333, %v3823
        %3825 = vmatmul.f32.gmra.mxu0 %v3599
        %v3826 = vpop.f32.mrf.mxu0
        %v3827 = vadd.f32 %v3336, %v3826
        %3828 = vmatmul.f32.gmra.mxu0 %v3602
        %v3829 = vpop.f32.mrf.mxu0
        %v3830 = vadd.f32 %v3339, %v3829
        %3831 = vmatmul.f32.gmra.mxu0 %v3605
        %v3832 = vpop.f32.mrf.mxu0
        %v3833 = vadd.f32 %v3342, %v3832
        %3834 = vmatmul.f32.gmra.mxu0 %v3608
        %v3835 = vpop.f32.mrf.mxu0
        %v3836 = vadd.f32 %v3345, %v3835
        %3837 = vmatmul.f32.gmra.mxu0 %v3611
        %v3838 = vpop.f32.mrf.mxu0
        %v3839 = vadd.f32 %v3348, %v3838
        %3840 = vmatmul.f32.gmra.mxu0 %v3614
        %v3841 = vpop.f32.mrf.mxu0
        %v3842 = vadd.f32 %v3351, %v3841
        %3843 = vmatmul.f32.gmra.mxu0 %v3617
        %v3844 = vpop.f32.mrf.mxu0
        %v3845 = vadd.f32 %v3354, %v3844
        %3846 = vmatmul.f32.gmra.mxu0 %v3620
        %v3847 = vpop.f32.mrf.mxu0
        %v3848 = vadd.f32 %v3357, %v3847
        %3849 = vmatmul.f32.gmra.mxu0 %v3623
        %v3850 = vpop.f32.mrf.mxu0
        %v3851 = vadd.f32 %v3360, %v3850
        %3852 = vmatmul.f32.gmra.mxu0 %v3626
        %v3853 = vpop.f32.mrf.mxu0
        %v3854 = vadd.f32 %v3363, %v3853
        %3855 = vdwg.mxu0
        %3856 = vmatpush.msra.mxu0 0.0
        %3857 = vmatpush.msra.mxu0 0.0
        %3858 = vmatpush.msra.mxu0 0.0
        %3859 = vmatpush.msra.mxu0 0.0
        %3860 = vmatpush.msra.mxu0 0.0
        %3861 = vmatpush.msra.mxu0 0.0
        %3862 = vmatpush.msra.mxu0 0.0
        %3863 = vmatpush.msra.mxu0 0.0
        %3864 = vmatpush.msra.mxu0 0.0
        %3865 = vmatpush.msra.mxu0 0.0
        %3866 = vmatpush.msra.mxu0 0.0
        %3867 = vmatpush.msra.mxu0 0.0
        %3868 = vmatpush.msra.mxu0 0.0
        %3869 = vmatpush.msra.mxu0 0.0
        %3870 = vmatpush.msra.mxu0 0.0
        %3871 = vmatpush.msra.mxu0 %v3636
        %3872 = vmatmul.f32.gmra.mxu0 %v3593
        %v3873 = vpop.f32.mrf.mxu0
        %v3874 = vadd.f32 %v3383, %v3873
        %3875 = vmatmul.f32.gmra.mxu0 %v3596
        %v3876 = vpop.f32.mrf.mxu0
        %v3877 = vadd.f32 %v3386, %v3876
        %3878 = vmatmul.f32.gmra.mxu0 %v3599
        %v3879 = vpop.f32.mrf.mxu0
        %v3880 = vadd.f32 %v3389, %v3879
        %3881 = vmatmul.f32.gmra.mxu0 %v3602
        %v3882 = vpop.f32.mrf.mxu0
        %v3883 = vadd.f32 %v3392, %v3882
        %3884 = vmatmul.f32.gmra.mxu0 %v3605
        %v3885 = vpop.f32.mrf.mxu0
        %v3886 = vadd.f32 %v3395, %v3885
        %3887 = vmatmul.f32.gmra.mxu0 %v3608
        %v3888 = vpop.f32.mrf.mxu0
        %v3889 = vadd.f32 %v3398, %v3888
        %3890 = vmatmul.f32.gmra.mxu0 %v3611
        %v3891 = vpop.f32.mrf.mxu0
        %v3892 = vadd.f32 %v3401, %v3891
        %3893 = vmatmul.f32.gmra.mxu0 %v3614
        %v3894 = vpop.f32.mrf.mxu0
        %v3895 = vadd.f32 %v3404, %v3894
        %3896 = vmatmul.f32.gmra.mxu0 %v3617
        %v3897 = vpop.f32.mrf.mxu0
        %v3898 = vadd.f32 %v3407, %v3897
        %3899 = vmatmul.f32.gmra.mxu0 %v3620
        %v3900 = vpop.f32.mrf.mxu0
        %v3901 = vadd.f32 %v3410, %v3900
        %3902 = vmatmul.f32.gmra.mxu0 %v3623
        %v3903 = vpop.f32.mrf.mxu0
        %v3904 = vadd.f32 %v3413, %v3903
        %3905 = vmatmul.f32.gmra.mxu0 %v3626
        %v3906 = vpop.f32.mrf.mxu0
        %v3907 = vadd.f32 %v3416, %v3906
        %3908 = vdwg.mxu0
        %3909 = vmatpush.msra.mxu0 0.0
        %3910 = vmatpush.msra.mxu0 0.0
        %3911 = vmatpush.msra.mxu0 0.0
        %3912 = vmatpush.msra.mxu0 0.0
        %3913 = vmatpush.msra.mxu0 0.0
        %3914 = vmatpush.msra.mxu0 0.0
        %3915 = vmatpush.msra.mxu0 0.0
        %3916 = vmatpush.msra.mxu0 0.0
        %3917 = vmatpush.msra.mxu0 0.0
        %3918 = vmatpush.msra.mxu0 0.0
        %3919 = vmatpush.msra.mxu0 0.0
        %3920 = vmatpush.msra.mxu0 0.0
        %3921 = vmatpush.msra.mxu0 0.0
        %3922 = vmatpush.msra.mxu0 0.0
        %3923 = vmatpush.msra.mxu0 0.0
        %3924 = vmatpush.msra.mxu0 %v3638
        %3925 = vmatmul.f32.gmra.mxu0 %v3593
        %v3926 = vpop.f32.mrf.mxu0
        %v3927 = vadd.f32 %v3436, %v3926
        %3928 = vmatmul.f32.gmra.mxu0 %v3596
        %v3929 = vpop.f32.mrf.mxu0
        %v3930 = vadd.f32 %v3439, %v3929
        %3931 = vmatmul.f32.gmra.mxu0 %v3599
        %v3932 = vpop.f32.mrf.mxu0
        %v3933 = vadd.f32 %v3442, %v3932
        %3934 = vmatmul.f32.gmra.mxu0 %v3602
        %v3935 = vpop.f32.mrf.mxu0
        %v3936 = vadd.f32 %v3445, %v3935
        %3937 = vmatmul.f32.gmra.mxu0 %v3605
        %v3938 = vpop.f32.mrf.mxu0
        %v3939 = vadd.f32 %v3448, %v3938
        %3940 = vmatmul.f32.gmra.mxu0 %v3608
        %v3941 = vpop.f32.mrf.mxu0
        %v3942 = vadd.f32 %v3451, %v3941
        %3943 = vmatmul.f32.gmra.mxu0 %v3611
        %v3944 = vpop.f32.mrf.mxu0
        %v3945 = vadd.f32 %v3454, %v3944
        %3946 = vmatmul.f32.gmra.mxu0 %v3614
        %v3947 = vpop.f32.mrf.mxu0
        %v3948 = vadd.f32 %v3457, %v3947
        %3949 = vmatmul.f32.gmra.mxu0 %v3617
        %v3950 = vpop.f32.mrf.mxu0
        %v3951 = vadd.f32 %v3460, %v3950
        %3952 = vmatmul.f32.gmra.mxu0 %v3620
        %v3953 = vpop.f32.mrf.mxu0
        %v3954 = vadd.f32 %v3463, %v3953
        %3955 = vmatmul.f32.gmra.mxu0 %v3623
        %v3956 = vpop.f32.mrf.mxu0
        %v3957 = vadd.f32 %v3466, %v3956
        %3958 = vmatmul.f32.gmra.mxu0 %v3626
        %v3959 = vpop.f32.mrf.mxu0
        %v3960 = vadd.f32 %v3469, %v3959
        %3961 = vdwg.mxu0
        %3962 = vmatpush.msra.mxu0 0.0
        %3963 = vmatpush.msra.mxu0 0.0
        %3964 = vmatpush.msra.mxu0 0.0
        %3965 = vmatpush.msra.mxu0 0.0
        %3966 = vmatpush.msra.mxu0 0.0
        %3967 = vmatpush.msra.mxu0 0.0
        %3968 = vmatpush.msra.mxu0 0.0
        %3969 = vmatpush.msra.mxu0 0.0
        %3970 = vmatpush.msra.mxu0 0.0
        %3971 = vmatpush.msra.mxu0 0.0
        %3972 = vmatpush.msra.mxu0 0.0
        %3973 = vmatpush.msra.mxu0 0.0
        %3974 = vmatpush.msra.mxu0 0.0
        %3975 = vmatpush.msra.mxu0 0.0
        %3976 = vmatpush.msra.mxu0 0.0
        %3977 = vmatpush.msra.mxu0 %v3640
        %3978 = vmatmul.f32.gmra.mxu0 %v3593
        %v3979 = vpop.f32.mrf.mxu0
        %v3980 = vadd.f32 %v3489, %v3979
        %3981 = vmatmul.f32.gmra.mxu0 %v3596
        %v3982 = vpop.f32.mrf.mxu0
        %v3983 = vadd.f32 %v3492, %v3982
        %3984 = vmatmul.f32.gmra.mxu0 %v3599
        %v3985 = vpop.f32.mrf.mxu0
        %v3986 = vadd.f32 %v3495, %v3985
        %3987 = vmatmul.f32.gmra.mxu0 %v3602
        %v3988 = vpop.f32.mrf.mxu0
        %v3989 = vadd.f32 %v3498, %v3988
        %3990 = vmatmul.f32.gmra.mxu0 %v3605
        %v3991 = vpop.f32.mrf.mxu0
        %v3992 = vadd.f32 %v3501, %v3991
        %3993 = vmatmul.f32.gmra.mxu0 %v3608
        %v3994 = vpop.f32.mrf.mxu0
        %v3995 = vadd.f32 %v3504, %v3994
        %3996 = vmatmul.f32.gmra.mxu0 %v3611
        %v3997 = vpop.f32.mrf.mxu0
        %v3998 = vadd.f32 %v3507, %v3997
        %3999 = vmatmul.f32.gmra.mxu0 %v3614
        %v4000 = vpop.f32.mrf.mxu0
        %v4001 = vadd.f32 %v3510, %v4000
        %4002 = vmatmul.f32.gmra.mxu0 %v3617
        %v4003 = vpop.f32.mrf.mxu0
        %v4004 = vadd.f32 %v3513, %v4003
        %4005 = vmatmul.f32.gmra.mxu0 %v3620
        %v4006 = vpop.f32.mrf.mxu0
        %v4007 = vadd.f32 %v3516, %v4006
        %4008 = vmatmul.f32.gmra.mxu0 %v3623
        %v4009 = vpop.f32.mrf.mxu0
        %v4010 = vadd.f32 %v3519, %v4009
        %4011 = vmatmul.f32.gmra.mxu0 %v3626
        %v4012 = vpop.f32.mrf.mxu0
        %v4013 = vadd.f32 %v3522, %v4012
        %4014 = vdwg.mxu0
        %4015 = vmatpush.msra.mxu0 0.0
        %4016 = vmatpush.msra.mxu0 0.0
        %4017 = vmatpush.msra.mxu0 0.0
        %4018 = vmatpush.msra.mxu0 0.0
        %4019 = vmatpush.msra.mxu0 0.0
        %4020 = vmatpush.msra.mxu0 0.0
        %4021 = vmatpush.msra.mxu0 0.0
        %4022 = vmatpush.msra.mxu0 0.0
        %4023 = vmatpush.msra.mxu0 0.0
        %4024 = vmatpush.msra.mxu0 0.0
        %4025 = vmatpush.msra.mxu0 0.0
        %4026 = vmatpush.msra.mxu0 0.0
        %4027 = vmatpush.msra.mxu0 0.0
        %4028 = vmatpush.msra.mxu0 0.0
        %4029 = vmatpush.msra.mxu0 0.0
        %4030 = vmatpush.msra.mxu0 %v3642
        %4031 = vmatmul.f32.gmra.mxu0 %v3593
        %v4032 = vpop.f32.mrf.mxu0
        %v4033 = vadd.f32 %v3542, %v4032
        %4034 = vmatmul.f32.gmra.mxu0 %v3596
        %v4035 = vpop.f32.mrf.mxu0
        %v4036 = vadd.f32 %v3545, %v4035
        %4037 = vmatmul.f32.gmra.mxu0 %v3599
        %v4038 = vpop.f32.mrf.mxu0
        %v4039 = vadd.f32 %v3548, %v4038
        %4040 = vmatmul.f32.gmra.mxu0 %v3602
        %v4041 = vpop.f32.mrf.mxu0
        %v4042 = vadd.f32 %v3551, %v4041
        %4043 = vmatmul.f32.gmra.mxu0 %v3605
        %v4044 = vpop.f32.mrf.mxu0
        %v4045 = vadd.f32 %v3554, %v4044
        %4046 = vmatmul.f32.gmra.mxu0 %v3608
        %v4047 = vpop.f32.mrf.mxu0
        %v4048 = vadd.f32 %v3557, %v4047
        %4049 = vmatmul.f32.gmra.mxu0 %v3611
        %v4050 = vpop.f32.mrf.mxu0
        %v4051 = vadd.f32 %v3560, %v4050
        %4052 = vmatmul.f32.gmra.mxu0 %v3614
        %v4053 = vpop.f32.mrf.mxu0
        %v4054 = vadd.f32 %v3563, %v4053
        %4055 = vmatmul.f32.gmra.mxu0 %v3617
        %v4056 = vpop.f32.mrf.mxu0
        %v4057 = vadd.f32 %v3566, %v4056
        %4058 = vmatmul.f32.gmra.mxu0 %v3620
        %v4059 = vpop.f32.mrf.mxu0
        %v4060 = vadd.f32 %v3569, %v4059
        %4061 = vmatmul.f32.gmra.mxu0 %v3623
        %v4062 = vpop.f32.mrf.mxu0
        %v4063 = vadd.f32 %v3572, %v4062
        %4064 = vmatmul.f32.gmra.mxu0 %v3626
        %v4065 = vpop.f32.mrf.mxu0
        %v4066 = vadd.f32 %v3575, %v4065
        %4067 = vdwg.mxu0
        %v4068 = vld [vmem:[%s4] sm:$0xff]
        %v4069 = vld [vmem:[%s4 + $0x8] sm:$0xff]
        %v4070 = vld [vmem:[%s4 + $0x10] sm:$0xff]
        %v4071 = vld [vmem:[%s4 + $0x18] sm:$0xff]
        %v4072 = vld [vmem:[%s4 + $0x20] sm:$0xff]
        %v4073 = vld [vmem:[%s4 + $0x28] sm:$0xff]
        %v4074 = vld [vmem:[%s4 + $0x30] sm:$0xff]
        %v4075 = vld [vmem:[%s4 + $0x38] sm:$0xff]
        %v4076 = vld [vmem:[%s4 + $0x40] sm:$0xff]
        %v4077 = vld [vmem:[%s4 + $0x48] sm:$0xff]
        %v4078 = vld [vmem:[%s4 + $0x50] sm:$0xff]
        %v4079 = vld [vmem:[%s4 + $0x58] sm:$0xff]
        %v4081 = vsel %vm3091, %v4068, 0
        %v4084 = vsel %vm3091, %v4069, 0
        %v4087 = vsel %vm3091, %v4070, 0
        %v4090 = vsel %vm3091, %v4071, 0
        %v4093 = vsel %vm3091, %v4072, 0
        %v4096 = vsel %vm3091, %v4073, 0
        %v4099 = vsel %vm3091, %v4074, 0
        %v4102 = vsel %vm3091, %v4075, 0
        %v4105 = vsel %vm3091, %v4076, 0
        %v4108 = vsel %vm3091, %v4077, 0
        %v4111 = vsel %vm3091, %v4078, 0
        %v4114 = vsel %vm3091, %v4079, 0
        %v4117 = vsel %vm3128, %v1981, 0
        %v4120 = vsel %vm3128, %v2136, 0
        %v4123 = vsel %vm3128, %v2291, 0
        %v4126 = vsel %vm3128, %v2446, 0
        %v4129 = vsel %vm3128, %v2601, 0
        %v4132 = vsel %vm3128, %v2756, 0
        %v4135 = vsel %vm3128, %v2911, 0
        %v4138 = vsel %vm3128, %v3066, 0
        %4140 = vmatpush.msra.mxu0 0.0
        %4141 = vmatpush.msra.mxu0 0.0
        %4142 = vmatpush.msra.mxu0 0.0
        %4143 = vmatpush.msra.mxu0 0.0
        %4144 = vmatpush.msra.mxu0 0.0
        %4145 = vmatpush.msra.mxu0 0.0
        %4146 = vmatpush.msra.mxu0 0.0
        %4147 = vmatpush.msra.mxu0 0.0
        %4148 = vmatpush.msra.mxu0 0.0
        %4149 = vmatpush.msra.mxu0 0.0
        %4150 = vmatpush.msra.mxu0 0.0
        %4151 = vmatpush.msra.mxu0 0.0
        %4152 = vmatpush.msra.mxu0 0.0
        %4153 = vmatpush.msra.mxu0 0.0
        %4154 = vmatpush.msra.mxu0 0.0
        %4155 = vmatpush.msra.mxu0 %v4117
        %4156 = vmatmul.f32.gmra.mxu0 %v4081
        %v4157 = vpop.f32.mrf.mxu0
        %v4158 = vadd.f32 0.0, %v4157
        %4159 = vmatmul.f32.gmra.mxu0 %v4084
        %v4160 = vpop.f32.mrf.mxu0
        %v4161 = vadd.f32 0.0, %v4160
        %4162 = vmatmul.f32.gmra.mxu0 %v4087
        %v4163 = vpop.f32.mrf.mxu0
        %v4164 = vadd.f32 0.0, %v4163
        %4165 = vmatmul.f32.gmra.mxu0 %v4090
        %v4166 = vpop.f32.mrf.mxu0
        %v4167 = vadd.f32 0.0, %v4166
        %4168 = vmatmul.f32.gmra.mxu0 %v4093
        %v4169 = vpop.f32.mrf.mxu0
        %v4170 = vadd.f32 0.0, %v4169
        %4171 = vmatmul.f32.gmra.mxu0 %v4096
        %v4172 = vpop.f32.mrf.mxu0
        %v4173 = vadd.f32 0.0, %v4172
        %4174 = vmatmul.f32.gmra.mxu0 %v4099
        %v4175 = vpop.f32.mrf.mxu0
        %v4176 = vadd.f32 0.0, %v4175
        %4177 = vmatmul.f32.gmra.mxu0 %v4102
        %v4178 = vpop.f32.mrf.mxu0
        %v4179 = vadd.f32 0.0, %v4178
        %4180 = vmatmul.f32.gmra.mxu0 %v4105
        %v4181 = vpop.f32.mrf.mxu0
        %v4182 = vadd.f32 0.0, %v4181
        %4183 = vmatmul.f32.gmra.mxu0 %v4108
        %v4184 = vpop.f32.mrf.mxu0
        %v4185 = vadd.f32 0.0, %v4184
        %4186 = vmatmul.f32.gmra.mxu0 %v4111
        %v4187 = vpop.f32.mrf.mxu0
        %v4188 = vadd.f32 0.0, %v4187
        %4189 = vmatmul.f32.gmra.mxu0 %v4114
        %v4190 = vpop.f32.mrf.mxu0
        %v4191 = vadd.f32 0.0, %v4190
        %4192 = vdwg.mxu0
        %4193 = vmatpush.msra.mxu0 0.0
        %4194 = vmatpush.msra.mxu0 0.0
        %4195 = vmatpush.msra.mxu0 0.0
        %4196 = vmatpush.msra.mxu0 0.0
        %4197 = vmatpush.msra.mxu0 0.0
        %4198 = vmatpush.msra.mxu0 0.0
        %4199 = vmatpush.msra.mxu0 0.0
        %4200 = vmatpush.msra.mxu0 0.0
        %4201 = vmatpush.msra.mxu0 0.0
        %4202 = vmatpush.msra.mxu0 0.0
        %4203 = vmatpush.msra.mxu0 0.0
        %4204 = vmatpush.msra.mxu0 0.0
        %4205 = vmatpush.msra.mxu0 0.0
        %4206 = vmatpush.msra.mxu0 0.0
        %4207 = vmatpush.msra.mxu0 0.0
        %4208 = vmatpush.msra.mxu0 %v4120
        %4209 = vmatmul.f32.gmra.mxu0 %v4081
        %v4210 = vpop.f32.mrf.mxu0
        %v4211 = vadd.f32 0.0, %v4210
        %4212 = vmatmul.f32.gmra.mxu0 %v4084
        %v4213 = vpop.f32.mrf.mxu0
        %v4214 = vadd.f32 0.0, %v4213
        %4215 = vmatmul.f32.gmra.mxu0 %v4087
        %v4216 = vpop.f32.mrf.mxu0
        %v4217 = vadd.f32 0.0, %v4216
        %4218 = vmatmul.f32.gmra.mxu0 %v4090
        %v4219 = vpop.f32.mrf.mxu0
        %v4220 = vadd.f32 0.0, %v4219
        %4221 = vmatmul.f32.gmra.mxu0 %v4093
        %v4222 = vpop.f32.mrf.mxu0
        %v4223 = vadd.f32 0.0, %v4222
        %4224 = vmatmul.f32.gmra.mxu0 %v4096
        %v4225 = vpop.f32.mrf.mxu0
        %v4226 = vadd.f32 0.0, %v4225
        %4227 = vmatmul.f32.gmra.mxu0 %v4099
        %v4228 = vpop.f32.mrf.mxu0
        %v4229 = vadd.f32 0.0, %v4228
        %4230 = vmatmul.f32.gmra.mxu0 %v4102
        %v4231 = vpop.f32.mrf.mxu0
        %v4232 = vadd.f32 0.0, %v4231
        %4233 = vmatmul.f32.gmra.mxu0 %v4105
        %v4234 = vpop.f32.mrf.mxu0
        %v4235 = vadd.f32 0.0, %v4234
        %4236 = vmatmul.f32.gmra.mxu0 %v4108
        %v4237 = vpop.f32.mrf.mxu0
        %v4238 = vadd.f32 0.0, %v4237
        %4239 = vmatmul.f32.gmra.mxu0 %v4111
        %v4240 = vpop.f32.mrf.mxu0
        %v4241 = vadd.f32 0.0, %v4240
        %4242 = vmatmul.f32.gmra.mxu0 %v4114
        %v4243 = vpop.f32.mrf.mxu0
        %v4244 = vadd.f32 0.0, %v4243
        %4245 = vdwg.mxu0
        %4246 = vmatpush.msra.mxu0 0.0
        %4247 = vmatpush.msra.mxu0 0.0
        %4248 = vmatpush.msra.mxu0 0.0
        %4249 = vmatpush.msra.mxu0 0.0
        %4250 = vmatpush.msra.mxu0 0.0
        %4251 = vmatpush.msra.mxu0 0.0
        %4252 = vmatpush.msra.mxu0 0.0
        %4253 = vmatpush.msra.mxu0 0.0
        %4254 = vmatpush.msra.mxu0 0.0
        %4255 = vmatpush.msra.mxu0 0.0
        %4256 = vmatpush.msra.mxu0 0.0
        %4257 = vmatpush.msra.mxu0 0.0
        %4258 = vmatpush.msra.mxu0 0.0
        %4259 = vmatpush.msra.mxu0 0.0
        %4260 = vmatpush.msra.mxu0 0.0
        %4261 = vmatpush.msra.mxu0 %v4123
        %4262 = vmatmul.f32.gmra.mxu0 %v4081
        %v4263 = vpop.f32.mrf.mxu0
        %v4264 = vadd.f32 0.0, %v4263
        %4265 = vmatmul.f32.gmra.mxu0 %v4084
        %v4266 = vpop.f32.mrf.mxu0
        %v4267 = vadd.f32 0.0, %v4266
        %4268 = vmatmul.f32.gmra.mxu0 %v4087
        %v4269 = vpop.f32.mrf.mxu0
        %v4270 = vadd.f32 0.0, %v4269
        %4271 = vmatmul.f32.gmra.mxu0 %v4090
        %v4272 = vpop.f32.mrf.mxu0
        %v4273 = vadd.f32 0.0, %v4272
        %4274 = vmatmul.f32.gmra.mxu0 %v4093
        %v4275 = vpop.f32.mrf.mxu0
        %v4276 = vadd.f32 0.0, %v4275
        %4277 = vmatmul.f32.gmra.mxu0 %v4096
        %v4278 = vpop.f32.mrf.mxu0
        %v4279 = vadd.f32 0.0, %v4278
        %4280 = vmatmul.f32.gmra.mxu0 %v4099
        %v4281 = vpop.f32.mrf.mxu0
        %v4282 = vadd.f32 0.0, %v4281
        %4283 = vmatmul.f32.gmra.mxu0 %v4102
        %v4284 = vpop.f32.mrf.mxu0
        %v4285 = vadd.f32 0.0, %v4284
        %4286 = vmatmul.f32.gmra.mxu0 %v4105
        %v4287 = vpop.f32.mrf.mxu0
        %v4288 = vadd.f32 0.0, %v4287
        %4289 = vmatmul.f32.gmra.mxu0 %v4108
        %v4290 = vpop.f32.mrf.mxu0
        %v4291 = vadd.f32 0.0, %v4290
        %4292 = vmatmul.f32.gmra.mxu0 %v4111
        %v4293 = vpop.f32.mrf.mxu0
        %v4294 = vadd.f32 0.0, %v4293
        %4295 = vmatmul.f32.gmra.mxu0 %v4114
        %v4296 = vpop.f32.mrf.mxu0
        %v4297 = vadd.f32 0.0, %v4296
        %4298 = vdwg.mxu0
        %4299 = vmatpush.msra.mxu0 0.0
        %4300 = vmatpush.msra.mxu0 0.0
        %4301 = vmatpush.msra.mxu0 0.0
        %4302 = vmatpush.msra.mxu0 0.0
        %4303 = vmatpush.msra.mxu0 0.0
        %4304 = vmatpush.msra.mxu0 0.0
        %4305 = vmatpush.msra.mxu0 0.0
        %4306 = vmatpush.msra.mxu0 0.0
        %4307 = vmatpush.msra.mxu0 0.0
        %4308 = vmatpush.msra.mxu0 0.0
        %4309 = vmatpush.msra.mxu0 0.0
        %4310 = vmatpush.msra.mxu0 0.0
        %4311 = vmatpush.msra.mxu0 0.0
        %4312 = vmatpush.msra.mxu0 0.0
        %4313 = vmatpush.msra.mxu0 0.0
        %4314 = vmatpush.msra.mxu0 %v4126
        %4315 = vmatmul.f32.gmra.mxu0 %v4081
        %v4316 = vpop.f32.mrf.mxu0
        %v4317 = vadd.f32 0.0, %v4316
        %4318 = vmatmul.f32.gmra.mxu0 %v4084
        %v4319 = vpop.f32.mrf.mxu0
        %v4320 = vadd.f32 0.0, %v4319
        %4321 = vmatmul.f32.gmra.mxu0 %v4087
        %v4322 = vpop.f32.mrf.mxu0
        %v4323 = vadd.f32 0.0, %v4322
        %4324 = vmatmul.f32.gmra.mxu0 %v4090
        %v4325 = vpop.f32.mrf.mxu0
        %v4326 = vadd.f32 0.0, %v4325
        %4327 = vmatmul.f32.gmra.mxu0 %v4093
        %v4328 = vpop.f32.mrf.mxu0
        %v4329 = vadd.f32 0.0, %v4328
        %4330 = vmatmul.f32.gmra.mxu0 %v4096
        %v4331 = vpop.f32.mrf.mxu0
        %v4332 = vadd.f32 0.0, %v4331
        %4333 = vmatmul.f32.gmra.mxu0 %v4099
        %v4334 = vpop.f32.mrf.mxu0
        %v4335 = vadd.f32 0.0, %v4334
        %4336 = vmatmul.f32.gmra.mxu0 %v4102
        %v4337 = vpop.f32.mrf.mxu0
        %v4338 = vadd.f32 0.0, %v4337
        %4339 = vmatmul.f32.gmra.mxu0 %v4105
        %v4340 = vpop.f32.mrf.mxu0
        %v4341 = vadd.f32 0.0, %v4340
        %4342 = vmatmul.f32.gmra.mxu0 %v4108
        %v4343 = vpop.f32.mrf.mxu0
        %v4344 = vadd.f32 0.0, %v4343
        %4345 = vmatmul.f32.gmra.mxu0 %v4111
        %v4346 = vpop.f32.mrf.mxu0
        %v4347 = vadd.f32 0.0, %v4346
        %4348 = vmatmul.f32.gmra.mxu0 %v4114
        %v4349 = vpop.f32.mrf.mxu0
        %v4350 = vadd.f32 0.0, %v4349
        %4351 = vdwg.mxu0
        %4352 = vmatpush.msra.mxu0 0.0
        %4353 = vmatpush.msra.mxu0 0.0
        %4354 = vmatpush.msra.mxu0 0.0
        %4355 = vmatpush.msra.mxu0 0.0
        %4356 = vmatpush.msra.mxu0 0.0
        %4357 = vmatpush.msra.mxu0 0.0
        %4358 = vmatpush.msra.mxu0 0.0
        %4359 = vmatpush.msra.mxu0 0.0
        %4360 = vmatpush.msra.mxu0 0.0
        %4361 = vmatpush.msra.mxu0 0.0
        %4362 = vmatpush.msra.mxu0 0.0
        %4363 = vmatpush.msra.mxu0 0.0
        %4364 = vmatpush.msra.mxu0 0.0
        %4365 = vmatpush.msra.mxu0 0.0
        %4366 = vmatpush.msra.mxu0 0.0
        %4367 = vmatpush.msra.mxu0 %v4129
        %4368 = vmatmul.f32.gmra.mxu0 %v4081
        %v4369 = vpop.f32.mrf.mxu0
        %v4370 = vadd.f32 0.0, %v4369
        %4371 = vmatmul.f32.gmra.mxu0 %v4084
        %v4372 = vpop.f32.mrf.mxu0
        %v4373 = vadd.f32 0.0, %v4372
        %4374 = vmatmul.f32.gmra.mxu0 %v4087
        %v4375 = vpop.f32.mrf.mxu0
        %v4376 = vadd.f32 0.0, %v4375
        %4377 = vmatmul.f32.gmra.mxu0 %v4090
        %v4378 = vpop.f32.mrf.mxu0
        %v4379 = vadd.f32 0.0, %v4378
        %4380 = vmatmul.f32.gmra.mxu0 %v4093
        %v4381 = vpop.f32.mrf.mxu0
        %v4382 = vadd.f32 0.0, %v4381
        %4383 = vmatmul.f32.gmra.mxu0 %v4096
        %v4384 = vpop.f32.mrf.mxu0
        %v4385 = vadd.f32 0.0, %v4384
        %4386 = vmatmul.f32.gmra.mxu0 %v4099
        %v4387 = vpop.f32.mrf.mxu0
        %v4388 = vadd.f32 0.0, %v4387
        %4389 = vmatmul.f32.gmra.mxu0 %v4102
        %v4390 = vpop.f32.mrf.mxu0
        %v4391 = vadd.f32 0.0, %v4390
        %4392 = vmatmul.f32.gmra.mxu0 %v4105
        %v4393 = vpop.f32.mrf.mxu0
        %v4394 = vadd.f32 0.0, %v4393
        %4395 = vmatmul.f32.gmra.mxu0 %v4108
        %v4396 = vpop.f32.mrf.mxu0
        %v4397 = vadd.f32 0.0, %v4396
        %4398 = vmatmul.f32.gmra.mxu0 %v4111
        %v4399 = vpop.f32.mrf.mxu0
        %v4400 = vadd.f32 0.0, %v4399
        %4401 = vmatmul.f32.gmra.mxu0 %v4114
        %v4402 = vpop.f32.mrf.mxu0
        %v4403 = vadd.f32 0.0, %v4402
        %4404 = vdwg.mxu0
        %4405 = vmatpush.msra.mxu0 0.0
        %4406 = vmatpush.msra.mxu0 0.0
        %4407 = vmatpush.msra.mxu0 0.0
        %4408 = vmatpush.msra.mxu0 0.0
        %4409 = vmatpush.msra.mxu0 0.0
        %4410 = vmatpush.msra.mxu0 0.0
        %4411 = vmatpush.msra.mxu0 0.0
        %4412 = vmatpush.msra.mxu0 0.0
        %4413 = vmatpush.msra.mxu0 0.0
        %4414 = vmatpush.msra.mxu0 0.0
        %4415 = vmatpush.msra.mxu0 0.0
        %4416 = vmatpush.msra.mxu0 0.0
        %4417 = vmatpush.msra.mxu0 0.0
        %4418 = vmatpush.msra.mxu0 0.0
        %4419 = vmatpush.msra.mxu0 0.0
        %4420 = vmatpush.msra.mxu0 %v4132
        %4421 = vmatmul.f32.gmra.mxu0 %v4081
        %v4422 = vpop.f32.mrf.mxu0
        %v4423 = vadd.f32 0.0, %v4422
        %4424 = vmatmul.f32.gmra.mxu0 %v4084
        %v4425 = vpop.f32.mrf.mxu0
        %v4426 = vadd.f32 0.0, %v4425
        %4427 = vmatmul.f32.gmra.mxu0 %v4087
        %v4428 = vpop.f32.mrf.mxu0
        %v4429 = vadd.f32 0.0, %v4428
        %4430 = vmatmul.f32.gmra.mxu0 %v4090
        %v4431 = vpop.f32.mrf.mxu0
        %v4432 = vadd.f32 0.0, %v4431
        %4433 = vmatmul.f32.gmra.mxu0 %v4093
        %v4434 = vpop.f32.mrf.mxu0
        %v4435 = vadd.f32 0.0, %v4434
        %4436 = vmatmul.f32.gmra.mxu0 %v4096
        %v4437 = vpop.f32.mrf.mxu0
        %v4438 = vadd.f32 0.0, %v4437
        %4439 = vmatmul.f32.gmra.mxu0 %v4099
        %v4440 = vpop.f32.mrf.mxu0
        %v4441 = vadd.f32 0.0, %v4440
        %4442 = vmatmul.f32.gmra.mxu0 %v4102
        %v4443 = vpop.f32.mrf.mxu0
        %v4444 = vadd.f32 0.0, %v4443
        %4445 = vmatmul.f32.gmra.mxu0 %v4105
        %v4446 = vpop.f32.mrf.mxu0
        %v4447 = vadd.f32 0.0, %v4446
        %4448 = vmatmul.f32.gmra.mxu0 %v4108
        %v4449 = vpop.f32.mrf.mxu0
        %v4450 = vadd.f32 0.0, %v4449
        %4451 = vmatmul.f32.gmra.mxu0 %v4111
        %v4452 = vpop.f32.mrf.mxu0
        %v4453 = vadd.f32 0.0, %v4452
        %4454 = vmatmul.f32.gmra.mxu0 %v4114
        %v4455 = vpop.f32.mrf.mxu0
        %v4456 = vadd.f32 0.0, %v4455
        %4457 = vdwg.mxu0
        %4458 = vmatpush.msra.mxu0 0.0
        %4459 = vmatpush.msra.mxu0 0.0
        %4460 = vmatpush.msra.mxu0 0.0
        %4461 = vmatpush.msra.mxu0 0.0
        %4462 = vmatpush.msra.mxu0 0.0
        %4463 = vmatpush.msra.mxu0 0.0
        %4464 = vmatpush.msra.mxu0 0.0
        %4465 = vmatpush.msra.mxu0 0.0
        %4466 = vmatpush.msra.mxu0 0.0
        %4467 = vmatpush.msra.mxu0 0.0
        %4468 = vmatpush.msra.mxu0 0.0
        %4469 = vmatpush.msra.mxu0 0.0
        %4470 = vmatpush.msra.mxu0 0.0
        %4471 = vmatpush.msra.mxu0 0.0
        %4472 = vmatpush.msra.mxu0 0.0
        %4473 = vmatpush.msra.mxu0 %v4135
        %4474 = vmatmul.f32.gmra.mxu0 %v4081
        %v4475 = vpop.f32.mrf.mxu0
        %v4476 = vadd.f32 0.0, %v4475
        %4477 = vmatmul.f32.gmra.mxu0 %v4084
        %v4478 = vpop.f32.mrf.mxu0
        %v4479 = vadd.f32 0.0, %v4478
        %4480 = vmatmul.f32.gmra.mxu0 %v4087
        %v4481 = vpop.f32.mrf.mxu0
        %v4482 = vadd.f32 0.0, %v4481
        %4483 = vmatmul.f32.gmra.mxu0 %v4090
        %v4484 = vpop.f32.mrf.mxu0
        %v4485 = vadd.f32 0.0, %v4484
        %4486 = vmatmul.f32.gmra.mxu0 %v4093
        %v4487 = vpop.f32.mrf.mxu0
        %v4488 = vadd.f32 0.0, %v4487
        %4489 = vmatmul.f32.gmra.mxu0 %v4096
        %v4490 = vpop.f32.mrf.mxu0
        %v4491 = vadd.f32 0.0, %v4490
        %4492 = vmatmul.f32.gmra.mxu0 %v4099
        %v4493 = vpop.f32.mrf.mxu0
        %v4494 = vadd.f32 0.0, %v4493
        %4495 = vmatmul.f32.gmra.mxu0 %v4102
        %v4496 = vpop.f32.mrf.mxu0
        %v4497 = vadd.f32 0.0, %v4496
        %4498 = vmatmul.f32.gmra.mxu0 %v4105
        %v4499 = vpop.f32.mrf.mxu0
        %v4500 = vadd.f32 0.0, %v4499
        %4501 = vmatmul.f32.gmra.mxu0 %v4108
        %v4502 = vpop.f32.mrf.mxu0
        %v4503 = vadd.f32 0.0, %v4502
        %4504 = vmatmul.f32.gmra.mxu0 %v4111
        %v4505 = vpop.f32.mrf.mxu0
        %v4506 = vadd.f32 0.0, %v4505
        %4507 = vmatmul.f32.gmra.mxu0 %v4114
        %v4508 = vpop.f32.mrf.mxu0
        %v4509 = vadd.f32 0.0, %v4508
        %4510 = vdwg.mxu0
        %4511 = vmatpush.msra.mxu0 0.0
        %4512 = vmatpush.msra.mxu0 0.0
        %4513 = vmatpush.msra.mxu0 0.0
        %4514 = vmatpush.msra.mxu0 0.0
        %4515 = vmatpush.msra.mxu0 0.0
        %4516 = vmatpush.msra.mxu0 0.0
        %4517 = vmatpush.msra.mxu0 0.0
        %4518 = vmatpush.msra.mxu0 0.0
        %4519 = vmatpush.msra.mxu0 0.0
        %4520 = vmatpush.msra.mxu0 0.0
        %4521 = vmatpush.msra.mxu0 0.0
        %4522 = vmatpush.msra.mxu0 0.0
        %4523 = vmatpush.msra.mxu0 0.0
        %4524 = vmatpush.msra.mxu0 0.0
        %4525 = vmatpush.msra.mxu0 0.0
        %4526 = vmatpush.msra.mxu0 %v4138
        %4527 = vmatmul.f32.gmra.mxu0 %v4081
        %v4528 = vpop.f32.mrf.mxu0
        %v4529 = vadd.f32 0.0, %v4528
        %4530 = vmatmul.f32.gmra.mxu0 %v4084
        %v4531 = vpop.f32.mrf.mxu0
        %v4532 = vadd.f32 0.0, %v4531
        %4533 = vmatmul.f32.gmra.mxu0 %v4087
        %v4534 = vpop.f32.mrf.mxu0
        %v4535 = vadd.f32 0.0, %v4534
        %4536 = vmatmul.f32.gmra.mxu0 %v4090
        %v4537 = vpop.f32.mrf.mxu0
        %v4538 = vadd.f32 0.0, %v4537
        %4539 = vmatmul.f32.gmra.mxu0 %v4093
        %v4540 = vpop.f32.mrf.mxu0
        %v4541 = vadd.f32 0.0, %v4540
        %4542 = vmatmul.f32.gmra.mxu0 %v4096
        %v4543 = vpop.f32.mrf.mxu0
        %v4544 = vadd.f32 0.0, %v4543
        %4545 = vmatmul.f32.gmra.mxu0 %v4099
        %v4546 = vpop.f32.mrf.mxu0
        %v4547 = vadd.f32 0.0, %v4546
        %4548 = vmatmul.f32.gmra.mxu0 %v4102
        %v4549 = vpop.f32.mrf.mxu0
        %v4550 = vadd.f32 0.0, %v4549
        %4551 = vmatmul.f32.gmra.mxu0 %v4105
        %v4552 = vpop.f32.mrf.mxu0
        %v4553 = vadd.f32 0.0, %v4552
        %4554 = vmatmul.f32.gmra.mxu0 %v4108
        %v4555 = vpop.f32.mrf.mxu0
        %v4556 = vadd.f32 0.0, %v4555
        %4557 = vmatmul.f32.gmra.mxu0 %v4111
        %v4558 = vpop.f32.mrf.mxu0
        %v4559 = vadd.f32 0.0, %v4558
        %4560 = vmatmul.f32.gmra.mxu0 %v4114
        %v4561 = vpop.f32.mrf.mxu0
        %v4562 = vadd.f32 0.0, %v4561
        %4563 = vdwg.mxu0
        %v4564 = vadd.f32 %v3662, %v4158
        %v4565 = vadd.f32 %v3715, %v4211
        %v4566 = vadd.f32 %v3768, %v4264
        %v4567 = vadd.f32 %v3821, %v4317
        %v4568 = vadd.f32 %v3874, %v4370
        %v4569 = vadd.f32 %v3927, %v4423
        %v4570 = vadd.f32 %v3980, %v4476
        %v4571 = vadd.f32 %v4033, %v4529
        %v4572 = vadd.f32 %v3665, %v4161
        %v4573 = vadd.f32 %v3718, %v4214
        %v4574 = vadd.f32 %v3771, %v4267
        %v4575 = vadd.f32 %v3824, %v4320
        %v4576 = vadd.f32 %v3877, %v4373
        %v4577 = vadd.f32 %v3930, %v4426
        %v4578 = vadd.f32 %v3983, %v4479
        %v4579 = vadd.f32 %v4036, %v4532
        %v4580 = vadd.f32 %v3668, %v4164
        %v4581 = vadd.f32 %v3721, %v4217
        %v4582 = vadd.f32 %v3774, %v4270
        %v4583 = vadd.f32 %v3827, %v4323
        %v4584 = vadd.f32 %v3880, %v4376
        %v4585 = vadd.f32 %v3933, %v4429
        %v4586 = vadd.f32 %v3986, %v4482
        %v4587 = vadd.f32 %v4039, %v4535
        %v4588 = vadd.f32 %v3671, %v4167
        %v4589 = vadd.f32 %v3724, %v4220
        %v4590 = vadd.f32 %v3777, %v4273
        %v4591 = vadd.f32 %v3830, %v4326
        %v4592 = vadd.f32 %v3883, %v4379
        %v4593 = vadd.f32 %v3936, %v4432
        %v4594 = vadd.f32 %v3989, %v4485
        %v4595 = vadd.f32 %v4042, %v4538
        %v4596 = vadd.f32 %v3674, %v4170
        %v4597 = vadd.f32 %v3727, %v4223
        %v4598 = vadd.f32 %v3780, %v4276
        %v4599 = vadd.f32 %v3833, %v4329
        %v4600 = vadd.f32 %v3886, %v4382
        %v4601 = vadd.f32 %v3939, %v4435
        %v4602 = vadd.f32 %v3992, %v4488
        %v4603 = vadd.f32 %v4045, %v4541
        %v4604 = vadd.f32 %v3677, %v4173
        %v4605 = vadd.f32 %v3730, %v4226
        %v4606 = vadd.f32 %v3783, %v4279
        %v4607 = vadd.f32 %v3836, %v4332
        %v4608 = vadd.f32 %v3889, %v4385
        %v4609 = vadd.f32 %v3942, %v4438
        %v4610 = vadd.f32 %v3995, %v4491
        %v4611 = vadd.f32 %v4048, %v4544
        %v4612 = vadd.f32 %v3680, %v4176
        %v4613 = vadd.f32 %v3733, %v4229
        %v4614 = vadd.f32 %v3786, %v4282
        %v4615 = vadd.f32 %v3839, %v4335
        %v4616 = vadd.f32 %v3892, %v4388
        %v4617 = vadd.f32 %v3945, %v4441
        %v4618 = vadd.f32 %v3998, %v4494
        %v4619 = vadd.f32 %v4051, %v4547
        %v4620 = vadd.f32 %v3683, %v4179
        %v4621 = vadd.f32 %v3736, %v4232
        %v4622 = vadd.f32 %v3789, %v4285
        %v4623 = vadd.f32 %v3842, %v4338
        %v4624 = vadd.f32 %v3895, %v4391
        %v4625 = vadd.f32 %v3948, %v4444
        %v4626 = vadd.f32 %v4001, %v4497
        %v4627 = vadd.f32 %v4054, %v4550
        %v4628 = vadd.f32 %v3686, %v4182
        %v4629 = vadd.f32 %v3739, %v4235
        %v4630 = vadd.f32 %v3792, %v4288
        %v4631 = vadd.f32 %v3845, %v4341
        %v4632 = vadd.f32 %v3898, %v4394
        %v4633 = vadd.f32 %v3951, %v4447
        %v4634 = vadd.f32 %v4004, %v4500
        %v4635 = vadd.f32 %v4057, %v4553
        %v4636 = vadd.f32 %v3689, %v4185
        %v4637 = vadd.f32 %v3742, %v4238
        %v4638 = vadd.f32 %v3795, %v4291
        %v4639 = vadd.f32 %v3848, %v4344
        %v4640 = vadd.f32 %v3901, %v4397
        %v4641 = vadd.f32 %v3954, %v4450
        %v4642 = vadd.f32 %v4007, %v4503
        %v4643 = vadd.f32 %v4060, %v4556
        %v4644 = vadd.f32 %v3692, %v4188
        %v4645 = vadd.f32 %v3745, %v4241
        %v4646 = vadd.f32 %v3798, %v4294
        %v4647 = vadd.f32 %v3851, %v4347
        %v4648 = vadd.f32 %v3904, %v4400
        %v4649 = vadd.f32 %v3957, %v4453
        %v4650 = vadd.f32 %v4010, %v4506
        %v4651 = vadd.f32 %v4063, %v4559
        %v4652 = vadd.f32 %v3695, %v4191
        %v4653 = vadd.f32 %v3748, %v4244
        %v4654 = vadd.f32 %v3801, %v4297
        %v4655 = vadd.f32 %v3854, %v4350
        %v4656 = vadd.f32 %v3907, %v4403
        %v4657 = vadd.f32 %v3960, %v4456
        %v4658 = vadd.f32 %v4013, %v4509
        %v4659 = vadd.f32 %v4066, %v4562
        %v4660 = vtanh.pop %v4564
        %v4661 = vtanh.pop %v4565
        %v4662 = vtanh.pop %v4566
        %v4663 = vtanh.pop %v4567
        %v4664 = vtanh.pop %v4568
        %v4665 = vtanh.pop %v4569
        %v4666 = vtanh.pop %v4570
        %v4667 = vtanh.pop %v4571
        %v4668 = vtanh.pop %v4572
        %v4669 = vtanh.pop %v4573
        %v4670 = vtanh.pop %v4574
        %v4671 = vtanh.pop %v4575
        %v4672 = vtanh.pop %v4576
        %v4673 = vtanh.pop %v4577
        %v4674 = vtanh.pop %v4578
        %v4675 = vtanh.pop %v4579
        %v4676 = vtanh.pop %v4580
        %v4677 = vtanh.pop %v4581
        %v4678 = vtanh.pop %v4582
        %v4679 = vtanh.pop %v4583
        %v4680 = vtanh.pop %v4584
        %v4681 = vtanh.pop %v4585
        %v4682 = vtanh.pop %v4586
        %v4683 = vtanh.pop %v4587
        %v4684 = vtanh.pop %v4588
        %v4685 = vtanh.pop %v4589
        %v4686 = vtanh.pop %v4590
        %v4687 = vtanh.pop %v4591
        %v4688 = vtanh.pop %v4592
        %v4689 = vtanh.pop %v4593
        %v4690 = vtanh.pop %v4594
        %v4691 = vtanh.pop %v4595
        %v4692 = vtanh.pop %v4596
        %v4693 = vtanh.pop %v4597
        %v4694 = vtanh.pop %v4598
        %v4695 = vtanh.pop %v4599
        %v4696 = vtanh.pop %v4600
        %v4697 = vtanh.pop %v4601
        %v4698 = vtanh.pop %v4602
        %v4699 = vtanh.pop %v4603
        %v4700 = vtanh.pop %v4604
        %v4701 = vtanh.pop %v4605
        %v4702 = vtanh.pop %v4606
        %v4703 = vtanh.pop %v4607
        %v4704 = vtanh.pop %v4608
        %v4705 = vtanh.pop %v4609
        %v4706 = vtanh.pop %v4610
        %v4707 = vtanh.pop %v4611
        %v4708 = vtanh.pop %v4612
        %v4709 = vtanh.pop %v4613
        %v4710 = vtanh.pop %v4614
        %v4711 = vtanh.pop %v4615
        %v4712 = vtanh.pop %v4616
        %v4713 = vtanh.pop %v4617
        %v4714 = vtanh.pop %v4618
        %v4715 = vtanh.pop %v4619
        %v4716 = vtanh.pop %v4620
        %v4717 = vtanh.pop %v4621
        %v4718 = vtanh.pop %v4622
        %v4719 = vtanh.pop %v4623
        %v4720 = vtanh.pop %v4624
        %v4721 = vtanh.pop %v4625
        %v4722 = vtanh.pop %v4626
        %v4723 = vtanh.pop %v4627
        %v4724 = vtanh.pop %v4628
        %v4725 = vtanh.pop %v4629
        %v4726 = vtanh.pop %v4630
        %v4727 = vtanh.pop %v4631
        %v4728 = vtanh.pop %v4632
        %v4729 = vtanh.pop %v4633
        %v4730 = vtanh.pop %v4634
        %v4731 = vtanh.pop %v4635
        %v4732 = vtanh.pop %v4636
        %v4733 = vtanh.pop %v4637
        %v4734 = vtanh.pop %v4638
        %v4735 = vtanh.pop %v4639
        %v4736 = vtanh.pop %v4640
        %v4737 = vtanh.pop %v4641
        %v4738 = vtanh.pop %v4642
        %v4739 = vtanh.pop %v4643
        %v4740 = vtanh.pop %v4644
        %v4741 = vtanh.pop %v4645
        %v4742 = vtanh.pop %v4646
        %v4743 = vtanh.pop %v4647
        %v4744 = vtanh.pop %v4648
        %v4745 = vtanh.pop %v4649
        %v4746 = vtanh.pop %v4650
        %v4747 = vtanh.pop %v4651
        %v4748 = vtanh.pop %v4652
        %v4749 = vtanh.pop %v4653
        %v4750 = vtanh.pop %v4654
        %v4751 = vtanh.pop %v4655
        %v4752 = vtanh.pop %v4656
        %v4753 = vtanh.pop %v4657
        %v4754 = vtanh.pop %v4658
        %v4755 = vtanh.pop %v4659
        %v4756 = vsub.f32 %v4692, %v4660
        %v4757 = vsub.f32 %v4693, %v4661
        %v4758 = vsub.f32 %v4694, %v4662
        %v4759 = vsub.f32 %v4695, %v4663
        %v4760 = vsub.f32 %v4696, %v4664
        %v4761 = vsub.f32 %v4697, %v4665
        %v4762 = vsub.f32 %v4698, %v4666
        %v4763 = vsub.f32 %v4699, %v4667
        %v4764 = vsub.f32 %v4700, %v4668
        %v4765 = vsub.f32 %v4701, %v4669
        %v4766 = vsub.f32 %v4702, %v4670
        %v4767 = vsub.f32 %v4703, %v4671
        %v4768 = vsub.f32 %v4704, %v4672
        %v4769 = vsub.f32 %v4705, %v4673
        %v4770 = vsub.f32 %v4706, %v4674
        %v4771 = vsub.f32 %v4707, %v4675
        %v4772 = vsub.f32 %v4708, %v4676
        %v4773 = vsub.f32 %v4709, %v4677
        %v4774 = vsub.f32 %v4710, %v4678
        %v4775 = vsub.f32 %v4711, %v4679
        %v4776 = vsub.f32 %v4712, %v4680
        %v4777 = vsub.f32 %v4713, %v4681
        %v4778 = vsub.f32 %v4714, %v4682
        %v4779 = vsub.f32 %v4715, %v4683
        %v4780 = vsub.f32 %v4716, %v4684
        %v4781 = vsub.f32 %v4717, %v4685
        %v4782 = vsub.f32 %v4718, %v4686
        %v4783 = vsub.f32 %v4719, %v4687
        %v4784 = vsub.f32 %v4720, %v4688
        %v4785 = vsub.f32 %v4721, %v4689
        %v4786 = vsub.f32 %v4722, %v4690
        %v4787 = vsub.f32 %v4723, %v4691
        %v4788 = vmul.f32 %v4724, %v4756
        %v4789 = vmul.f32 %v4725, %v4757
        %v4790 = vmul.f32 %v4726, %v4758
        %v4791 = vmul.f32 %v4727, %v4759
        %v4792 = vmul.f32 %v4728, %v4760
        %v4793 = vmul.f32 %v4729, %v4761
        %v4794 = vmul.f32 %v4730, %v4762
        %v4795 = vmul.f32 %v4731, %v4763
        %v4796 = vmul.f32 %v4732, %v4764
        %v4797 = vmul.f32 %v4733, %v4765
        %v4798 = vmul.f32 %v4734, %v4766
        %v4799 = vmul.f32 %v4735, %v4767
        %v4800 = vmul.f32 %v4736, %v4768
        %v4801 = vmul.f32 %v4737, %v4769
        %v4802 = vmul.f32 %v4738, %v4770
        %v4803 = vmul.f32 %v4739, %v4771
        %v4804 = vmul.f32 %v4740, %v4772
        %v4805 = vmul.f32 %v4741, %v4773
        %v4806 = vmul.f32 %v4742, %v4774
        %v4807 = vmul.f32 %v4743, %v4775
        %v4808 = vmul.f32 %v4744, %v4776
        %v4809 = vmul.f32 %v4745, %v4777
        %v4810 = vmul.f32 %v4746, %v4778
        %v4811 = vmul.f32 %v4747, %v4779
        %v4812 = vmul.f32 %v4748, %v4780
        %v4813 = vmul.f32 %v4749, %v4781
        %v4814 = vmul.f32 %v4750, %v4782
        %v4815 = vmul.f32 %v4751, %v4783
        %v4816 = vmul.f32 %v4752, %v4784
        %v4817 = vmul.f32 %v4753, %v4785
        %v4818 = vmul.f32 %v4754, %v4786
        %v4819 = vmul.f32 %v4755, %v4787
        %v4820 = vadd.f32 %v4660, %v4788
        %v4821 = vadd.f32 %v4661, %v4789
        %v4822 = vadd.f32 %v4662, %v4790
        %v4823 = vadd.f32 %v4663, %v4791
        %v4824 = vadd.f32 %v4664, %v4792
        %v4825 = vadd.f32 %v4665, %v4793
        %v4826 = vadd.f32 %v4666, %v4794
        %v4827 = vadd.f32 %v4667, %v4795
        %v4828 = vadd.f32 %v4668, %v4796
        %v4829 = vadd.f32 %v4669, %v4797
        %v4830 = vadd.f32 %v4670, %v4798
        %v4831 = vadd.f32 %v4671, %v4799
        %v4832 = vadd.f32 %v4672, %v4800
        %v4833 = vadd.f32 %v4673, %v4801
        %v4834 = vadd.f32 %v4674, %v4802
        %v4835 = vadd.f32 %v4675, %v4803
        %v4836 = vadd.f32 %v4676, %v4804
        %v4837 = vadd.f32 %v4677, %v4805
        %v4838 = vadd.f32 %v4678, %v4806
        %v4839 = vadd.f32 %v4679, %v4807
        %v4840 = vadd.f32 %v4680, %v4808
        %v4841 = vadd.f32 %v4681, %v4809
        %v4842 = vadd.f32 %v4682, %v4810
        %v4843 = vadd.f32 %v4683, %v4811
        %v4844 = vadd.f32 %v4684, %v4812
        %v4845 = vadd.f32 %v4685, %v4813
        %v4846 = vadd.f32 %v4686, %v4814
        %v4847 = vadd.f32 %v4687, %v4815
        %v4848 = vadd.f32 %v4688, %v4816
        %v4849 = vadd.f32 %v4689, %v4817
        %v4850 = vadd.f32 %v4690, %v4818
        %v4851 = vadd.f32 %v4691, %v4819
        %v4852 = vld [vmem:[%s5] sm:$0xff]
        %v4853 = vld [vmem:[%s5 + $0x8] sm:$0xff]
        %v4854 = vld [vmem:[%s5 + $0x10] sm:$0xff]
        %v4855 = vld [vmem:[%s5 + $0x18] sm:$0xff]
        %v4856 = vld [vmem:[%s6] sm:$0xff]
        %v4857 = vld [vmem:[%s6 + $0x8] sm:$0xff]
        %v4858 = vld [vmem:[%s6 + $0x10] sm:$0xff]
        %v4859 = vld [vmem:[%s6 + $0x18] sm:$0xff]
        %4861 = vset.pattern.permute.xlu0 0
        %4862 = vperm.xlu0 %4861, %v4856
        %v4863 = vpop.permute.xlu0 %4862
        %4866 = vset.pattern.permute.xlu0 0
        %4867 = vperm.xlu0 %4866, %v4857
        %v4868 = vpop.permute.xlu0 %4867
        %4871 = vset.pattern.permute.xlu0 0
        %4872 = vperm.xlu0 %4871, %v4858
        %v4873 = vpop.permute.xlu0 %4872
        %4876 = vset.pattern.permute.xlu0 0
        %4877 = vperm.xlu0 %4876, %v4859
        %v4878 = vpop.permute.xlu0 %4877
        %vm4880 = vcmask 261120
        %v4882 = vsel %vm4880, %v4852, 0
        %v4885 = vsel %vm4880, %v4853, 0
        %v4888 = vsel %vm4880, %v4854, 0
        %v4891 = vsel %vm4880, %v4855, 0
        %4893 = vmatpush.msra.mxu0 0.0
        %4894 = vmatpush.msra.mxu0 0.0
        %4895 = vmatpush.msra.mxu0 0.0
        %4896 = vmatpush.msra.mxu0 0.0
        %4897 = vmatpush.msra.mxu0 0.0
        %4898 = vmatpush.msra.mxu0 0.0
        %4899 = vmatpush.msra.mxu0 0.0
        %4900 = vmatpush.msra.mxu0 0.0
        %4901 = vmatpush.msra.mxu0 0.0
        %4902 = vmatpush.msra.mxu0 0.0
        %4903 = vmatpush.msra.mxu0 0.0
        %4904 = vmatpush.msra.mxu0 0.0
        %4905 = vmatpush.msra.mxu0 %v4844
        %4906 = vmatpush.msra.mxu0 %v4836
        %4907 = vmatpush.msra.mxu0 %v4828
        %4908 = vmatpush.msra.mxu0 %v4820
        %4909 = vmatmul.f32.gmra.mxu0 %v4882
        %v4910 = vpop.f32.mrf.mxu0
        %v4911 = vadd.f32 %v4863, %v4910
        %4912 = vmatmul.f32.gmra.mxu0 %v4885
        %v4913 = vpop.f32.mrf.mxu0
        %v4914 = vadd.f32 %v4868, %v4913
        %4915 = vmatmul.f32.gmra.mxu0 %v4888
        %v4916 = vpop.f32.mrf.mxu0
        %v4917 = vadd.f32 %v4873, %v4916
        %4918 = vmatmul.f32.gmra.mxu0 %v4891
        %v4919 = vpop.f32.mrf.mxu0
        %v4920 = vadd.f32 %v4878, %v4919
        %4921 = vdwg.mxu0
        %4922 = vmatpush.msra.mxu0 0.0
        %4923 = vmatpush.msra.mxu0 0.0
        %4924 = vmatpush.msra.mxu0 0.0
        %4925 = vmatpush.msra.mxu0 0.0
        %4926 = vmatpush.msra.mxu0 0.0
        %4927 = vmatpush.msra.mxu0 0.0
        %4928 = vmatpush.msra.mxu0 0.0
        %4929 = vmatpush.msra.mxu0 0.0
        %4930 = vmatpush.msra.mxu0 0.0
        %4931 = vmatpush.msra.mxu0 0.0
        %4932 = vmatpush.msra.mxu0 0.0
        %4933 = vmatpush.msra.mxu0 0.0
        %4934 = vmatpush.msra.mxu0 %v4845
        %4935 = vmatpush.msra.mxu0 %v4837
        %4936 = vmatpush.msra.mxu0 %v4829
        %4937 = vmatpush.msra.mxu0 %v4821
        %4938 = vmatmul.f32.gmra.mxu0 %v4882
        %v4939 = vpop.f32.mrf.mxu0
        %v4940 = vadd.f32 %v4863, %v4939
        %4941 = vmatmul.f32.gmra.mxu0 %v4885
        %v4942 = vpop.f32.mrf.mxu0
        %v4943 = vadd.f32 %v4868, %v4942
        %4944 = vmatmul.f32.gmra.mxu0 %v4888
        %v4945 = vpop.f32.mrf.mxu0
        %v4946 = vadd.f32 %v4873, %v4945
        %4947 = vmatmul.f32.gmra.mxu0 %v4891
        %v4948 = vpop.f32.mrf.mxu0
        %v4949 = vadd.f32 %v4878, %v4948
        %4950 = vdwg.mxu0
        %4951 = vmatpush.msra.mxu0 0.0
        %4952 = vmatpush.msra.mxu0 0.0
        %4953 = vmatpush.msra.mxu0 0.0
        %4954 = vmatpush.msra.mxu0 0.0
        %4955 = vmatpush.msra.mxu0 0.0
        %4956 = vmatpush.msra.mxu0 0.0
        %4957 = vmatpush.msra.mxu0 0.0
        %4958 = vmatpush.msra.mxu0 0.0
        %4959 = vmatpush.msra.mxu0 0.0
        %4960 = vmatpush.msra.mxu0 0.0
        %4961 = vmatpush.msra.mxu0 0.0
        %4962 = vmatpush.msra.mxu0 0.0
        %4963 = vmatpush.msra.mxu0 %v4846
        %4964 = vmatpush.msra.mxu0 %v4838
        %4965 = vmatpush.msra.mxu0 %v4830
        %4966 = vmatpush.msra.mxu0 %v4822
        %4967 = vmatmul.f32.gmra.mxu0 %v4882
        %v4968 = vpop.f32.mrf.mxu0
        %v4969 = vadd.f32 %v4863, %v4968
        %4970 = vmatmul.f32.gmra.mxu0 %v4885
        %v4971 = vpop.f32.mrf.mxu0
        %v4972 = vadd.f32 %v4868, %v4971
        %4973 = vmatmul.f32.gmra.mxu0 %v4888
        %v4974 = vpop.f32.mrf.mxu0
        %v4975 = vadd.f32 %v4873, %v4974
        %4976 = vmatmul.f32.gmra.mxu0 %v4891
        %v4977 = vpop.f32.mrf.mxu0
        %v4978 = vadd.f32 %v4878, %v4977
        %4979 = vdwg.mxu0
        %4980 = vmatpush.msra.mxu0 0.0
        %4981 = vmatpush.msra.mxu0 0.0
        %4982 = vmatpush.msra.mxu0 0.0
        %4983 = vmatpush.msra.mxu0 0.0
        %4984 = vmatpush.msra.mxu0 0.0
        %4985 = vmatpush.msra.mxu0 0.0
        %4986 = vmatpush.msra.mxu0 0.0
        %4987 = vmatpush.msra.mxu0 0.0
        %4988 = vmatpush.msra.mxu0 0.0
        %4989 = vmatpush.msra.mxu0 0.0
        %4990 = vmatpush.msra.mxu0 0.0
        %4991 = vmatpush.msra.mxu0 0.0
        %4992 = vmatpush.msra.mxu0 %v4847
        %4993 = vmatpush.msra.mxu0 %v4839
        %4994 = vmatpush.msra.mxu0 %v4831
        %4995 = vmatpush.msra.mxu0 %v4823
        %4996 = vmatmul.f32.gmra.mxu0 %v4882
        %v4997 = vpop.f32.mrf.mxu0
        %v4998 = vadd.f32 %v4863, %v4997
        %4999 = vmatmul.f32.gmra.mxu0 %v4885
        %v5000 = vpop.f32.mrf.mxu0
        %v5001 = vadd.f32 %v4868, %v5000
        %5002 = vmatmul.f32.gmra.mxu0 %v4888
        %v5003 = vpop.f32.mrf.mxu0
        %v5004 = vadd.f32 %v4873, %v5003
        %5005 = vmatmul.f32.gmra.mxu0 %v4891
        %v5006 = vpop.f32.mrf.mxu0
        %v5007 = vadd.f32 %v4878, %v5006
        %5008 = vdwg.mxu0
        %5009 = vmatpush.msra.mxu0 0.0
        %5010 = vmatpush.msra.mxu0 0.0
        %5011 = vmatpush.msra.mxu0 0.0
        %5012 = vmatpush.msra.mxu0 0.0
        %5013 = vmatpush.msra.mxu0 0.0
        %5014 = vmatpush.msra.mxu0 0.0
        %5015 = vmatpush.msra.mxu0 0.0
        %5016 = vmatpush.msra.mxu0 0.0
        %5017 = vmatpush.msra.mxu0 0.0
        %5018 = vmatpush.msra.mxu0 0.0
        %5019 = vmatpush.msra.mxu0 0.0
        %5020 = vmatpush.msra.mxu0 0.0
        %5021 = vmatpush.msra.mxu0 %v4848
        %5022 = vmatpush.msra.mxu0 %v4840
        %5023 = vmatpush.msra.mxu0 %v4832
        %5024 = vmatpush.msra.mxu0 %v4824
        %5025 = vmatmul.f32.gmra.mxu0 %v4882
        %v5026 = vpop.f32.mrf.mxu0
        %v5027 = vadd.f32 %v4863, %v5026
        %5028 = vmatmul.f32.gmra.mxu0 %v4885
        %v5029 = vpop.f32.mrf.mxu0
        %v5030 = vadd.f32 %v4868, %v5029
        %5031 = vmatmul.f32.gmra.mxu0 %v4888
        %v5032 = vpop.f32.mrf.mxu0
        %v5033 = vadd.f32 %v4873, %v5032
        %5034 = vmatmul.f32.gmra.mxu0 %v4891
        %v5035 = vpop.f32.mrf.mxu0
        %v5036 = vadd.f32 %v4878, %v5035
        %5037 = vdwg.mxu0
        %5038 = vmatpush.msra.mxu0 0.0
        %5039 = vmatpush.msra.mxu0 0.0
        %5040 = vmatpush.msra.mxu0 0.0
        %5041 = vmatpush.msra.mxu0 0.0
        %5042 = vmatpush.msra.mxu0 0.0
        %5043 = vmatpush.msra.mxu0 0.0
        %5044 = vmatpush.msra.mxu0 0.0
        %5045 = vmatpush.msra.mxu0 0.0
        %5046 = vmatpush.msra.mxu0 0.0
        %5047 = vmatpush.msra.mxu0 0.0
        %5048 = vmatpush.msra.mxu0 0.0
        %5049 = vmatpush.msra.mxu0 0.0
        %5050 = vmatpush.msra.mxu0 %v4849
        %5051 = vmatpush.msra.mxu0 %v4841
        %5052 = vmatpush.msra.mxu0 %v4833
        %5053 = vmatpush.msra.mxu0 %v4825
        %5054 = vmatmul.f32.gmra.mxu0 %v4882
        %v5055 = vpop.f32.mrf.mxu0
        %v5056 = vadd.f32 %v4863, %v5055
        %5057 = vmatmul.f32.gmra.mxu0 %v4885
        %v5058 = vpop.f32.mrf.mxu0
        %v5059 = vadd.f32 %v4868, %v5058
        %5060 = vmatmul.f32.gmra.mxu0 %v4888
        %v5061 = vpop.f32.mrf.mxu0
        %v5062 = vadd.f32 %v4873, %v5061
        %5063 = vmatmul.f32.gmra.mxu0 %v4891
        %v5064 = vpop.f32.mrf.mxu0
        %v5065 = vadd.f32 %v4878, %v5064
        %5066 = vdwg.mxu0
        %5067 = vmatpush.msra.mxu0 0.0
        %5068 = vmatpush.msra.mxu0 0.0
        %5069 = vmatpush.msra.mxu0 0.0
        %5070 = vmatpush.msra.mxu0 0.0
        %5071 = vmatpush.msra.mxu0 0.0
        %5072 = vmatpush.msra.mxu0 0.0
        %5073 = vmatpush.msra.mxu0 0.0
        %5074 = vmatpush.msra.mxu0 0.0
        %5075 = vmatpush.msra.mxu0 0.0
        %5076 = vmatpush.msra.mxu0 0.0
        %5077 = vmatpush.msra.mxu0 0.0
        %5078 = vmatpush.msra.mxu0 0.0
        %5079 = vmatpush.msra.mxu0 %v4850
        %5080 = vmatpush.msra.mxu0 %v4842
        %5081 = vmatpush.msra.mxu0 %v4834
        %5082 = vmatpush.msra.mxu0 %v4826
        %5083 = vmatmul.f32.gmra.mxu0 %v4882
        %v5084 = vpop.f32.mrf.mxu0
        %v5085 = vadd.f32 %v4863, %v5084
        %5086 = vmatmul.f32.gmra.mxu0 %v4885
        %v5087 = vpop.f32.mrf.mxu0
        %v5088 = vadd.f32 %v4868, %v5087
        %5089 = vmatmul.f32.gmra.mxu0 %v4888
        %v5090 = vpop.f32.mrf.mxu0
        %v5091 = vadd.f32 %v4873, %v5090
        %5092 = vmatmul.f32.gmra.mxu0 %v4891
        %v5093 = vpop.f32.mrf.mxu0
        %v5094 = vadd.f32 %v4878, %v5093
        %5095 = vdwg.mxu0
        %5096 = vmatpush.msra.mxu0 0.0
        %5097 = vmatpush.msra.mxu0 0.0
        %5098 = vmatpush.msra.mxu0 0.0
        %5099 = vmatpush.msra.mxu0 0.0
        %5100 = vmatpush.msra.mxu0 0.0
        %5101 = vmatpush.msra.mxu0 0.0
        %5102 = vmatpush.msra.mxu0 0.0
        %5103 = vmatpush.msra.mxu0 0.0
        %5104 = vmatpush.msra.mxu0 0.0
        %5105 = vmatpush.msra.mxu0 0.0
        %5106 = vmatpush.msra.mxu0 0.0
        %5107 = vmatpush.msra.mxu0 0.0
        %5108 = vmatpush.msra.mxu0 %v4851
        %5109 = vmatpush.msra.mxu0 %v4843
        %5110 = vmatpush.msra.mxu0 %v4835
        %5111 = vmatpush.msra.mxu0 %v4827
        %5112 = vmatmul.f32.gmra.mxu0 %v4882
        %v5113 = vpop.f32.mrf.mxu0
        %v5114 = vadd.f32 %v4863, %v5113
        %5115 = vmatmul.f32.gmra.mxu0 %v4885
        %v5116 = vpop.f32.mrf.mxu0
        %v5117 = vadd.f32 %v4868, %v5116
        %5118 = vmatmul.f32.gmra.mxu0 %v4888
        %v5119 = vpop.f32.mrf.mxu0
        %v5120 = vadd.f32 %v4873, %v5119
        %5121 = vmatmul.f32.gmra.mxu0 %v4891
        %v5122 = vpop.f32.mrf.mxu0
        %v5123 = vadd.f32 %v4878, %v5122
        %5124 = vdwg.mxu0
        %v5125 = vtanh.pop %v4911
        %v5126 = vtanh.pop %v4940
        %v5127 = vtanh.pop %v4969
        %v5128 = vtanh.pop %v4998
        %v5129 = vtanh.pop %v5027
        %v5130 = vtanh.pop %v5056
        %v5131 = vtanh.pop %v5085
        %v5132 = vtanh.pop %v5114
        %v5133 = vtanh.pop %v4914
        %v5134 = vtanh.pop %v4943
        %v5135 = vtanh.pop %v4972
        %v5136 = vtanh.pop %v5001
        %v5137 = vtanh.pop %v5030
        %v5138 = vtanh.pop %v5059
        %v5139 = vtanh.pop %v5088
        %v5140 = vtanh.pop %v5117
        %v5141 = vtanh.pop %v4917
        %v5142 = vtanh.pop %v4946
        %v5143 = vtanh.pop %v4975
        %v5144 = vtanh.pop %v5004
        %v5145 = vtanh.pop %v5033
        %v5146 = vtanh.pop %v5062
        %v5147 = vtanh.pop %v5091
        %v5148 = vtanh.pop %v5120
        %v5149 = vtanh.pop %v4920
        %v5150 = vtanh.pop %v4949
        %v5151 = vtanh.pop %v4978
        %v5152 = vtanh.pop %v5007
        %v5153 = vtanh.pop %v5036
        %v5154 = vtanh.pop %v5065
        %v5155 = vtanh.pop %v5094
        %v5156 = vtanh.pop %v5123
        %v5157 = vmul.f32 %v5125, %v4756
        %v5158 = vmul.f32 %v5126, %v4757
        %v5159 = vmul.f32 %v5127, %v4758
        %v5160 = vmul.f32 %v5128, %v4759
        %v5161 = vmul.f32 %v5129, %v4760
        %v5162 = vmul.f32 %v5130, %v4761
        %v5163 = vmul.f32 %v5131, %v4762
        %v5164 = vmul.f32 %v5132, %v4763
        %v5165 = vmul.f32 %v5133, %v4764
        %v5166 = vmul.f32 %v5134, %v4765
        %v5167 = vmul.f32 %v5135, %v4766
        %v5168 = vmul.f32 %v5136, %v4767
        %v5169 = vmul.f32 %v5137, %v4768
        %v5170 = vmul.f32 %v5138, %v4769
        %v5171 = vmul.f32 %v5139, %v4770
        %v5172 = vmul.f32 %v5140, %v4771
        %v5173 = vmul.f32 %v5141, %v4772
        %v5174 = vmul.f32 %v5142, %v4773
        %v5175 = vmul.f32 %v5143, %v4774
        %v5176 = vmul.f32 %v5144, %v4775
        %v5177 = vmul.f32 %v5145, %v4776
        %v5178 = vmul.f32 %v5146, %v4777
        %v5179 = vmul.f32 %v5147, %v4778
        %v5180 = vmul.f32 %v5148, %v4779
        %v5181 = vmul.f32 %v5149, %v4780
        %v5182 = vmul.f32 %v5150, %v4781
        %v5183 = vmul.f32 %v5151, %v4782
        %v5184 = vmul.f32 %v5152, %v4783
        %v5185 = vmul.f32 %v5153, %v4784
        %v5186 = vmul.f32 %v5154, %v4785
        %v5187 = vmul.f32 %v5155, %v4786
        %v5188 = vmul.f32 %v5156, %v4787
        %v5189 = vadd.f32 %v4660, %v5157
        %v5190 = vadd.f32 %v4661, %v5158
        %v5191 = vadd.f32 %v4662, %v5159
        %v5192 = vadd.f32 %v4663, %v5160
        %v5193 = vadd.f32 %v4664, %v5161
        %v5194 = vadd.f32 %v4665, %v5162
        %v5195 = vadd.f32 %v4666, %v5163
        %v5196 = vadd.f32 %v4667, %v5164
        %v5197 = vadd.f32 %v4668, %v5165
        %v5198 = vadd.f32 %v4669, %v5166
        %v5199 = vadd.f32 %v4670, %v5167
        %v5200 = vadd.f32 %v4671, %v5168
        %v5201 = vadd.f32 %v4672, %v5169
        %v5202 = vadd.f32 %v4673, %v5170
        %v5203 = vadd.f32 %v4674, %v5171
        %v5204 = vadd.f32 %v4675, %v5172
        %v5205 = vadd.f32 %v4676, %v5173
        %v5206 = vadd.f32 %v4677, %v5174
        %v5207 = vadd.f32 %v4678, %v5175
        %v5208 = vadd.f32 %v4679, %v5176
        %v5209 = vadd.f32 %v4680, %v5177
        %v5210 = vadd.f32 %v4681, %v5178
        %v5211 = vadd.f32 %v4682, %v5179
        %v5212 = vadd.f32 %v4683, %v5180
        %v5213 = vadd.f32 %v4684, %v5181
        %v5214 = vadd.f32 %v4685, %v5182
        %v5215 = vadd.f32 %v4686, %v5183
        %v5216 = vadd.f32 %v4687, %v5184
        %v5217 = vadd.f32 %v4688, %v5185
        %v5218 = vadd.f32 %v4689, %v5186
        %v5219 = vadd.f32 %v4690, %v5187
        %v5220 = vadd.f32 %v4691, %v5188
        %v5221 = vld [vmem:[%s7] sm:$0xff]
        %v5222 = vld [vmem:[%s7 + $0x8] sm:$0xff]
        %v5223 = vld [vmem:[%s7 + $0x10] sm:$0xff]
        %v5224 = vld [vmem:[%s7 + $0x18] sm:$0xff]
        %v5225 = vld [vmem:[%s8] sm:$0xff]
        %v5226 = vld [vmem:[%s8 + $0x8] sm:$0xff]
        %v5227 = vld [vmem:[%s8 + $0x10] sm:$0xff]
        %v5228 = vld [vmem:[%s8 + $0x18] sm:$0xff]
        %5230 = vset.pattern.permute.xlu0 0
        %5231 = vperm.xlu0 %5230, %v5225
        %v5232 = vpop.permute.xlu0 %5231
        %5235 = vset.pattern.permute.xlu0 0
        %5236 = vperm.xlu0 %5235, %v5226
        %v5237 = vpop.permute.xlu0 %5236
        %5240 = vset.pattern.permute.xlu0 0
        %5241 = vperm.xlu0 %5240, %v5227
        %v5242 = vpop.permute.xlu0 %5241
        %5245 = vset.pattern.permute.xlu0 0
        %5246 = vperm.xlu0 %5245, %v5228
        %v5247 = vpop.permute.xlu0 %5246
        %v5250 = vsel %vm4880, %v5221, 0
        %v5253 = vsel %vm4880, %v5222, 0
        %v5256 = vsel %vm4880, %v5223, 0
        %v5259 = vsel %vm4880, %v5224, 0
        %5261 = vmatpush.msra.mxu0 0.0
        %5262 = vmatpush.msra.mxu0 0.0
        %5263 = vmatpush.msra.mxu0 0.0
        %5264 = vmatpush.msra.mxu0 0.0
        %5265 = vmatpush.msra.mxu0 0.0
        %5266 = vmatpush.msra.mxu0 0.0
        %5267 = vmatpush.msra.mxu0 0.0
        %5268 = vmatpush.msra.mxu0 0.0
        %5269 = vmatpush.msra.mxu0 0.0
        %5270 = vmatpush.msra.mxu0 0.0
        %5271 = vmatpush.msra.mxu0 0.0
        %5272 = vmatpush.msra.mxu0 0.0
        %5273 = vmatpush.msra.mxu0 %v5213
        %5274 = vmatpush.msra.mxu0 %v5205
        %5275 = vmatpush.msra.mxu0 %v5197
        %5276 = vmatpush.msra.mxu0 %v5189
        %5277 = vmatmul.f32.gmra.mxu0 %v5250
        %v5278 = vpop.f32.mrf.mxu0
        %v5279 = vadd.f32 %v5232, %v5278
        %5280 = vmatmul.f32.gmra.mxu0 %v5253
        %v5281 = vpop.f32.mrf.mxu0
        %v5282 = vadd.f32 %v5237, %v5281
        %5283 = vmatmul.f32.gmra.mxu0 %v5256
        %v5284 = vpop.f32.mrf.mxu0
        %v5285 = vadd.f32 %v5242, %v5284
        %5286 = vmatmul.f32.gmra.mxu0 %v5259
        %v5287 = vpop.f32.mrf.mxu0
        %v5288 = vadd.f32 %v5247, %v5287
        %5289 = vdwg.mxu0
        %5290 = vmatpush.msra.mxu0 0.0
        %5291 = vmatpush.msra.mxu0 0.0
        %5292 = vmatpush.msra.mxu0 0.0
        %5293 = vmatpush.msra.mxu0 0.0
        %5294 = vmatpush.msra.mxu0 0.0
        %5295 = vmatpush.msra.mxu0 0.0
        %5296 = vmatpush.msra.mxu0 0.0
        %5297 = vmatpush.msra.mxu0 0.0
        %5298 = vmatpush.msra.mxu0 0.0
        %5299 = vmatpush.msra.mxu0 0.0
        %5300 = vmatpush.msra.mxu0 0.0
        %5301 = vmatpush.msra.mxu0 0.0
        %5302 = vmatpush.msra.mxu0 %v5214
        %5303 = vmatpush.msra.mxu0 %v5206
        %5304 = vmatpush.msra.mxu0 %v5198
        %5305 = vmatpush.msra.mxu0 %v5190
        %5306 = vmatmul.f32.gmra.mxu0 %v5250
        %v5307 = vpop.f32.mrf.mxu0
        %v5308 = vadd.f32 %v5232, %v5307
        %5309 = vmatmul.f32.gmra.mxu0 %v5253
        %v5310 = vpop.f32.mrf.mxu0
        %v5311 = vadd.f32 %v5237, %v5310
        %5312 = vmatmul.f32.gmra.mxu0 %v5256
        %v5313 = vpop.f32.mrf.mxu0
        %v5314 = vadd.f32 %v5242, %v5313
        %5315 = vmatmul.f32.gmra.mxu0 %v5259
        %v5316 = vpop.f32.mrf.mxu0
        %v5317 = vadd.f32 %v5247, %v5316
        %5318 = vdwg.mxu0
        %5319 = vmatpush.msra.mxu0 0.0
        %5320 = vmatpush.msra.mxu0 0.0
        %5321 = vmatpush.msra.mxu0 0.0
        %5322 = vmatpush.msra.mxu0 0.0
        %5323 = vmatpush.msra.mxu0 0.0
        %5324 = vmatpush.msra.mxu0 0.0
        %5325 = vmatpush.msra.mxu0 0.0
        %5326 = vmatpush.msra.mxu0 0.0
        %5327 = vmatpush.msra.mxu0 0.0
        %5328 = vmatpush.msra.mxu0 0.0
        %5329 = vmatpush.msra.mxu0 0.0
        %5330 = vmatpush.msra.mxu0 0.0
        %5331 = vmatpush.msra.mxu0 %v5215
        %5332 = vmatpush.msra.mxu0 %v5207
        %5333 = vmatpush.msra.mxu0 %v5199
        %5334 = vmatpush.msra.mxu0 %v5191
        %5335 = vmatmul.f32.gmra.mxu0 %v5250
        %v5336 = vpop.f32.mrf.mxu0
        %v5337 = vadd.f32 %v5232, %v5336
        %5338 = vmatmul.f32.gmra.mxu0 %v5253
        %v5339 = vpop.f32.mrf.mxu0
        %v5340 = vadd.f32 %v5237, %v5339
        %5341 = vmatmul.f32.gmra.mxu0 %v5256
        %v5342 = vpop.f32.mrf.mxu0
        %v5343 = vadd.f32 %v5242, %v5342
        %5344 = vmatmul.f32.gmra.mxu0 %v5259
        %v5345 = vpop.f32.mrf.mxu0
        %v5346 = vadd.f32 %v5247, %v5345
        %5347 = vdwg.mxu0
        %5348 = vmatpush.msra.mxu0 0.0
        %5349 = vmatpush.msra.mxu0 0.0
        %5350 = vmatpush.msra.mxu0 0.0
        %5351 = vmatpush.msra.mxu0 0.0
        %5352 = vmatpush.msra.mxu0 0.0
        %5353 = vmatpush.msra.mxu0 0.0
        %5354 = vmatpush.msra.mxu0 0.0
        %5355 = vmatpush.msra.mxu0 0.0
        %5356 = vmatpush.msra.mxu0 0.0
        %5357 = vmatpush.msra.mxu0 0.0
        %5358 = vmatpush.msra.mxu0 0.0
        %5359 = vmatpush.msra.mxu0 0.0
        %5360 = vmatpush.msra.mxu0 %v5216
        %5361 = vmatpush.msra.mxu0 %v5208
        %5362 = vmatpush.msra.mxu0 %v5200
        %5363 = vmatpush.msra.mxu0 %v5192
        %5364 = vmatmul.f32.gmra.mxu0 %v5250
        %v5365 = vpop.f32.mrf.mxu0
        %v5366 = vadd.f32 %v5232, %v5365
        %5367 = vmatmul.f32.gmra.mxu0 %v5253
        %v5368 = vpop.f32.mrf.mxu0
        %v5369 = vadd.f32 %v5237, %v5368
        %5370 = vmatmul.f32.gmra.mxu0 %v5256
        %v5371 = vpop.f32.mrf.mxu0
        %v5372 = vadd.f32 %v5242, %v5371
        %5373 = vmatmul.f32.gmra.mxu0 %v5259
        %v5374 = vpop.f32.mrf.mxu0
        %v5375 = vadd.f32 %v5247, %v5374
        %5376 = vdwg.mxu0
        %5377 = vmatpush.msra.mxu0 0.0
        %5378 = vmatpush.msra.mxu0 0.0
        %5379 = vmatpush.msra.mxu0 0.0
        %5380 = vmatpush.msra.mxu0 0.0
        %5381 = vmatpush.msra.mxu0 0.0
        %5382 = vmatpush.msra.mxu0 0.0
        %5383 = vmatpush.msra.mxu0 0.0
        %5384 = vmatpush.msra.mxu0 0.0
        %5385 = vmatpush.msra.mxu0 0.0
        %5386 = vmatpush.msra.mxu0 0.0
        %5387 = vmatpush.msra.mxu0 0.0
        %5388 = vmatpush.msra.mxu0 0.0
        %5389 = vmatpush.msra.mxu0 %v5217
        %5390 = vmatpush.msra.mxu0 %v5209
        %5391 = vmatpush.msra.mxu0 %v5201
        %5392 = vmatpush.msra.mxu0 %v5193
        %5393 = vmatmul.f32.gmra.mxu0 %v5250
        %v5394 = vpop.f32.mrf.mxu0
        %v5395 = vadd.f32 %v5232, %v5394
        %5396 = vmatmul.f32.gmra.mxu0 %v5253
        %v5397 = vpop.f32.mrf.mxu0
        %v5398 = vadd.f32 %v5237, %v5397
        %5399 = vmatmul.f32.gmra.mxu0 %v5256
        %v5400 = vpop.f32.mrf.mxu0
        %v5401 = vadd.f32 %v5242, %v5400
        %5402 = vmatmul.f32.gmra.mxu0 %v5259
        %v5403 = vpop.f32.mrf.mxu0
        %v5404 = vadd.f32 %v5247, %v5403
        %5405 = vdwg.mxu0
        %5406 = vmatpush.msra.mxu0 0.0
        %5407 = vmatpush.msra.mxu0 0.0
        %5408 = vmatpush.msra.mxu0 0.0
        %5409 = vmatpush.msra.mxu0 0.0
        %5410 = vmatpush.msra.mxu0 0.0
        %5411 = vmatpush.msra.mxu0 0.0
        %5412 = vmatpush.msra.mxu0 0.0
        %5413 = vmatpush.msra.mxu0 0.0
        %5414 = vmatpush.msra.mxu0 0.0
        %5415 = vmatpush.msra.mxu0 0.0
        %5416 = vmatpush.msra.mxu0 0.0
        %5417 = vmatpush.msra.mxu0 0.0
        %5418 = vmatpush.msra.mxu0 %v5218
        %5419 = vmatpush.msra.mxu0 %v5210
        %5420 = vmatpush.msra.mxu0 %v5202
        %5421 = vmatpush.msra.mxu0 %v5194
        %5422 = vmatmul.f32.gmra.mxu0 %v5250
        %v5423 = vpop.f32.mrf.mxu0
        %v5424 = vadd.f32 %v5232, %v5423
        %5425 = vmatmul.f32.gmra.mxu0 %v5253
        %v5426 = vpop.f32.mrf.mxu0
        %v5427 = vadd.f32 %v5237, %v5426
        %5428 = vmatmul.f32.gmra.mxu0 %v5256
        %v5429 = vpop.f32.mrf.mxu0
        %v5430 = vadd.f32 %v5242, %v5429
        %5431 = vmatmul.f32.gmra.mxu0 %v5259
        %v5432 = vpop.f32.mrf.mxu0
        %v5433 = vadd.f32 %v5247, %v5432
        %5434 = vdwg.mxu0
        %5435 = vmatpush.msra.mxu0 0.0
        %5436 = vmatpush.msra.mxu0 0.0
        %5437 = vmatpush.msra.mxu0 0.0
        %5438 = vmatpush.msra.mxu0 0.0
        %5439 = vmatpush.msra.mxu0 0.0
        %5440 = vmatpush.msra.mxu0 0.0
        %5441 = vmatpush.msra.mxu0 0.0
        %5442 = vmatpush.msra.mxu0 0.0
        %5443 = vmatpush.msra.mxu0 0.0
        %5444 = vmatpush.msra.mxu0 0.0
        %5445 = vmatpush.msra.mxu0 0.0
        %5446 = vmatpush.msra.mxu0 0.0
        %5447 = vmatpush.msra.mxu0 %v5219
        %5448 = vmatpush.msra.mxu0 %v5211
        %5449 = vmatpush.msra.mxu0 %v5203
        %5450 = vmatpush.msra.mxu0 %v5195
        %5451 = vmatmul.f32.gmra.mxu0 %v5250
        %v5452 = vpop.f32.mrf.mxu0
        %v5453 = vadd.f32 %v5232, %v5452
        %5454 = vmatmul.f32.gmra.mxu0 %v5253
        %v5455 = vpop.f32.mrf.mxu0
        %v5456 = vadd.f32 %v5237, %v5455
        %5457 = vmatmul.f32.gmra.mxu0 %v5256
        %v5458 = vpop.f32.mrf.mxu0
        %v5459 = vadd.f32 %v5242, %v5458
        %5460 = vmatmul.f32.gmra.mxu0 %v5259
        %v5461 = vpop.f32.mrf.mxu0
        %v5462 = vadd.f32 %v5247, %v5461
        %5463 = vdwg.mxu0
        %5464 = vmatpush.msra.mxu0 0.0
        %5465 = vmatpush.msra.mxu0 0.0
        %5466 = vmatpush.msra.mxu0 0.0
        %5467 = vmatpush.msra.mxu0 0.0
        %5468 = vmatpush.msra.mxu0 0.0
        %5469 = vmatpush.msra.mxu0 0.0
        %5470 = vmatpush.msra.mxu0 0.0
        %5471 = vmatpush.msra.mxu0 0.0
        %5472 = vmatpush.msra.mxu0 0.0
        %5473 = vmatpush.msra.mxu0 0.0
        %5474 = vmatpush.msra.mxu0 0.0
        %5475 = vmatpush.msra.mxu0 0.0
        %5476 = vmatpush.msra.mxu0 %v5220
        %5477 = vmatpush.msra.mxu0 %v5212
        %5478 = vmatpush.msra.mxu0 %v5204
        %5479 = vmatpush.msra.mxu0 %v5196
        %5480 = vmatmul.f32.gmra.mxu0 %v5250
        %v5481 = vpop.f32.mrf.mxu0
        %v5482 = vadd.f32 %v5232, %v5481
        %5483 = vmatmul.f32.gmra.mxu0 %v5253
        %v5484 = vpop.f32.mrf.mxu0
        %v5485 = vadd.f32 %v5237, %v5484
        %5486 = vmatmul.f32.gmra.mxu0 %v5256
        %v5487 = vpop.f32.mrf.mxu0
        %v5488 = vadd.f32 %v5242, %v5487
        %5489 = vmatmul.f32.gmra.mxu0 %v5259
        %v5490 = vpop.f32.mrf.mxu0
        %v5491 = vadd.f32 %v5247, %v5490
        %5492 = vdwg.mxu0
        %v5493 = vtanh.pop %v5279
        %v5494 = vtanh.pop %v5308
        %v5495 = vtanh.pop %v5337
        %v5496 = vtanh.pop %v5366
        %v5497 = vtanh.pop %v5395
        %v5498 = vtanh.pop %v5424
        %v5499 = vtanh.pop %v5453
        %v5500 = vtanh.pop %v5482
        %v5501 = vtanh.pop %v5282
        %v5502 = vtanh.pop %v5311
        %v5503 = vtanh.pop %v5340
        %v5504 = vtanh.pop %v5369
        %v5505 = vtanh.pop %v5398
        %v5506 = vtanh.pop %v5427
        %v5507 = vtanh.pop %v5456
        %v5508 = vtanh.pop %v5485
        %v5509 = vtanh.pop %v5285
        %v5510 = vtanh.pop %v5314
        %v5511 = vtanh.pop %v5343
        %v5512 = vtanh.pop %v5372
        %v5513 = vtanh.pop %v5401
        %v5514 = vtanh.pop %v5430
        %v5515 = vtanh.pop %v5459
        %v5516 = vtanh.pop %v5488
        %v5517 = vtanh.pop %v5288
        %v5518 = vtanh.pop %v5317
        %v5519 = vtanh.pop %v5346
        %v5520 = vtanh.pop %v5375
        %v5521 = vtanh.pop %v5404
        %v5522 = vtanh.pop %v5433
        %v5523 = vtanh.pop %v5462
        %v5524 = vtanh.pop %v5491
        %v5525 = vmul.f32 %v5493, %v4756
        %v5526 = vmul.f32 %v5494, %v4757
        %v5527 = vmul.f32 %v5495, %v4758
        %v5528 = vmul.f32 %v5496, %v4759
        %v5529 = vmul.f32 %v5497, %v4760
        %v5530 = vmul.f32 %v5498, %v4761
        %v5531 = vmul.f32 %v5499, %v4762
        %v5532 = vmul.f32 %v5500, %v4763
        %v5533 = vmul.f32 %v5501, %v4764
        %v5534 = vmul.f32 %v5502, %v4765
        %v5535 = vmul.f32 %v5503, %v4766
        %v5536 = vmul.f32 %v5504, %v4767
        %v5537 = vmul.f32 %v5505, %v4768
        %v5538 = vmul.f32 %v5506, %v4769
        %v5539 = vmul.f32 %v5507, %v4770
        %v5540 = vmul.f32 %v5508, %v4771
        %v5541 = vmul.f32 %v5509, %v4772
        %v5542 = vmul.f32 %v5510, %v4773
        %v5543 = vmul.f32 %v5511, %v4774
        %v5544 = vmul.f32 %v5512, %v4775
        %v5545 = vmul.f32 %v5513, %v4776
        %v5546 = vmul.f32 %v5514, %v4777
        %v5547 = vmul.f32 %v5515, %v4778
        %v5548 = vmul.f32 %v5516, %v4779
        %v5549 = vmul.f32 %v5517, %v4780
        %v5550 = vmul.f32 %v5518, %v4781
        %v5551 = vmul.f32 %v5519, %v4782
        %v5552 = vmul.f32 %v5520, %v4783
        %v5553 = vmul.f32 %v5521, %v4784
        %v5554 = vmul.f32 %v5522, %v4785
        %v5555 = vmul.f32 %v5523, %v4786
        %v5556 = vmul.f32 %v5524, %v4787
        %v5557 = vadd.f32 %v4660, %v5525
        %v5558 = vadd.f32 %v4661, %v5526
        %v5559 = vadd.f32 %v4662, %v5527
        %v5560 = vadd.f32 %v4663, %v5528
        %v5561 = vadd.f32 %v4664, %v5529
        %v5562 = vadd.f32 %v4665, %v5530
        %v5563 = vadd.f32 %v4666, %v5531
        %v5564 = vadd.f32 %v4667, %v5532
        %v5565 = vadd.f32 %v4668, %v5533
        %v5566 = vadd.f32 %v4669, %v5534
        %v5567 = vadd.f32 %v4670, %v5535
        %v5568 = vadd.f32 %v4671, %v5536
        %v5569 = vadd.f32 %v4672, %v5537
        %v5570 = vadd.f32 %v4673, %v5538
        %v5571 = vadd.f32 %v4674, %v5539
        %v5572 = vadd.f32 %v4675, %v5540
        %v5573 = vadd.f32 %v4676, %v5541
        %v5574 = vadd.f32 %v4677, %v5542
        %v5575 = vadd.f32 %v4678, %v5543
        %v5576 = vadd.f32 %v4679, %v5544
        %v5577 = vadd.f32 %v4680, %v5545
        %v5578 = vadd.f32 %v4681, %v5546
        %v5579 = vadd.f32 %v4682, %v5547
        %v5580 = vadd.f32 %v4683, %v5548
        %v5581 = vadd.f32 %v4684, %v5549
        %v5582 = vadd.f32 %v4685, %v5550
        %v5583 = vadd.f32 %v4686, %v5551
        %v5584 = vadd.f32 %v4687, %v5552
        %v5585 = vadd.f32 %v4688, %v5553
        %v5586 = vadd.f32 %v4689, %v5554
        %v5587 = vadd.f32 %v4690, %v5555
        %v5588 = vadd.f32 %v4691, %v5556
        %v5589 = vld [vmem:[%s9] sm:$0x1]
        %v5590 = vld [vmem:[#allocation2] sm:$0x1]
        %5592 = vset.pattern.permute.xlu0 0
        %5593 = vperm.xlu0 %5592, %v5590
        %v5594 = vpop.permute.xlu0 %5593
        %v5596 = vperm.slane %v5594, 0
        %v5598 = vsel %vm4880, %v5589, 0
        %5600 = vmatpush.msra.mxu0 0.0
        %5601 = vmatpush.msra.mxu0 0.0
        %5602 = vmatpush.msra.mxu0 0.0
        %5603 = vmatpush.msra.mxu0 0.0
        %5604 = vmatpush.msra.mxu0 0.0
        %5605 = vmatpush.msra.mxu0 0.0
        %5606 = vmatpush.msra.mxu0 0.0
        %5607 = vmatpush.msra.mxu0 0.0
        %5608 = vmatpush.msra.mxu0 0.0
        %5609 = vmatpush.msra.mxu0 0.0
        %5610 = vmatpush.msra.mxu0 0.0
        %5611 = vmatpush.msra.mxu0 0.0
        %5612 = vmatpush.msra.mxu0 %v5581
        %5613 = vmatpush.msra.mxu0 %v5573
        %5614 = vmatpush.msra.mxu0 %v5565
        %5615 = vmatpush.msra.mxu0 %v5557
        %5616 = vmatmul.f32.gmra.mxu0 %v5598
        %v5617 = vpop.f32.mrf.mxu0
        %v5618 = vadd.f32 %v5596, %v5617
        %5619 = vdwg.mxu0
        %5620 = vmatpush.msra.mxu0 0.0
        %5621 = vmatpush.msra.mxu0 0.0
        %5622 = vmatpush.msra.mxu0 0.0
        %5623 = vmatpush.msra.mxu0 0.0
        %5624 = vmatpush.msra.mxu0 0.0
        %5625 = vmatpush.msra.mxu0 0.0
        %5626 = vmatpush.msra.mxu0 0.0
        %5627 = vmatpush.msra.mxu0 0.0
        %5628 = vmatpush.msra.mxu0 0.0
        %5629 = vmatpush.msra.mxu0 0.0
        %5630 = vmatpush.msra.mxu0 0.0
        %5631 = vmatpush.msra.mxu0 0.0
        %5632 = vmatpush.msra.mxu0 %v5582
        %5633 = vmatpush.msra.mxu0 %v5574
        %5634 = vmatpush.msra.mxu0 %v5566
        %5635 = vmatpush.msra.mxu0 %v5558
        %5636 = vmatmul.f32.gmra.mxu0 %v5598
        %v5637 = vpop.f32.mrf.mxu0
        %v5638 = vadd.f32 %v5596, %v5637
        %5639 = vdwg.mxu0
        %5640 = vmatpush.msra.mxu0 0.0
        %5641 = vmatpush.msra.mxu0 0.0
        %5642 = vmatpush.msra.mxu0 0.0
        %5643 = vmatpush.msra.mxu0 0.0
        %5644 = vmatpush.msra.mxu0 0.0
        %5645 = vmatpush.msra.mxu0 0.0
        %5646 = vmatpush.msra.mxu0 0.0
        %5647 = vmatpush.msra.mxu0 0.0
        %5648 = vmatpush.msra.mxu0 0.0
        %5649 = vmatpush.msra.mxu0 0.0
        %5650 = vmatpush.msra.mxu0 0.0
        %5651 = vmatpush.msra.mxu0 0.0
        %5652 = vmatpush.msra.mxu0 %v5583
        %5653 = vmatpush.msra.mxu0 %v5575
        %5654 = vmatpush.msra.mxu0 %v5567
        %5655 = vmatpush.msra.mxu0 %v5559
        %5656 = vmatmul.f32.gmra.mxu0 %v5598
        %v5657 = vpop.f32.mrf.mxu0
        %v5658 = vadd.f32 %v5596, %v5657
        %5659 = vdwg.mxu0
        %5660 = vmatpush.msra.mxu0 0.0
        %5661 = vmatpush.msra.mxu0 0.0
        %5662 = vmatpush.msra.mxu0 0.0
        %5663 = vmatpush.msra.mxu0 0.0
        %5664 = vmatpush.msra.mxu0 0.0
        %5665 = vmatpush.msra.mxu0 0.0
        %5666 = vmatpush.msra.mxu0 0.0
        %5667 = vmatpush.msra.mxu0 0.0
        %5668 = vmatpush.msra.mxu0 0.0
        %5669 = vmatpush.msra.mxu0 0.0
        %5670 = vmatpush.msra.mxu0 0.0
        %5671 = vmatpush.msra.mxu0 0.0
        %5672 = vmatpush.msra.mxu0 %v5584
        %5673 = vmatpush.msra.mxu0 %v5576
        %5674 = vmatpush.msra.mxu0 %v5568
        %5675 = vmatpush.msra.mxu0 %v5560
        %5676 = vmatmul.f32.gmra.mxu0 %v5598
        %v5677 = vpop.f32.mrf.mxu0
        %v5678 = vadd.f32 %v5596, %v5677
        %5679 = vdwg.mxu0
        %5680 = vmatpush.msra.mxu0 0.0
        %5681 = vmatpush.msra.mxu0 0.0
        %5682 = vmatpush.msra.mxu0 0.0
        %5683 = vmatpush.msra.mxu0 0.0
        %5684 = vmatpush.msra.mxu0 0.0
        %5685 = vmatpush.msra.mxu0 0.0
        %5686 = vmatpush.msra.mxu0 0.0
        %5687 = vmatpush.msra.mxu0 0.0
        %5688 = vmatpush.msra.mxu0 0.0
        %5689 = vmatpush.msra.mxu0 0.0
        %5690 = vmatpush.msra.mxu0 0.0
        %5691 = vmatpush.msra.mxu0 0.0
        %5692 = vmatpush.msra.mxu0 %v5585
        %5693 = vmatpush.msra.mxu0 %v5577
        %5694 = vmatpush.msra.mxu0 %v5569
        %5695 = vmatpush.msra.mxu0 %v5561
        %5696 = vmatmul.f32.gmra.mxu0 %v5598
        %v5697 = vpop.f32.mrf.mxu0
        %v5698 = vadd.f32 %v5596, %v5697
        %5699 = vdwg.mxu0
        %5700 = vmatpush.msra.mxu0 0.0
        %5701 = vmatpush.msra.mxu0 0.0
        %5702 = vmatpush.msra.mxu0 0.0
        %5703 = vmatpush.msra.mxu0 0.0
        %5704 = vmatpush.msra.mxu0 0.0
        %5705 = vmatpush.msra.mxu0 0.0
        %5706 = vmatpush.msra.mxu0 0.0
        %5707 = vmatpush.msra.mxu0 0.0
        %5708 = vmatpush.msra.mxu0 0.0
        %5709 = vmatpush.msra.mxu0 0.0
        %5710 = vmatpush.msra.mxu0 0.0
        %5711 = vmatpush.msra.mxu0 0.0
        %5712 = vmatpush.msra.mxu0 %v5586
        %5713 = vmatpush.msra.mxu0 %v5578
        %5714 = vmatpush.msra.mxu0 %v5570
        %5715 = vmatpush.msra.mxu0 %v5562
        %5716 = vmatmul.f32.gmra.mxu0 %v5598
        %v5717 = vpop.f32.mrf.mxu0
        %v5718 = vadd.f32 %v5596, %v5717
        %5719 = vdwg.mxu0
        %5720 = vmatpush.msra.mxu0 0.0
        %5721 = vmatpush.msra.mxu0 0.0
        %5722 = vmatpush.msra.mxu0 0.0
        %5723 = vmatpush.msra.mxu0 0.0
        %5724 = vmatpush.msra.mxu0 0.0
        %5725 = vmatpush.msra.mxu0 0.0
        %5726 = vmatpush.msra.mxu0 0.0
        %5727 = vmatpush.msra.mxu0 0.0
        %5728 = vmatpush.msra.mxu0 0.0
        %5729 = vmatpush.msra.mxu0 0.0
        %5730 = vmatpush.msra.mxu0 0.0
        %5731 = vmatpush.msra.mxu0 0.0
        %5732 = vmatpush.msra.mxu0 %v5587
        %5733 = vmatpush.msra.mxu0 %v5579
        %5734 = vmatpush.msra.mxu0 %v5571
        %5735 = vmatpush.msra.mxu0 %v5563
        %5736 = vmatmul.f32.gmra.mxu0 %v5598
        %v5737 = vpop.f32.mrf.mxu0
        %v5738 = vadd.f32 %v5596, %v5737
        %5739 = vdwg.mxu0
        %5740 = vmatpush.msra.mxu0 0.0
        %5741 = vmatpush.msra.mxu0 0.0
        %5742 = vmatpush.msra.mxu0 0.0
        %5743 = vmatpush.msra.mxu0 0.0
        %5744 = vmatpush.msra.mxu0 0.0
        %5745 = vmatpush.msra.mxu0 0.0
        %5746 = vmatpush.msra.mxu0 0.0
        %5747 = vmatpush.msra.mxu0 0.0
        %5748 = vmatpush.msra.mxu0 0.0
        %5749 = vmatpush.msra.mxu0 0.0
        %5750 = vmatpush.msra.mxu0 0.0
        %5751 = vmatpush.msra.mxu0 0.0
        %5752 = vmatpush.msra.mxu0 %v5588
        %5753 = vmatpush.msra.mxu0 %v5580
        %5754 = vmatpush.msra.mxu0 %v5572
        %5755 = vmatpush.msra.mxu0 %v5564
        %5756 = vmatmul.f32.gmra.mxu0 %v5598
        %v5757 = vpop.f32.mrf.mxu0
        %v5758 = vadd.f32 %v5596, %v5757
        %5759 = vdwg.mxu0
        %v5768 = vrot.slane %v5638, 7
        %v5769 = vrot.slane %v5658, 6
        %v5770 = vrot.slane %v5678, 5
        %v5771 = vrot.slane %v5698, 4
        %v5772 = vrot.slane %v5718, 3
        %v5773 = vrot.slane %v5738, 2
        %v5774 = vrot.slane %v5758, 1
        %vm5775 = vcmask 1040384
        %v5776 = vsel %vm5775, %v5618, %v5768
        %vm5777 = vcmask 1042434
        %v5778 = vsel %vm5777, %v5769, %v5770
        %vm5779 = vcmask 1041408
        %v5780 = vsel %vm5779, %v5776, %v5778
        %vm5781 = vcmask 1044484
        %v5782 = vsel %vm5781, %v5771, %v5772
        %vm5783 = vcmask 1046534
        %v5784 = vsel %vm5783, %v5773, %v5774
        %vm5785 = vcmask 1045508
        %v5786 = vsel %vm5785, %v5782, %v5784
        %vm5787 = vcmask 1043456
        %v5788 = vsel %vm5787, %v5780, %v5786
        %5790 = vst [vmem:[%s382] sm:$0xff] %v5788
        %s5791 = sand.u32 %s271, 1
        %s5792 = scalar_lea.sflag [#allocation4], %s5791
        %s5793 = sand.u32 %s271, 1
        %s5794 = smul.addr %s5793, 8
        %s5795 = scalar_lea.vmem [#allocation3], %s5794
        // Predicated region
        $region65: #{tpu_custom_call.1} parent=63 // pred_check
          %p5796 = pneg %p281
        $region66: #{tpu_custom_call.1} parent=63 // pred_check_branch
          %5798 = sbr.rel (%p5796) target = $region68
        $region67: #{tpu_custom_call.1} parent=63 // pred_region
          %s5799 = smul.u32 8, %s27
          %5801 = vsyncadd %s5792, 0
          %s5802 = scalar_lea.hbm %s11, %s5799
          %s5804 = sshll.u32 %s5795, 4
          %s5805 = int_to_ptr.vmem [resolvable:$true] %s5804
          %s5806 = sshll.u32 %s5802, 4
          %s5807 = int_to_ptr.hbm [resolvable:$true] %s5806
          %5809 = dma.vmem_to_hbm [thread:$0]  %s5805, 128, %s5807, %s5792
        $region68: #{tpu_custom_call.1} parent=63 // pred_fallthru
          _
      $region64: #{tpu_custom_call.1} parent=5 // pred_fallthru
        _
      %p5810 = scmp.le.s32.totalorder 2, %s22
      // Predicated region
      $region69: #{tpu_custom_call.1} parent=5 // pred_check
        %p5811 = pneg %p5810
      $region70: #{tpu_custom_call.1} parent=5 // pred_check_branch
        %5813 = sbr.rel (%p5811) target = $region72
      $region71: #{tpu_custom_call.1} parent=5 // pred_region
        %s5814 = ssub.s32 %s22, 2
        // Predicated region
        $region73: #{tpu_custom_call.1} parent=71 // pred_check
          %p5815 = pneg %p287
        $region74: #{tpu_custom_call.1} parent=71 // pred_check_branch
          %5817 = sbr.rel (%p5815) target = $region76
        $region75: #{tpu_custom_call.1} parent=71 // pred_region
          %s5818 = sand.u32 %s272, 1
          %s5819 = scalar_lea.sflag [#allocation4], %s5818
          %s5820 = sand.u32 %s272, 1
          %s5821 = smul.addr %s5820, 8
          %s5822 = scalar_lea.vmem [#allocation3], %s5821
          %5824 = dma.done %s5819, 128
        $region76: #{tpu_custom_call.1} parent=71 // pred_fallthru
          _
      $region72: #{tpu_custom_call.1} parent=5 // pred_fallthru
        _
    $region6: #{tpu_custom_call.1} parent=1 // loop_footer
      %s26 = sadd.s32 1, %s22
    $region7: #{tpu_custom_call.1} parent=1 // loop_footer_branch
      %21 = sbr.rel target = $region3
    $region8: #{tpu_custom_call.1} parent=1 // loop_exit
      _
    %5825 = vsyncpa [#allocation4], 1
    %s5826 = scalar_lea.sflag [#allocation4], 1
    %5827 = vsyncpa %s5826, 1

</llo_original>
